<compile_context>
chip_gen: v5e
topology: v5e:2x2
jax: 0.10.0
libtpu: 0.0.40
codegen_flags: <defaults>
</compile_context>

<pallas_src>
import numpy as np

import jax
import jax.numpy as jnp
from jax.experimental import pallas as pl
from jax.experimental.pallas import tpu as pltpu  # noqa: F401  (TPU backend)

BN_EPS = 1e-5
F32_MAX = 3.4028235e38


# ----------------------------------------------------------------------------
# Host-side constants: 3x3 tap-selection matrices & pooling matrix
# ----------------------------------------------------------------------------
def _conv3x3_selection(batch, hw, stride):
    """Constant 0/1 matrix S of shape (9*Mout, Min): for tap t,
    S[t*Mout:(t+1)*Mout] @ x gathers the tap-t input pixel for every output
    pixel of a 'same'-padded 3x3 conv on activations flattened to
    (batch*hw*hw, C) rows.  Out-of-bounds taps map to all-zero rows."""
    ho = (hw - 1) // stride + 1
    m_in = batch * hw * hw
    m_out = batch * ho * ho
    s = np.zeros((9 * m_out, m_in), np.float32)
    for t in range(9):
        di, dj = t // 3, t % 3
        for b in range(batch):
            for oh in range(ho):
                for ow in range(ho):
                    ih = oh * stride + di - 1
                    iw = ow * stride + dj - 1
                    if 0 <= ih < hw and 0 <= iw < hw:
                        s[t * m_out + (b * ho + oh) * ho + ow,
                          (b * hw + ih) * hw + iw] = 1.0
    return s, ho


def _pack_slab(pieces, row_align):
    """Pack 2D pieces (rows x cols<=128) into one (R, 128) slab, each piece
    row-aligned to `row_align` (8 for f32 tiles, 16 for bf16 tiles) so every
    in-kernel static slice is (sublane-)tile aligned."""
    blocks, meta, off = [], {}, 0
    for name, arr in pieces:
        a = np.asarray(arr, np.float32)
        r, c = a.shape
        rp = ((r + row_align - 1) // row_align) * row_align
        blk = np.zeros((rp, 128), np.float32)
        blk[:r, :c] = a
        meta[name] = (off, r, c)
        blocks.append(blk)
        off += rp
    return np.concatenate(blocks, axis=0), meta


# ----------------------------------------------------------------------------
# Parameter construction (BN pre-folded; weights packed into 2 slabs)
# ----------------------------------------------------------------------------
def init_params(key, batch, img_hw=16):
    keys = iter(jax.random.split(key, 24))
    s_bn = float(1.0 / np.sqrt(1.0 + BN_EPS))  # gamma=1, beta=0, mean=0, var=1

    def conv3x3_w(cin, cout):  # (9*cin, cout), tap-major rows, BN scale folded
        w = jax.random.normal(next(keys), (9, cin, cout), jnp.float32)
        return np.asarray(w / np.sqrt(9.0 * cin) * s_bn).reshape(9 * cin, cout)

    def conv1x1_w(cin, cout):
        w = jax.random.normal(next(keys), (cin, cout), jnp.float32)
        return np.asarray(w / np.sqrt(cin) * s_bn)

    def dw3x3_w(c):            # (9, c) per-channel taps, BN scale folded
        w = jax.random.normal(next(keys), (9, c), jnp.float32)
        return np.asarray(w / 3.0 * s_bn)

    def linear(cin, cout, fold_bn):  # nn.init: W ~ N(0, 0.01), bias = 0
        w = np.asarray(jax.random.normal(next(keys), (cin, cout), jnp.float32)) * 0.01
        b = np.zeros((1, cout), np.float32)
        if fold_bn:            # (x@W + b) through eval BN -> x@(W*s) + b*s
            w, b = w * s_bn, b * s_bn
        return w, b

    w_pieces = [
        ("stem_w", conv3x3_w(5, 16)),          # stem 3x3 s2
        ("b1_c1_w", conv3x3_w(16, 16)),        # FusedMBConv 16->16 s1
        ("b1_c2_w", conv1x1_w(16, 16)),
        ("b2_c1_w", conv3x3_w(16, 32)),        # FusedMBConv 16->32 s2
        ("b2_c2_w", conv1x1_w(32, 32)),
        ("b3_c1_w", conv3x3_w(32, 64)),        # FusedMBConv 32->32 s1
        ("b3_c2_w", conv1x1_w(64, 32)),
        ("b4_exp_w", conv1x1_w(32, 64)),       # MBConv 32->64 s2
        ("b4_dw_w", dw3x3_w(64)),
        ("b4_prj_w", conv1x1_w(64, 64)),
        ("b5_exp_w", conv1x1_w(64, 128)),      # MBConv 64->64 s1
        ("b5_dw_w", dw3x3_w(128)),
        ("b5_prj_w", conv1x1_w(128, 64)),
        ("fin_w", conv1x1_w(64, 128)),         # final 1x1 64->128
    ]
    clin_w, clin_b = linear(6, 16, True)
    vol_w, vol_b = linear(3, 8, True)
    cls1_w, cls1_b = linear(128 + 16 + 8, 128, True)
    cls2_w, cls2_b = linear(128, 3, False)
    w_pieces += [("clin_w", clin_w), ("clin_b", clin_b),
                 ("vol_w", vol_w), ("vol_b", vol_b),
                 ("cls1_w", cls1_w), ("cls1_b", cls1_b),
                 ("cls2_w", cls2_w), ("cls2_b", cls2_b)]

    # selection / pooling constants (exact in bf16: entries are 0/1 and 1/(h*h))
    h1 = (img_hw - 1) // 2 + 1                 # after stride-2 stem
    s1, _ = _conv3x3_selection(batch, h1, 1)
    s2, h2 = _conv3x3_selection(batch, h1, 2)
    s3, _ = _conv3x3_selection(batch, h2, 1)
    s4, h3 = _conv3x3_selection(batch, h2, 2)
    s5, _ = _conv3x3_selection(batch, h3, 1)
    pool = np.zeros((batch, batch * h3 * h3), np.float32)
    for b in range(batch):
        pool[b, b * h3 * h3:(b + 1) * h3 * h3] = 1.0 / (h3 * h3)
    s_pieces = [("S_b1", s1), ("S_b2", s2), ("S_b3", s3),
                ("S_b4", s4), ("S_b5", s5), ("pool", pool)]

    wslab, wmeta = _pack_slab(w_pieces, row_align=8)    # f32 (8,128) tiles
    sslab, smeta = _pack_slab(s_pieces, row_align=16)   # bf16 (16,128) tiles

    params = {"wslab": jnp.asarray(wslab, jnp.float32),
              "sslab": jnp.asarray(sslab, jnp.bfloat16)}
    meta = {"w": wmeta, "s": smeta, "batch": batch, "img_hw": img_hw}
    return params, meta


# ----------------------------------------------------------------------------
# In-kernel building blocks (activations are 2D (rows, channels) f32 values)
# ----------------------------------------------------------------------------
def _mm(a, b):
    return jnp.dot(a, b, preferred_element_type=jnp.float32)


def _silu(y):
    # numerically stable: exp(-|y|) never overflows
    z = jnp.exp(-jnp.abs(y))
    inv = 1.0 / (1.0 + z)
    return y * jnp.where(y >= 0, inv, z * inv)


def _nan_to_num(x):
    # torch.nan_to_num defaults: nan -> 0, +/-inf -> +/-float32 max
    x = jnp.where(x != x, 0.0, x)
    return jnp.clip(x, -F32_MAX, F32_MAX)


def _conv3x3(x, s, w, act):
    """'same' 3x3 conv (+folded BN [+SiLU]) on row-flattened activations:
    ONE fused gather matmul for all 9 taps, then 9 per-tap (Cin,Cout) weight
    matmuls accumulated (sublane-aligned value slices)."""
    m_out = s.shape[0] // 9
    cin = w.shape[0] // 9
    taps = _mm(s, x)                                           # (9*Mout, Cin)
    acc = _mm(taps[0:m_out], w[0:cin])
    for t in range(1, 9):
        acc = acc + _mm(taps[t * m_out:(t + 1) * m_out],
                        w[t * cin:(t + 1) * cin])
    return _silu(acc) if act else acc


def _dwconv3x3(x, s, w):
    """Depthwise 3x3 (+folded BN + SiLU): ONE fused gather matmul, then
    per-tap per-channel multiply-accumulate on the VPU."""
    m_out = s.shape[0] // 9
    taps = _mm(s, x)                                           # (9*Mout, C)
    acc = taps[0:m_out] * w[0:1]
    for t in range(1, 9):
        acc = acc + taps[t * m_out:(t + 1) * m_out] * w[t:t + 1]
    return _silu(acc)


# ----------------------------------------------------------------------------
# XLA glue (stem im2col only -- pure data movement on the 2.5 KB raw input)
# ----------------------------------------------------------------------------
def _stem_im2col(x_nhwc):
    b, h, w, c = x_nhwc.shape
    ho, wo = (h - 1) // 2 + 1, (w - 1) // 2 + 1
    xp = jnp.pad(x_nhwc, ((0, 0), (1, 1), (1, 1), (0, 0)))
    taps = [xp[:, di:di + 2 * ho:2, dj:dj + 2 * wo:2, :]
            for di in range(3) for dj in range(3)]
    patches = jnp.stack(taps, axis=3)                 # (b, ho, wo, 9, c)
    return patches.reshape(b * ho * wo, 9 * c)


# ----------------------------------------------------------------------------
# The single fused kernel: whole forward pass, activations never leave VMEM
# ----------------------------------------------------------------------------
def build_forward(meta):
    wmeta, smeta = meta["w"], meta["s"]

    def kernel(patches_ref, clin_ref, vol_ref, w_ref, s_ref, out_ref):
        def W(name):
            o, r, c = wmeta[name]
            return w_ref[o:o + r, :c]

        def S(name):
            o, r, c = smeta[name]
            return s_ref[o:o + r, :c].astype(jnp.float32)

        # ---- backbone: rows = B*H*W, lanes = channels -----------------------
        x = _silu(_mm(_nan_to_num(patches_ref[...]), W("stem_w")))  # (B*64, 16)

        idn = x                                                     # 16->16 s1 (skip)
        x = _conv3x3(x, S("S_b1"), W("b1_c1_w"), act=True)
        x = _mm(x, W("b1_c2_w")) + idn

        x = _conv3x3(x, S("S_b2"), W("b2_c1_w"), act=True)          # 16->32 s2
        x = _mm(x, W("b2_c2_w"))

        idn = x                                                     # 32->32 s1 (skip)
        x = _conv3x3(x, S("S_b3"), W("b3_c1_w"), act=True)
        x = _mm(x, W("b3_c2_w")) + idn

        x = _silu(_mm(x, W("b4_exp_w")))                            # MBConv 32->64 s2
        x = _dwconv3x3(x, S("S_b4"), W("b4_dw_w"))                  # (B*4, 64)
        x = _mm(x, W("b4_prj_w"))

        idn = x                                                     # MBConv 64->64 s1 (skip)
        x = _silu(_mm(x, W("b5_exp_w")))
        x = _dwconv3x3(x, S("S_b5"), W("b5_dw_w"))
        x = _mm(x, W("b5_prj_w")) + idn

        x = _silu(_mm(x, W("fin_w")))                               # final 1x1 -> (B*4, 128)
        img = _mm(S("pool"), x)                                     # global avg pool -> (B, 128)

        # ---- clinical / volume heads (Dropout = identity in eval) ----------
        clin = jnp.maximum(
            _mm(_nan_to_num(clin_ref[...]), W("clin_w")) + W("clin_b"), 0.0)
        vol = jnp.maximum(
            _mm(_nan_to_num(vol_ref[...]), W("vol_w")) + W("vol_b"), 0.0)

        # ---- classifier: cat([img, clin, vol]) @ W as split-weight sum -----
        w1 = W("cls1_w")
        h = (_mm(img, w1[0:128]) + _mm(clin, w1[128:144])
             + _mm(vol, w1[144:152]) + W("cls1_b"))
        h = jnp.maximum(h, 0.0)
        out_ref[...] = _mm(h, W("cls2_w")) + W("cls2_b")

    cost = pl.CostEstimate(flops=11_000_000, transcendentals=13_000,
                           bytes_accessed=1_300_000)

    def forward(wslab, sslab, images, clinical, volume):
        patches = _stem_im2col(images.transpose(0, 2, 3, 1))   # NCHW -> NHWC
        b = images.shape[0]
        # No grid / no BlockSpecs: single invocation, each of the 5 operands is
        # DMA'd whole into VMEM (~1.3 MiB resident, far under scoped limits).
        return pl.pallas_call(
            kernel,
            out_shape=jax.ShapeDtypeStruct((b, 3), jnp.float32),
            cost_estimate=cost,
        )(patches, clinical, volume, wslab, sslab)

    return forward


if __name__ == "__main__":
    key = jax.random.PRNGKey(0)
    k_param, k_img, k_clin, k_vol = jax.random.split(key, 4)

    B = 2
    params, meta = init_params(k_param, batch=B, img_hw=16)
    forward = jax.jit(build_forward(meta))

    images = jax.random.normal(k_img, (B, 5, 16, 16), jnp.float32)  # NCHW like PyTorch
    clinical = jax.random.normal(k_clin, (B, 6), jnp.float32)
    volume = jax.random.normal(k_vol, (B, 3), jnp.float32)
    # exercise the in-kernel nan_to_num path
    images = images.at[0, 0, 0, 0].set(jnp.nan)
    clinical = clinical.at[1, 2].set(jnp.nan)

    out = forward(params["wslab"], params["sslab"], images, clinical, volume)
    out = jax.block_until_ready(out)
    assert out.shape == (B, 3), out.shape
    assert bool(jnp.all(jnp.isfinite(out)))
    print("KERNEL_OK")
</pallas_src>

<mosaic_0001>
module attributes {stable_mosaic.version = 11 : i64} {
  func.func @kernel(%arg0: memref<128x45xf32, #tpu.memory_space<vmem>>, %arg1: memref<2x6xf32, #tpu.memory_space<vmem>>, %arg2: memref<2x3xf32, #tpu.memory_space<vmem>>, %arg3: memref<1448x128xf32, #tpu.memory_space<vmem>>, %arg4: memref<1904x128xbf16, #tpu.memory_space<vmem>>, %arg5: memref<2x3xf32, #tpu.memory_space<vmem>>) attributes {dimension_semantics = [], scalar_prefetch = 0 : i64, scratch_operands = 0 : i64, tpu.core_type = #tpu.core_type<tc>} {
    %c0 = arith.constant 0 : index
    %c0_0 = arith.constant 0 : index
    %0 = vector.load %arg0[%c0, %c0_0] : memref<128x45xf32, #tpu.memory_space<vmem>>, vector<128x45xf32>
    %1 = arith.cmpf one, %0, %0 : vector<128x45xf32>
    %cst = arith.constant 0.000000e+00 : f32
    %2 = vector.broadcast %cst : f32 to vector<128x45xf32>
    %3 = arith.select %1, %2, %0 : vector<128x45xi1>, vector<128x45xf32>
    %cst_1 = arith.constant -3.40282347E+38 : f32
    %cst_2 = arith.constant 3.40282347E+38 : f32
    %4 = vector.broadcast %cst_1 : f32 to vector<128x45xf32>
    %5 = arith.maximumf %4, %3 : vector<128x45xf32>
    %6 = vector.broadcast %cst_2 : f32 to vector<128x45xf32>
    %7 = arith.minimumf %6, %5 : vector<128x45xf32>
    %c0_3 = arith.constant 0 : index
    %c0_4 = arith.constant 0 : index
    %8 = vector.load %arg3[%c0_3, %c0_4] : memref<1448x128xf32, #tpu.memory_space<vmem>>, vector<45x16xf32>
    %cst_5 = arith.constant dense<0.000000e+00> : vector<128x16xf32>
    %9 = tpu.matmul %7, %8, %cst_5 {dimension_numbers = #tpu.dot_dimension_numbers<[1], [0], [0], [1], [0, 0, 1, 1], [], []>} : vector<128x45xf32>, vector<45x16xf32>, vector<128x16xf32> -> vector<128x16xf32>
    %10 = math.absf %9 : vector<128x16xf32>
    %cst_6 = arith.constant 0.000000e+00 : f32
    %11 = vector.broadcast %cst_6 : f32 to vector<128x16xf32>
    %12 = arith.subf %11, %10 : vector<128x16xf32>
    %13 = math.exp %12 : vector<128x16xf32>
    %cst_7 = arith.constant 1.000000e+00 : f32
    %14 = vector.broadcast %cst_7 : f32 to vector<128x16xf32>
    %15 = arith.addf %14, %13 : vector<128x16xf32>
    %cst_8 = arith.constant 1.000000e+00 : f32
    %16 = vector.broadcast %cst_8 : f32 to vector<128x16xf32>
    %17 = arith.divf %16, %15 : vector<128x16xf32>
    %cst_9 = arith.constant 0.000000e+00 : f32
    %18 = vector.broadcast %cst_9 : f32 to vector<128x16xf32>
    %19 = arith.cmpf oge, %9, %18 : vector<128x16xf32>
    %20 = arith.mulf %13, %17 : vector<128x16xf32>
    %21 = arith.select %19, %17, %20 : vector<128x16xi1>, vector<128x16xf32>
    %22 = arith.mulf %9, %21 : vector<128x16xf32>
    %c0_10 = arith.constant 0 : index
    %c0_11 = arith.constant 0 : index
    %23 = vector.load %arg4[%c0_10, %c0_11] : memref<1904x128xbf16, #tpu.memory_space<vmem>>, vector<1152x128xbf16>
    %24 = arith.extf %23 : vector<1152x128xbf16> to vector<1152x128xf32>
    %c48 = arith.constant 48 : index
    %c0_12 = arith.constant 0 : index
    %25 = vector.load %arg3[%c48, %c0_12] : memref<1448x128xf32, #tpu.memory_space<vmem>>, vector<144x16xf32>
    %cst_13 = arith.constant dense<0.000000e+00> : vector<1152x16xf32>
    %26 = tpu.matmul %24, %22, %cst_13 {dimension_numbers = #tpu.dot_dimension_numbers<[1], [0], [0], [1], [0, 0, 1, 1], [], []>} : vector<1152x128xf32>, vector<128x16xf32>, vector<1152x16xf32> -> vector<1152x16xf32>
    %27 = vector.extract_strided_slice %26 {offsets = [0, 0], sizes = [128, 16], strides = [1, 1]} : vector<1152x16xf32> to vector<128x16xf32>
    %28 = vector.extract_strided_slice %25 {offsets = [0, 0], sizes = [16, 16], strides = [1, 1]} : vector<144x16xf32> to vector<16x16xf32>
    %cst_14 = arith.constant dense<0.000000e+00> : vector<128x16xf32>
    %29 = tpu.matmul %27, %28, %cst_14 {dimension_numbers = #tpu.dot_dimension_numbers<[1], [0], [0], [1], [0, 0, 1, 1], [], []>} : vector<128x16xf32>, vector<16x16xf32>, vector<128x16xf32> -> vector<128x16xf32>
    %30 = vector.extract_strided_slice %26 {offsets = [128, 0], sizes = [128, 16], strides = [1, 1]} : vector<1152x16xf32> to vector<128x16xf32>
    %31 = vector.extract_strided_slice %25 {offsets = [16, 0], sizes = [16, 16], strides = [1, 1]} : vector<144x16xf32> to vector<16x16xf32>
    %cst_15 = arith.constant dense<0.000000e+00> : vector<128x16xf32>
    %32 = tpu.matmul %30, %31, %cst_15 {dimension_numbers = #tpu.dot_dimension_numbers<[1], [0], [0], [1], [0, 0, 1, 1], [], []>} : vector<128x16xf32>, vector<16x16xf32>, vector<128x16xf32> -> vector<128x16xf32>
    %33 = arith.addf %29, %32 : vector<128x16xf32>
    %34 = vector.extract_strided_slice %26 {offsets = [256, 0], sizes = [128, 16], strides = [1, 1]} : vector<1152x16xf32> to vector<128x16xf32>
    %35 = vector.extract_strided_slice %25 {offsets = [32, 0], sizes = [16, 16], strides = [1, 1]} : vector<144x16xf32> to vector<16x16xf32>
    %cst_16 = arith.constant dense<0.000000e+00> : vector<128x16xf32>
    %36 = tpu.matmul %34, %35, %cst_16 {dimension_numbers = #tpu.dot_dimension_numbers<[1], [0], [0], [1], [0, 0, 1, 1], [], []>} : vector<128x16xf32>, vector<16x16xf32>, vector<128x16xf32> -> vector<128x16xf32>
    %37 = arith.addf %33, %36 : vector<128x16xf32>
    %38 = vector.extract_strided_slice %26 {offsets = [384, 0], sizes = [128, 16], strides = [1, 1]} : vector<1152x16xf32> to vector<128x16xf32>
    %39 = vector.extract_strided_slice %25 {offsets = [48, 0], sizes = [16, 16], strides = [1, 1]} : vector<144x16xf32> to vector<16x16xf32>
    %cst_17 = arith.constant dense<0.000000e+00> : vector<128x16xf32>
    %40 = tpu.matmul %38, %39, %cst_17 {dimension_numbers = #tpu.dot_dimension_numbers<[1], [0], [0], [1], [0, 0, 1, 1], [], []>} : vector<128x16xf32>, vector<16x16xf32>, vector<128x16xf32> -> vector<128x16xf32>
    %41 = arith.addf %37, %40 : vector<128x16xf32>
    %42 = vector.extract_strided_slice %26 {offsets = [512, 0], sizes = [128, 16], strides = [1, 1]} : vector<1152x16xf32> to vector<128x16xf32>
    %43 = vector.extract_strided_slice %25 {offsets = [64, 0], sizes = [16, 16], strides = [1, 1]} : vector<144x16xf32> to vector<16x16xf32>
    %cst_18 = arith.constant dense<0.000000e+00> : vector<128x16xf32>
    %44 = tpu.matmul %42, %43, %cst_18 {dimension_numbers = #tpu.dot_dimension_numbers<[1], [0], [0], [1], [0, 0, 1, 1], [], []>} : vector<128x16xf32>, vector<16x16xf32>, vector<128x16xf32> -> vector<128x16xf32>
    %45 = arith.addf %41, %44 : vector<128x16xf32>
    %46 = vector.extract_strided_slice %26 {offsets = [640, 0], sizes = [128, 16], strides = [1, 1]} : vector<1152x16xf32> to vector<128x16xf32>
    %47 = vector.extract_strided_slice %25 {offsets = [80, 0], sizes = [16, 16], strides = [1, 1]} : vector<144x16xf32> to vector<16x16xf32>
    %cst_19 = arith.constant dense<0.000000e+00> : vector<128x16xf32>
    %48 = tpu.matmul %46, %47, %cst_19 {dimension_numbers = #tpu.dot_dimension_numbers<[1], [0], [0], [1], [0, 0, 1, 1], [], []>} : vector<128x16xf32>, vector<16x16xf32>, vector<128x16xf32> -> vector<128x16xf32>
    %49 = arith.addf %45, %48 : vector<128x16xf32>
    %50 = vector.extract_strided_slice %26 {offsets = [768, 0], sizes = [128, 16], strides = [1, 1]} : vector<1152x16xf32> to vector<128x16xf32>
    %51 = vector.extract_strided_slice %25 {offsets = [96, 0], sizes = [16, 16], strides = [1, 1]} : vector<144x16xf32> to vector<16x16xf32>
    %cst_20 = arith.constant dense<0.000000e+00> : vector<128x16xf32>
    %52 = tpu.matmul %50, %51, %cst_20 {dimension_numbers = #tpu.dot_dimension_numbers<[1], [0], [0], [1], [0, 0, 1, 1], [], []>} : vector<128x16xf32>, vector<16x16xf32>, vector<128x16xf32> -> vector<128x16xf32>
    %53 = arith.addf %49, %52 : vector<128x16xf32>
    %54 = vector.extract_strided_slice %26 {offsets = [896, 0], sizes = [128, 16], strides = [1, 1]} : vector<1152x16xf32> to vector<128x16xf32>
    %55 = vector.extract_strided_slice %25 {offsets = [112, 0], sizes = [16, 16], strides = [1, 1]} : vector<144x16xf32> to vector<16x16xf32>
    %cst_21 = arith.constant dense<0.000000e+00> : vector<128x16xf32>
    %56 = tpu.matmul %54, %55, %cst_21 {dimension_numbers = #tpu.dot_dimension_numbers<[1], [0], [0], [1], [0, 0, 1, 1], [], []>} : vector<128x16xf32>, vector<16x16xf32>, vector<128x16xf32> -> vector<128x16xf32>
    %57 = arith.addf %53, %56 : vector<128x16xf32>
    %58 = vector.extract_strided_slice %26 {offsets = [1024, 0], sizes = [128, 16], strides = [1, 1]} : vector<1152x16xf32> to vector<128x16xf32>
    %59 = vector.extract_strided_slice %25 {offsets = [128, 0], sizes = [16, 16], strides = [1, 1]} : vector<144x16xf32> to vector<16x16xf32>
    %cst_22 = arith.constant dense<0.000000e+00> : vector<128x16xf32>
    %60 = tpu.matmul %58, %59, %cst_22 {dimension_numbers = #tpu.dot_dimension_numbers<[1], [0], [0], [1], [0, 0, 1, 1], [], []>} : vector<128x16xf32>, vector<16x16xf32>, vector<128x16xf32> -> vector<128x16xf32>
    %61 = arith.addf %57, %60 : vector<128x16xf32>
    %62 = math.absf %61 : vector<128x16xf32>
    %cst_23 = arith.constant 0.000000e+00 : f32
    %63 = vector.broadcast %cst_23 : f32 to vector<128x16xf32>
    %64 = arith.subf %63, %62 : vector<128x16xf32>
    %65 = math.exp %64 : vector<128x16xf32>
    %cst_24 = arith.constant 1.000000e+00 : f32
    %66 = vector.broadcast %cst_24 : f32 to vector<128x16xf32>
    %67 = arith.addf %66, %65 : vector<128x16xf32>
    %cst_25 = arith.constant 1.000000e+00 : f32
    %68 = vector.broadcast %cst_25 : f32 to vector<128x16xf32>
    %69 = arith.divf %68, %67 : vector<128x16xf32>
    %cst_26 = arith.constant 0.000000e+00 : f32
    %70 = vector.broadcast %cst_26 : f32 to vector<128x16xf32>
    %71 = arith.cmpf oge, %61, %70 : vector<128x16xf32>
    %72 = arith.mulf %65, %69 : vector<128x16xf32>
    %73 = arith.select %71, %69, %72 : vector<128x16xi1>, vector<128x16xf32>
    %74 = arith.mulf %61, %73 : vector<128x16xf32>
    %c192 = arith.constant 192 : index
    %c0_27 = arith.constant 0 : index
    %75 = vector.load %arg3[%c192, %c0_27] : memref<1448x128xf32, #tpu.memory_space<vmem>>, vector<16x16xf32>
    %cst_28 = arith.constant dense<0.000000e+00> : vector<128x16xf32>
    %76 = tpu.matmul %74, %75, %cst_28 {dimension_numbers = #tpu.dot_dimension_numbers<[1], [0], [0], [1], [0, 0, 1, 1], [], []>} : vector<128x16xf32>, vector<16x16xf32>, vector<128x16xf32> -> vector<128x16xf32>
    %77 = arith.addf %76, %22 : vector<128x16xf32>
    %c1152 = arith.constant 1152 : index
    %c0_29 = arith.constant 0 : index
    %78 = vector.load %arg4[%c1152, %c0_29] : memref<1904x128xbf16, #tpu.memory_space<vmem>>, vector<288x128xbf16>
    %79 = arith.extf %78 : vector<288x128xbf16> to vector<288x128xf32>
    %c208 = arith.constant 208 : index
    %c0_30 = arith.constant 0 : index
    %80 = vector.load %arg3[%c208, %c0_30] : memref<1448x128xf32, #tpu.memory_space<vmem>>, vector<144x32xf32>
    %cst_31 = arith.constant dense<0.000000e+00> : vector<288x16xf32>
    %81 = tpu.matmul %79, %77, %cst_31 {dimension_numbers = #tpu.dot_dimension_numbers<[1], [0], [0], [1], [0, 0, 1, 1], [], []>} : vector<288x128xf32>, vector<128x16xf32>, vector<288x16xf32> -> vector<288x16xf32>
    %82 = vector.extract_strided_slice %81 {offsets = [0, 0], sizes = [32, 16], strides = [1, 1]} : vector<288x16xf32> to vector<32x16xf32>
    %83 = vector.extract_strided_slice %80 {offsets = [0, 0], sizes = [16, 32], strides = [1, 1]} : vector<144x32xf32> to vector<16x32xf32>
    %cst_32 = arith.constant dense<0.000000e+00> : vector<32x32xf32>
    %84 = tpu.matmul %82, %83, %cst_32 {dimension_numbers = #tpu.dot_dimension_numbers<[1], [0], [0], [1], [0, 0, 1, 1], [], []>} : vector<32x16xf32>, vector<16x32xf32>, vector<32x32xf32> -> vector<32x32xf32>
    %85 = vector.extract_strided_slice %81 {offsets = [32, 0], sizes = [32, 16], strides = [1, 1]} : vector<288x16xf32> to vector<32x16xf32>
    %86 = vector.extract_strided_slice %80 {offsets = [16, 0], sizes = [16, 32], strides = [1, 1]} : vector<144x32xf32> to vector<16x32xf32>
    %cst_33 = arith.constant dense<0.000000e+00> : vector<32x32xf32>
    %87 = tpu.matmul %85, %86, %cst_33 {dimension_numbers = #tpu.dot_dimension_numbers<[1], [0], [0], [1], [0, 0, 1, 1], [], []>} : vector<32x16xf32>, vector<16x32xf32>, vector<32x32xf32> -> vector<32x32xf32>
    %88 = arith.addf %84, %87 : vector<32x32xf32>
    %89 = vector.extract_strided_slice %81 {offsets = [64, 0], sizes = [32, 16], strides = [1, 1]} : vector<288x16xf32> to vector<32x16xf32>
    %90 = vector.extract_strided_slice %80 {offsets = [32, 0], sizes = [16, 32], strides = [1, 1]} : vector<144x32xf32> to vector<16x32xf32>
    %cst_34 = arith.constant dense<0.000000e+00> : vector<32x32xf32>
    %91 = tpu.matmul %89, %90, %cst_34 {dimension_numbers = #tpu.dot_dimension_numbers<[1], [0], [0], [1], [0, 0, 1, 1], [], []>} : vector<32x16xf32>, vector<16x32xf32>, vector<32x32xf32> -> vector<32x32xf32>
    %92 = arith.addf %88, %91 : vector<32x32xf32>
    %93 = vector.extract_strided_slice %81 {offsets = [96, 0], sizes = [32, 16], strides = [1, 1]} : vector<288x16xf32> to vector<32x16xf32>
    %94 = vector.extract_strided_slice %80 {offsets = [48, 0], sizes = [16, 32], strides = [1, 1]} : vector<144x32xf32> to vector<16x32xf32>
    %cst_35 = arith.constant dense<0.000000e+00> : vector<32x32xf32>
    %95 = tpu.matmul %93, %94, %cst_35 {dimension_numbers = #tpu.dot_dimension_numbers<[1], [0], [0], [1], [0, 0, 1, 1], [], []>} : vector<32x16xf32>, vector<16x32xf32>, vector<32x32xf32> -> vector<32x32xf32>
    %96 = arith.addf %92, %95 : vector<32x32xf32>
    %97 = vector.extract_strided_slice %81 {offsets = [128, 0], sizes = [32, 16], strides = [1, 1]} : vector<288x16xf32> to vector<32x16xf32>
    %98 = vector.extract_strided_slice %80 {offsets = [64, 0], sizes = [16, 32], strides = [1, 1]} : vector<144x32xf32> to vector<16x32xf32>
    %cst_36 = arith.constant dense<0.000000e+00> : vector<32x32xf32>
    %99 = tpu.matmul %97, %98, %cst_36 {dimension_numbers = #tpu.dot_dimension_numbers<[1], [0], [0], [1], [0, 0, 1, 1], [], []>} : vector<32x16xf32>, vector<16x32xf32>, vector<32x32xf32> -> vector<32x32xf32>
    %100 = arith.addf %96, %99 : vector<32x32xf32>
    %101 = vector.extract_strided_slice %81 {offsets = [160, 0], sizes = [32, 16], strides = [1, 1]} : vector<288x16xf32> to vector<32x16xf32>
    %102 = vector.extract_strided_slice %80 {offsets = [80, 0], sizes = [16, 32], strides = [1, 1]} : vector<144x32xf32> to vector<16x32xf32>
    %cst_37 = arith.constant dense<0.000000e+00> : vector<32x32xf32>
    %103 = tpu.matmul %101, %102, %cst_37 {dimension_numbers = #tpu.dot_dimension_numbers<[1], [0], [0], [1], [0, 0, 1, 1], [], []>} : vector<32x16xf32>, vector<16x32xf32>, vector<32x32xf32> -> vector<32x32xf32>
    %104 = arith.addf %100, %103 : vector<32x32xf32>
    %105 = vector.extract_strided_slice %81 {offsets = [192, 0], sizes = [32, 16], strides = [1, 1]} : vector<288x16xf32> to vector<32x16xf32>
    %106 = vector.extract_strided_slice %80 {offsets = [96, 0], sizes = [16, 32], strides = [1, 1]} : vector<144x32xf32> to vector<16x32xf32>
    %cst_38 = arith.constant dense<0.000000e+00> : vector<32x32xf32>
    %107 = tpu.matmul %105, %106, %cst_38 {dimension_numbers = #tpu.dot_dimension_numbers<[1], [0], [0], [1], [0, 0, 1, 1], [], []>} : vector<32x16xf32>, vector<16x32xf32>, vector<32x32xf32> -> vector<32x32xf32>
    %108 = arith.addf %104, %107 : vector<32x32xf32>
    %109 = vector.extract_strided_slice %81 {offsets = [224, 0], sizes = [32, 16], strides = [1, 1]} : vector<288x16xf32> to vector<32x16xf32>
    %110 = vector.extract_strided_slice %80 {offsets = [112, 0], sizes = [16, 32], strides = [1, 1]} : vector<144x32xf32> to vector<16x32xf32>
    %cst_39 = arith.constant dense<0.000000e+00> : vector<32x32xf32>
    %111 = tpu.matmul %109, %110, %cst_39 {dimension_numbers = #tpu.dot_dimension_numbers<[1], [0], [0], [1], [0, 0, 1, 1], [], []>} : vector<32x16xf32>, vector<16x32xf32>, vector<32x32xf32> -> vector<32x32xf32>
    %112 = arith.addf %108, %111 : vector<32x32xf32>
    %113 = vector.extract_strided_slice %81 {offsets = [256, 0], sizes = [32, 16], strides = [1, 1]} : vector<288x16xf32> to vector<32x16xf32>
    %114 = vector.extract_strided_slice %80 {offsets = [128, 0], sizes = [16, 32], strides = [1, 1]} : vector<144x32xf32> to vector<16x32xf32>
    %cst_40 = arith.constant dense<0.000000e+00> : vector<32x32xf32>
    %115 = tpu.matmul %113, %114, %cst_40 {dimension_numbers = #tpu.dot_dimension_numbers<[1], [0], [0], [1], [0, 0, 1, 1], [], []>} : vector<32x16xf32>, vector<16x32xf32>, vector<32x32xf32> -> vector<32x32xf32>
    %116 = arith.addf %112, %115 : vector<32x32xf32>
    %117 = math.absf %116 : vector<32x32xf32>
    %cst_41 = arith.constant 0.000000e+00 : f32
    %118 = vector.broadcast %cst_41 : f32 to vector<32x32xf32>
    %119 = arith.subf %118, %117 : vector<32x32xf32>
    %120 = math.exp %119 : vector<32x32xf32>
    %cst_42 = arith.constant 1.000000e+00 : f32
    %121 = vector.broadcast %cst_42 : f32 to vector<32x32xf32>
    %122 = arith.addf %121, %120 : vector<32x32xf32>
    %cst_43 = arith.constant 1.000000e+00 : f32
    %123 = vector.broadcast %cst_43 : f32 to vector<32x32xf32>
    %124 = arith.divf %123, %122 : vector<32x32xf32>
    %cst_44 = arith.constant 0.000000e+00 : f32
    %125 = vector.broadcast %cst_44 : f32 to vector<32x32xf32>
    %126 = arith.cmpf oge, %116, %125 : vector<32x32xf32>
    %127 = arith.mulf %120, %124 : vector<32x32xf32>
    %128 = arith.select %126, %124, %127 : vector<32x32xi1>, vector<32x32xf32>
    %129 = arith.mulf %116, %128 : vector<32x32xf32>
    %c352 = arith.constant 352 : index
    %c0_45 = arith.constant 0 : index
    %130 = vector.load %arg3[%c352, %c0_45] : memref<1448x128xf32, #tpu.memory_space<vmem>>, vector<32x32xf32>
    %cst_46 = arith.constant dense<0.000000e+00> : vector<32x32xf32>
    %131 = tpu.matmul %129, %130, %cst_46 {dimension_numbers = #tpu.dot_dimension_numbers<[1], [0], [0], [1], [0, 0, 1, 1], [], []>} : vector<32x32xf32>, vector<32x32xf32>, vector<32x32xf32> -> vector<32x32xf32>
    %c1440 = arith.constant 1440 : index
    %c0_47 = arith.constant 0 : index
    %132 = vector.load %arg4[%c1440, %c0_47] : memref<1904x128xbf16, #tpu.memory_space<vmem>>, vector<288x32xbf16>
    %133 = arith.extf %132 : vector<288x32xbf16> to vector<288x32xf32>
    %c384 = arith.constant 384 : index
    %c0_48 = arith.constant 0 : index
    %134 = vector.load %arg3[%c384, %c0_48] : memref<1448x128xf32, #tpu.memory_space<vmem>>, vector<288x64xf32>
    %cst_49 = arith.constant dense<0.000000e+00> : vector<288x32xf32>
    %135 = tpu.matmul %133, %131, %cst_49 {dimension_numbers = #tpu.dot_dimension_numbers<[1], [0], [0], [1], [0, 0, 1, 1], [], []>} : vector<288x32xf32>, vector<32x32xf32>, vector<288x32xf32> -> vector<288x32xf32>
    %136 = vector.extract_strided_slice %135 {offsets = [0, 0], sizes = [32, 32], strides = [1, 1]} : vector<288x32xf32> to vector<32x32xf32>
    %137 = vector.extract_strided_slice %134 {offsets = [0, 0], sizes = [32, 64], strides = [1, 1]} : vector<288x64xf32> to vector<32x64xf32>
    %cst_50 = arith.constant dense<0.000000e+00> : vector<32x64xf32>
    %138 = tpu.matmul %136, %137, %cst_50 {dimension_numbers = #tpu.dot_dimension_numbers<[1], [0], [0], [1], [0, 0, 1, 1], [], []>} : vector<32x32xf32>, vector<32x64xf32>, vector<32x64xf32> -> vector<32x64xf32>
    %139 = vector.extract_strided_slice %135 {offsets = [32, 0], sizes = [32, 32], strides = [1, 1]} : vector<288x32xf32> to vector<32x32xf32>
    %140 = vector.extract_strided_slice %134 {offsets = [32, 0], sizes = [32, 64], strides = [1, 1]} : vector<288x64xf32> to vector<32x64xf32>
    %cst_51 = arith.constant dense<0.000000e+00> : vector<32x64xf32>
    %141 = tpu.matmul %139, %140, %cst_51 {dimension_numbers = #tpu.dot_dimension_numbers<[1], [0], [0], [1], [0, 0, 1, 1], [], []>} : vector<32x32xf32>, vector<32x64xf32>, vector<32x64xf32> -> vector<32x64xf32>
    %142 = arith.addf %138, %141 : vector<32x64xf32>
    %143 = vector.extract_strided_slice %135 {offsets = [64, 0], sizes = [32, 32], strides = [1, 1]} : vector<288x32xf32> to vector<32x32xf32>
    %144 = vector.extract_strided_slice %134 {offsets = [64, 0], sizes = [32, 64], strides = [1, 1]} : vector<288x64xf32> to vector<32x64xf32>
    %cst_52 = arith.constant dense<0.000000e+00> : vector<32x64xf32>
    %145 = tpu.matmul %143, %144, %cst_52 {dimension_numbers = #tpu.dot_dimension_numbers<[1], [0], [0], [1], [0, 0, 1, 1], [], []>} : vector<32x32xf32>, vector<32x64xf32>, vector<32x64xf32> -> vector<32x64xf32>
    %146 = arith.addf %142, %145 : vector<32x64xf32>
    %147 = vector.extract_strided_slice %135 {offsets = [96, 0], sizes = [32, 32], strides = [1, 1]} : vector<288x32xf32> to vector<32x32xf32>
    %148 = vector.extract_strided_slice %134 {offsets = [96, 0], sizes = [32, 64], strides = [1, 1]} : vector<288x64xf32> to vector<32x64xf32>
    %cst_53 = arith.constant dense<0.000000e+00> : vector<32x64xf32>
    %149 = tpu.matmul %147, %148, %cst_53 {dimension_numbers = #tpu.dot_dimension_numbers<[1], [0], [0], [1], [0, 0, 1, 1], [], []>} : vector<32x32xf32>, vector<32x64xf32>, vector<32x64xf32> -> vector<32x64xf32>
    %150 = arith.addf %146, %149 : vector<32x64xf32>
    %151 = vector.extract_strided_slice %135 {offsets = [128, 0], sizes = [32, 32], strides = [1, 1]} : vector<288x32xf32> to vector<32x32xf32>
    %152 = vector.extract_strided_slice %134 {offsets = [128, 0], sizes = [32, 64], strides = [1, 1]} : vector<288x64xf32> to vector<32x64xf32>
    %cst_54 = arith.constant dense<0.000000e+00> : vector<32x64xf32>
    %153 = tpu.matmul %151, %152, %cst_54 {dimension_numbers = #tpu.dot_dimension_numbers<[1], [0], [0], [1], [0, 0, 1, 1], [], []>} : vector<32x32xf32>, vector<32x64xf32>, vector<32x64xf32> -> vector<32x64xf32>
    %154 = arith.addf %150, %153 : vector<32x64xf32>
    %155 = vector.extract_strided_slice %135 {offsets = [160, 0], sizes = [32, 32], strides = [1, 1]} : vector<288x32xf32> to vector<32x32xf32>
    %156 = vector.extract_strided_slice %134 {offsets = [160, 0], sizes = [32, 64], strides = [1, 1]} : vector<288x64xf32> to vector<32x64xf32>
    %cst_55 = arith.constant dense<0.000000e+00> : vector<32x64xf32>
    %157 = tpu.matmul %155, %156, %cst_55 {dimension_numbers = #tpu.dot_dimension_numbers<[1], [0], [0], [1], [0, 0, 1, 1], [], []>} : vector<32x32xf32>, vector<32x64xf32>, vector<32x64xf32> -> vector<32x64xf32>
    %158 = arith.addf %154, %157 : vector<32x64xf32>
    %159 = vector.extract_strided_slice %135 {offsets = [192, 0], sizes = [32, 32], strides = [1, 1]} : vector<288x32xf32> to vector<32x32xf32>
    %160 = vector.extract_strided_slice %134 {offsets = [192, 0], sizes = [32, 64], strides = [1, 1]} : vector<288x64xf32> to vector<32x64xf32>
    %cst_56 = arith.constant dense<0.000000e+00> : vector<32x64xf32>
    %161 = tpu.matmul %159, %160, %cst_56 {dimension_numbers = #tpu.dot_dimension_numbers<[1], [0], [0], [1], [0, 0, 1, 1], [], []>} : vector<32x32xf32>, vector<32x64xf32>, vector<32x64xf32> -> vector<32x64xf32>
    %162 = arith.addf %158, %161 : vector<32x64xf32>
    %163 = vector.extract_strided_slice %135 {offsets = [224, 0], sizes = [32, 32], strides = [1, 1]} : vector<288x32xf32> to vector<32x32xf32>
    %164 = vector.extract_strided_slice %134 {offsets = [224, 0], sizes = [32, 64], strides = [1, 1]} : vector<288x64xf32> to vector<32x64xf32>
    %cst_57 = arith.constant dense<0.000000e+00> : vector<32x64xf32>
    %165 = tpu.matmul %163, %164, %cst_57 {dimension_numbers = #tpu.dot_dimension_numbers<[1], [0], [0], [1], [0, 0, 1, 1], [], []>} : vector<32x32xf32>, vector<32x64xf32>, vector<32x64xf32> -> vector<32x64xf32>
    %166 = arith.addf %162, %165 : vector<32x64xf32>
    %167 = vector.extract_strided_slice %135 {offsets = [256, 0], sizes = [32, 32], strides = [1, 1]} : vector<288x32xf32> to vector<32x32xf32>
    %168 = vector.extract_strided_slice %134 {offsets = [256, 0], sizes = [32, 64], strides = [1, 1]} : vector<288x64xf32> to vector<32x64xf32>
    %cst_58 = arith.constant dense<0.000000e+00> : vector<32x64xf32>
    %169 = tpu.matmul %167, %168, %cst_58 {dimension_numbers = #tpu.dot_dimension_numbers<[1], [0], [0], [1], [0, 0, 1, 1], [], []>} : vector<32x32xf32>, vector<32x64xf32>, vector<32x64xf32> -> vector<32x64xf32>
    %170 = arith.addf %166, %169 : vector<32x64xf32>
    %171 = math.absf %170 : vector<32x64xf32>
    %cst_59 = arith.constant 0.000000e+00 : f32
    %172 = vector.broadcast %cst_59 : f32 to vector<32x64xf32>
    %173 = arith.subf %172, %171 : vector<32x64xf32>
    %174 = math.exp %173 : vector<32x64xf32>
    %cst_60 = arith.constant 1.000000e+00 : f32
    %175 = vector.broadcast %cst_60 : f32 to vector<32x64xf32>
    %176 = arith.addf %175, %174 : vector<32x64xf32>
    %cst_61 = arith.constant 1.000000e+00 : f32
    %177 = vector.broadcast %cst_61 : f32 to vector<32x64xf32>
    %178 = arith.divf %177, %176 : vector<32x64xf32>
    %cst_62 = arith.constant 0.000000e+00 : f32
    %179 = vector.broadcast %cst_62 : f32 to vector<32x64xf32>
    %180 = arith.cmpf oge, %170, %179 : vector<32x64xf32>
    %181 = arith.mulf %174, %178 : vector<32x64xf32>
    %182 = arith.select %180, %178, %181 : vector<32x64xi1>, vector<32x64xf32>
    %183 = arith.mulf %170, %182 : vector<32x64xf32>
    %c672 = arith.constant 672 : index
    %c0_63 = arith.constant 0 : index
    %184 = vector.load %arg3[%c672, %c0_63] : memref<1448x128xf32, #tpu.memory_space<vmem>>, vector<64x32xf32>
    %cst_64 = arith.constant dense<0.000000e+00> : vector<32x32xf32>
    %185 = tpu.matmul %183, %184, %cst_64 {dimension_numbers = #tpu.dot_dimension_numbers<[1], [0], [0], [1], [0, 0, 1, 1], [], []>} : vector<32x64xf32>, vector<64x32xf32>, vector<32x32xf32> -> vector<32x32xf32>
    %186 = arith.addf %185, %131 : vector<32x32xf32>
    %c736 = arith.constant 736 : index
    %c0_65 = arith.constant 0 : index
    %187 = vector.load %arg3[%c736, %c0_65] : memref<1448x128xf32, #tpu.memory_space<vmem>>, vector<32x64xf32>
    %cst_66 = arith.constant dense<0.000000e+00> : vector<32x64xf32>
    %188 = tpu.matmul %186, %187, %cst_66 {dimension_numbers = #tpu.dot_dimension_numbers<[1], [0], [0], [1], [0, 0, 1, 1], [], []>} : vector<32x32xf32>, vector<32x64xf32>, vector<32x64xf32> -> vector<32x64xf32>
    %189 = math.absf %188 : vector<32x64xf32>
    %cst_67 = arith.constant 0.000000e+00 : f32
    %190 = vector.broadcast %cst_67 : f32 to vector<32x64xf32>
    %191 = arith.subf %190, %189 : vector<32x64xf32>
    %192 = math.exp %191 : vector<32x64xf32>
    %cst_68 = arith.constant 1.000000e+00 : f32
    %193 = vector.broadcast %cst_68 : f32 to vector<32x64xf32>
    %194 = arith.addf %193, %192 : vector<32x64xf32>
    %cst_69 = arith.constant 1.000000e+00 : f32
    %195 = vector.broadcast %cst_69 : f32 to vector<32x64xf32>
    %196 = arith.divf %195, %194 : vector<32x64xf32>
    %cst_70 = arith.constant 0.000000e+00 : f32
    %197 = vector.broadcast %cst_70 : f32 to vector<32x64xf32>
    %198 = arith.cmpf oge, %188, %197 : vector<32x64xf32>
    %199 = arith.mulf %192, %196 : vector<32x64xf32>
    %200 = arith.select %198, %196, %199 : vector<32x64xi1>, vector<32x64xf32>
    %201 = arith.mulf %188, %200 : vector<32x64xf32>
    %c1728 = arith.constant 1728 : index
    %c0_71 = arith.constant 0 : index
    %202 = vector.load %arg4[%c1728, %c0_71] : memref<1904x128xbf16, #tpu.memory_space<vmem>>, vector<72x32xbf16>
    %203 = arith.extf %202 : vector<72x32xbf16> to vector<72x32xf32>
    %c768 = arith.constant 768 : index
    %c0_72 = arith.constant 0 : index
    %204 = vector.load %arg3[%c768, %c0_72] : memref<1448x128xf32, #tpu.memory_space<vmem>>, vector<9x64xf32>
    %cst_73 = arith.constant dense<0.000000e+00> : vector<72x64xf32>
    %205 = tpu.matmul %203, %201, %cst_73 {dimension_numbers = #tpu.dot_dimension_numbers<[1], [0], [0], [1], [0, 0, 1, 1], [], []>} : vector<72x32xf32>, vector<32x64xf32>, vector<72x64xf32> -> vector<72x64xf32>
    %206 = vector.extract_strided_slice %205 {offsets = [0, 0], sizes = [8, 64], strides = [1, 1]} : vector<72x64xf32> to vector<8x64xf32>
    %207 = vector.extract_strided_slice %204 {offsets = [0, 0], sizes = [1, 64], strides = [1, 1]} : vector<9x64xf32> to vector<1x64xf32>
    %208 = vector.broadcast %207 : vector<1x64xf32> to vector<8x64xf32>
    %209 = arith.mulf %206, %208 : vector<8x64xf32>
    %210 = vector.extract_strided_slice %205 {offsets = [8, 0], sizes = [8, 64], strides = [1, 1]} : vector<72x64xf32> to vector<8x64xf32>
    %211 = vector.extract_strided_slice %204 {offsets = [1, 0], sizes = [1, 64], strides = [1, 1]} : vector<9x64xf32> to vector<1x64xf32>
    %212 = vector.broadcast %211 : vector<1x64xf32> to vector<8x64xf32>
    %213 = arith.mulf %210, %212 : vector<8x64xf32>
    %214 = arith.addf %209, %213 : vector<8x64xf32>
    %215 = vector.extract_strided_slice %205 {offsets = [16, 0], sizes = [8, 64], strides = [1, 1]} : vector<72x64xf32> to vector<8x64xf32>
    %216 = vector.extract_strided_slice %204 {offsets = [2, 0], sizes = [1, 64], strides = [1, 1]} : vector<9x64xf32> to vector<1x64xf32>
    %217 = vector.broadcast %216 : vector<1x64xf32> to vector<8x64xf32>
    %218 = arith.mulf %215, %217 : vector<8x64xf32>
    %219 = arith.addf %214, %218 : vector<8x64xf32>
    %220 = vector.extract_strided_slice %205 {offsets = [24, 0], sizes = [8, 64], strides = [1, 1]} : vector<72x64xf32> to vector<8x64xf32>
    %221 = vector.extract_strided_slice %204 {offsets = [3, 0], sizes = [1, 64], strides = [1, 1]} : vector<9x64xf32> to vector<1x64xf32>
    %222 = vector.broadcast %221 : vector<1x64xf32> to vector<8x64xf32>
    %223 = arith.mulf %220, %222 : vector<8x64xf32>
    %224 = arith.addf %219, %223 : vector<8x64xf32>
    %225 = vector.extract_strided_slice %205 {offsets = [32, 0], sizes = [8, 64], strides = [1, 1]} : vector<72x64xf32> to vector<8x64xf32>
    %226 = vector.extract_strided_slice %204 {offsets = [4, 0], sizes = [1, 64], strides = [1, 1]} : vector<9x64xf32> to vector<1x64xf32>
    %227 = vector.broadcast %226 : vector<1x64xf32> to vector<8x64xf32>
    %228 = arith.mulf %225, %227 : vector<8x64xf32>
    %229 = arith.addf %224, %228 : vector<8x64xf32>
    %230 = vector.extract_strided_slice %205 {offsets = [40, 0], sizes = [8, 64], strides = [1, 1]} : vector<72x64xf32> to vector<8x64xf32>
    %231 = vector.extract_strided_slice %204 {offsets = [5, 0], sizes = [1, 64], strides = [1, 1]} : vector<9x64xf32> to vector<1x64xf32>
    %232 = vector.broadcast %231 : vector<1x64xf32> to vector<8x64xf32>
    %233 = arith.mulf %230, %232 : vector<8x64xf32>
    %234 = arith.addf %229, %233 : vector<8x64xf32>
    %235 = vector.extract_strided_slice %205 {offsets = [48, 0], sizes = [8, 64], strides = [1, 1]} : vector<72x64xf32> to vector<8x64xf32>
    %236 = vector.extract_strided_slice %204 {offsets = [6, 0], sizes = [1, 64], strides = [1, 1]} : vector<9x64xf32> to vector<1x64xf32>
    %237 = vector.broadcast %236 : vector<1x64xf32> to vector<8x64xf32>
    %238 = arith.mulf %235, %237 : vector<8x64xf32>
    %239 = arith.addf %234, %238 : vector<8x64xf32>
    %240 = vector.extract_strided_slice %205 {offsets = [56, 0], sizes = [8, 64], strides = [1, 1]} : vector<72x64xf32> to vector<8x64xf32>
    %241 = vector.extract_strided_slice %204 {offsets = [7, 0], sizes = [1, 64], strides = [1, 1]} : vector<9x64xf32> to vector<1x64xf32>
    %242 = vector.broadcast %241 : vector<1x64xf32> to vector<8x64xf32>
    %243 = arith.mulf %240, %242 : vector<8x64xf32>
    %244 = arith.addf %239, %243 : vector<8x64xf32>
    %245 = vector.extract_strided_slice %205 {offsets = [64, 0], sizes = [8, 64], strides = [1, 1]} : vector<72x64xf32> to vector<8x64xf32>
    %246 = vector.extract_strided_slice %204 {offsets = [8, 0], sizes = [1, 64], strides = [1, 1]} : vector<9x64xf32> to vector<1x64xf32>
    %247 = vector.broadcast %246 : vector<1x64xf32> to vector<8x64xf32>
    %248 = arith.mulf %245, %247 : vector<8x64xf32>
    %249 = arith.addf %244, %248 : vector<8x64xf32>
    %250 = math.absf %249 : vector<8x64xf32>
    %cst_74 = arith.constant 0.000000e+00 : f32
    %251 = vector.broadcast %cst_74 : f32 to vector<8x64xf32>
    %252 = arith.subf %251, %250 : vector<8x64xf32>
    %253 = math.exp %252 : vector<8x64xf32>
    %cst_75 = arith.constant 1.000000e+00 : f32
    %254 = vector.broadcast %cst_75 : f32 to vector<8x64xf32>
    %255 = arith.addf %254, %253 : vector<8x64xf32>
    %cst_76 = arith.constant 1.000000e+00 : f32
    %256 = vector.broadcast %cst_76 : f32 to vector<8x64xf32>
    %257 = arith.divf %256, %255 : vector<8x64xf32>
    %cst_77 = arith.constant 0.000000e+00 : f32
    %258 = vector.broadcast %cst_77 : f32 to vector<8x64xf32>
    %259 = arith.cmpf oge, %249, %258 : vector<8x64xf32>
    %260 = arith.mulf %253, %257 : vector<8x64xf32>
    %261 = arith.select %259, %257, %260 : vector<8x64xi1>, vector<8x64xf32>
    %262 = arith.mulf %249, %261 : vector<8x64xf32>
    %c784 = arith.constant 784 : index
    %c0_78 = arith.constant 0 : index
    %263 = vector.load %arg3[%c784, %c0_78] : memref<1448x128xf32, #tpu.memory_space<vmem>>, vector<64x64xf32>
    %cst_79 = arith.constant dense<0.000000e+00> : vector<8x64xf32>
    %264 = tpu.matmul %262, %263, %cst_79 {dimension_numbers = #tpu.dot_dimension_numbers<[1], [0], [0], [1], [0, 0, 1, 1], [], []>} : vector<8x64xf32>, vector<64x64xf32>, vector<8x64xf32> -> vector<8x64xf32>
    %c848 = arith.constant 848 : index
    %c0_80 = arith.constant 0 : index
    %265 = vector.load %arg3[%c848, %c0_80] : memref<1448x128xf32, #tpu.memory_space<vmem>>, vector<64x128xf32>
    %cst_81 = arith.constant dense<0.000000e+00> : vector<8x128xf32>
    %266 = tpu.matmul %264, %265, %cst_81 {dimension_numbers = #tpu.dot_dimension_numbers<[1], [0], [0], [1], [0, 0, 1, 1], [], []>} : vector<8x64xf32>, vector<64x128xf32>, vector<8x128xf32> -> vector<8x128xf32>
    %267 = math.absf %266 : vector<8x128xf32>
    %cst_82 = arith.constant 0.000000e+00 : f32
    %268 = vector.broadcast %cst_82 : f32 to vector<8x128xf32>
    %269 = arith.subf %268, %267 : vector<8x128xf32>
    %270 = math.exp %269 : vector<8x128xf32>
    %cst_83 = arith.constant 1.000000e+00 : f32
    %271 = vector.broadcast %cst_83 : f32 to vector<8x128xf32>
    %272 = arith.addf %271, %270 : vector<8x128xf32>
    %cst_84 = arith.constant 1.000000e+00 : f32
    %273 = vector.broadcast %cst_84 : f32 to vector<8x128xf32>
    %274 = arith.divf %273, %272 : vector<8x128xf32>
    %cst_85 = arith.constant 0.000000e+00 : f32
    %275 = vector.broadcast %cst_85 : f32 to vector<8x128xf32>
    %276 = arith.cmpf oge, %266, %275 : vector<8x128xf32>
    %277 = arith.mulf %270, %274 : vector<8x128xf32>
    %278 = arith.select %276, %274, %277 : vector<8x128xi1>, vector<8x128xf32>
    %279 = arith.mulf %266, %278 : vector<8x128xf32>
    %c1808 = arith.constant 1808 : index
    %c0_86 = arith.constant 0 : index
    %280 = vector.load %arg4[%c1808, %c0_86] : memref<1904x128xbf16, #tpu.memory_space<vmem>>, vector<72x8xbf16>
    %281 = arith.extf %280 : vector<72x8xbf16> to vector<72x8xf32>
    %c912 = arith.constant 912 : index
    %c0_87 = arith.constant 0 : index
    %282 = vector.load %arg3[%c912, %c0_87] : memref<1448x128xf32, #tpu.memory_space<vmem>>, vector<9x128xf32>
    %cst_88 = arith.constant dense<0.000000e+00> : vector<72x128xf32>
    %283 = tpu.matmul %281, %279, %cst_88 {dimension_numbers = #tpu.dot_dimension_numbers<[1], [0], [0], [1], [0, 0, 1, 1], [], []>} : vector<72x8xf32>, vector<8x128xf32>, vector<72x128xf32> -> vector<72x128xf32>
    %284 = vector.extract_strided_slice %283 {offsets = [0, 0], sizes = [8, 128], strides = [1, 1]} : vector<72x128xf32> to vector<8x128xf32>
    %285 = vector.extract_strided_slice %282 {offsets = [0, 0], sizes = [1, 128], strides = [1, 1]} : vector<9x128xf32> to vector<1x128xf32>
    %286 = vector.broadcast %285 : vector<1x128xf32> to vector<8x128xf32>
    %287 = arith.mulf %284, %286 : vector<8x128xf32>
    %288 = vector.extract_strided_slice %283 {offsets = [8, 0], sizes = [8, 128], strides = [1, 1]} : vector<72x128xf32> to vector<8x128xf32>
    %289 = vector.extract_strided_slice %282 {offsets = [1, 0], sizes = [1, 128], strides = [1, 1]} : vector<9x128xf32> to vector<1x128xf32>
    %290 = vector.broadcast %289 : vector<1x128xf32> to vector<8x128xf32>
    %291 = arith.mulf %288, %290 : vector<8x128xf32>
    %292 = arith.addf %287, %291 : vector<8x128xf32>
    %293 = vector.extract_strided_slice %283 {offsets = [16, 0], sizes = [8, 128], strides = [1, 1]} : vector<72x128xf32> to vector<8x128xf32>
    %294 = vector.extract_strided_slice %282 {offsets = [2, 0], sizes = [1, 128], strides = [1, 1]} : vector<9x128xf32> to vector<1x128xf32>
    %295 = vector.broadcast %294 : vector<1x128xf32> to vector<8x128xf32>
    %296 = arith.mulf %293, %295 : vector<8x128xf32>
    %297 = arith.addf %292, %296 : vector<8x128xf32>
    %298 = vector.extract_strided_slice %283 {offsets = [24, 0], sizes = [8, 128], strides = [1, 1]} : vector<72x128xf32> to vector<8x128xf32>
    %299 = vector.extract_strided_slice %282 {offsets = [3, 0], sizes = [1, 128], strides = [1, 1]} : vector<9x128xf32> to vector<1x128xf32>
    %300 = vector.broadcast %299 : vector<1x128xf32> to vector<8x128xf32>
    %301 = arith.mulf %298, %300 : vector<8x128xf32>
    %302 = arith.addf %297, %301 : vector<8x128xf32>
    %303 = vector.extract_strided_slice %283 {offsets = [32, 0], sizes = [8, 128], strides = [1, 1]} : vector<72x128xf32> to vector<8x128xf32>
    %304 = vector.extract_strided_slice %282 {offsets = [4, 0], sizes = [1, 128], strides = [1, 1]} : vector<9x128xf32> to vector<1x128xf32>
    %305 = vector.broadcast %304 : vector<1x128xf32> to vector<8x128xf32>
    %306 = arith.mulf %303, %305 : vector<8x128xf32>
    %307 = arith.addf %302, %306 : vector<8x128xf32>
    %308 = vector.extract_strided_slice %283 {offsets = [40, 0], sizes = [8, 128], strides = [1, 1]} : vector<72x128xf32> to vector<8x128xf32>
    %309 = vector.extract_strided_slice %282 {offsets = [5, 0], sizes = [1, 128], strides = [1, 1]} : vector<9x128xf32> to vector<1x128xf32>
    %310 = vector.broadcast %309 : vector<1x128xf32> to vector<8x128xf32>
    %311 = arith.mulf %308, %310 : vector<8x128xf32>
    %312 = arith.addf %307, %311 : vector<8x128xf32>
    %313 = vector.extract_strided_slice %283 {offsets = [48, 0], sizes = [8, 128], strides = [1, 1]} : vector<72x128xf32> to vector<8x128xf32>
    %314 = vector.extract_strided_slice %282 {offsets = [6, 0], sizes = [1, 128], strides = [1, 1]} : vector<9x128xf32> to vector<1x128xf32>
    %315 = vector.broadcast %314 : vector<1x128xf32> to vector<8x128xf32>
    %316 = arith.mulf %313, %315 : vector<8x128xf32>
    %317 = arith.addf %312, %316 : vector<8x128xf32>
    %318 = vector.extract_strided_slice %283 {offsets = [56, 0], sizes = [8, 128], strides = [1, 1]} : vector<72x128xf32> to vector<8x128xf32>
    %319 = vector.extract_strided_slice %282 {offsets = [7, 0], sizes = [1, 128], strides = [1, 1]} : vector<9x128xf32> to vector<1x128xf32>
    %320 = vector.broadcast %319 : vector<1x128xf32> to vector<8x128xf32>
    %321 = arith.mulf %318, %320 : vector<8x128xf32>
    %322 = arith.addf %317, %321 : vector<8x128xf32>
    %323 = vector.extract_strided_slice %283 {offsets = [64, 0], sizes = [8, 128], strides = [1, 1]} : vector<72x128xf32> to vector<8x128xf32>
    %324 = vector.extract_strided_slice %282 {offsets = [8, 0], sizes = [1, 128], strides = [1, 1]} : vector<9x128xf32> to vector<1x128xf32>
    %325 = vector.broadcast %324 : vector<1x128xf32> to vector<8x128xf32>
    %326 = arith.mulf %323, %325 : vector<8x128xf32>
    %327 = arith.addf %322, %326 : vector<8x128xf32>
    %328 = math.absf %327 : vector<8x128xf32>
    %cst_89 = arith.constant 0.000000e+00 : f32
    %329 = vector.broadcast %cst_89 : f32 to vector<8x128xf32>
    %330 = arith.subf %329, %328 : vector<8x128xf32>
    %331 = math.exp %330 : vector<8x128xf32>
    %cst_90 = arith.constant 1.000000e+00 : f32
    %332 = vector.broadcast %cst_90 : f32 to vector<8x128xf32>
    %333 = arith.addf %332, %331 : vector<8x128xf32>
    %cst_91 = arith.constant 1.000000e+00 : f32
    %334 = vector.broadcast %cst_91 : f32 to vector<8x128xf32>
    %335 = arith.divf %334, %333 : vector<8x128xf32>
    %cst_92 = arith.constant 0.000000e+00 : f32
    %336 = vector.broadcast %cst_92 : f32 to vector<8x128xf32>
    %337 = arith.cmpf oge, %327, %336 : vector<8x128xf32>
    %338 = arith.mulf %331, %335 : vector<8x128xf32>
    %339 = arith.select %337, %335, %338 : vector<8x128xi1>, vector<8x128xf32>
    %340 = arith.mulf %327, %339 : vector<8x128xf32>
    %c928 = arith.constant 928 : index
    %c0_93 = arith.constant 0 : index
    %341 = vector.load %arg3[%c928, %c0_93] : memref<1448x128xf32, #tpu.memory_space<vmem>>, vector<128x64xf32>
    %cst_94 = arith.constant dense<0.000000e+00> : vector<8x64xf32>
    %342 = tpu.matmul %340, %341, %cst_94 {dimension_numbers = #tpu.dot_dimension_numbers<[1], [0], [0], [1], [0, 0, 1, 1], [], []>} : vector<8x128xf32>, vector<128x64xf32>, vector<8x64xf32> -> vector<8x64xf32>
    %343 = arith.addf %342, %264 : vector<8x64xf32>
    %c1056 = arith.constant 1056 : index
    %c0_95 = arith.constant 0 : index
    %344 = vector.load %arg3[%c1056, %c0_95] : memref<1448x128xf32, #tpu.memory_space<vmem>>, vector<64x128xf32>
    %cst_96 = arith.constant dense<0.000000e+00> : vector<8x128xf32>
    %345 = tpu.matmul %343, %344, %cst_96 {dimension_numbers = #tpu.dot_dimension_numbers<[1], [0], [0], [1], [0, 0, 1, 1], [], []>} : vector<8x64xf32>, vector<64x128xf32>, vector<8x128xf32> -> vector<8x128xf32>
    %346 = math.absf %345 : vector<8x128xf32>
    %cst_97 = arith.constant 0.000000e+00 : f32
    %347 = vector.broadcast %cst_97 : f32 to vector<8x128xf32>
    %348 = arith.subf %347, %346 : vector<8x128xf32>
    %349 = math.exp %348 : vector<8x128xf32>
    %cst_98 = arith.constant 1.000000e+00 : f32
    %350 = vector.broadcast %cst_98 : f32 to vector<8x128xf32>
    %351 = arith.addf %350, %349 : vector<8x128xf32>
    %cst_99 = arith.constant 1.000000e+00 : f32
    %352 = vector.broadcast %cst_99 : f32 to vector<8x128xf32>
    %353 = arith.divf %352, %351 : vector<8x128xf32>
    %cst_100 = arith.constant 0.000000e+00 : f32
    %354 = vector.broadcast %cst_100 : f32 to vector<8x128xf32>
    %355 = arith.cmpf oge, %345, %354 : vector<8x128xf32>
    %356 = arith.mulf %349, %353 : vector<8x128xf32>
    %357 = arith.select %355, %353, %356 : vector<8x128xi1>, vector<8x128xf32>
    %358 = arith.mulf %345, %357 : vector<8x128xf32>
    %c1888 = arith.constant 1888 : index
    %c0_101 = arith.constant 0 : index
    %359 = vector.load %arg4[%c1888, %c0_101] : memref<1904x128xbf16, #tpu.memory_space<vmem>>, vector<2x8xbf16>
    %360 = arith.extf %359 : vector<2x8xbf16> to vector<2x8xf32>
    %cst_102 = arith.constant dense<0.000000e+00> : vector<2x128xf32>
    %361 = tpu.matmul %360, %358, %cst_102 {dimension_numbers = #tpu.dot_dimension_numbers<[1], [0], [0], [1], [0, 0, 1, 1], [], []>} : vector<2x8xf32>, vector<8x128xf32>, vector<2x128xf32> -> vector<2x128xf32>
    %c0_103 = arith.constant 0 : index
    %c0_104 = arith.constant 0 : index
    %362 = vector.load %arg1[%c0_103, %c0_104] : memref<2x6xf32, #tpu.memory_space<vmem>>, vector<2x6xf32>
    %363 = arith.cmpf one, %362, %362 : vector<2x6xf32>
    %cst_105 = arith.constant 0.000000e+00 : f32
    %364 = vector.broadcast %cst_105 : f32 to vector<2x6xf32>
    %365 = arith.select %363, %364, %362 : vector<2x6xi1>, vector<2x6xf32>
    %cst_106 = arith.constant -3.40282347E+38 : f32
    %cst_107 = arith.constant 3.40282347E+38 : f32
    %366 = vector.broadcast %cst_106 : f32 to vector<2x6xf32>
    %367 = arith.maximumf %366, %365 : vector<2x6xf32>
    %368 = vector.broadcast %cst_107 : f32 to vector<2x6xf32>
    %369 = arith.minimumf %368, %367 : vector<2x6xf32>
    %c1120 = arith.constant 1120 : index
    %c0_108 = arith.constant 0 : index
    %370 = vector.load %arg3[%c1120, %c0_108] : memref<1448x128xf32, #tpu.memory_space<vmem>>, vector<6x16xf32>
    %cst_109 = arith.constant dense<0.000000e+00> : vector<2x16xf32>
    %371 = tpu.matmul %369, %370, %cst_109 {dimension_numbers = #tpu.dot_dimension_numbers<[1], [0], [0], [1], [0, 0, 1, 1], [], []>} : vector<2x6xf32>, vector<6x16xf32>, vector<2x16xf32> -> vector<2x16xf32>
    %c1128 = arith.constant 1128 : index
    %c0_110 = arith.constant 0 : index
    %372 = vector.load %arg3[%c1128, %c0_110] : memref<1448x128xf32, #tpu.memory_space<vmem>>, vector<1x16xf32>
    %373 = vector.broadcast %372 : vector<1x16xf32> to vector<2x16xf32>
    %374 = arith.addf %371, %373 : vector<2x16xf32>
    %cst_111 = arith.constant 0.000000e+00 : f32
    %375 = vector.broadcast %cst_111 : f32 to vector<2x16xf32>
    %376 = arith.maximumf %374, %375 : vector<2x16xf32>
    %c0_112 = arith.constant 0 : index
    %c0_113 = arith.constant 0 : index
    %377 = vector.load %arg2[%c0_112, %c0_113] : memref<2x3xf32, #tpu.memory_space<vmem>>, vector<2x3xf32>
    %378 = arith.cmpf one, %377, %377 : vector<2x3xf32>
    %cst_114 = arith.constant 0.000000e+00 : f32
    %379 = vector.broadcast %cst_114 : f32 to vector<2x3xf32>
    %380 = arith.select %378, %379, %377 : vector<2x3xi1>, vector<2x3xf32>
    %cst_115 = arith.constant -3.40282347E+38 : f32
    %cst_116 = arith.constant 3.40282347E+38 : f32
    %381 = vector.broadcast %cst_115 : f32 to vector<2x3xf32>
    %382 = arith.maximumf %381, %380 : vector<2x3xf32>
    %383 = vector.broadcast %cst_116 : f32 to vector<2x3xf32>
    %384 = arith.minimumf %383, %382 : vector<2x3xf32>
    %c1136 = arith.constant 1136 : index
    %c0_117 = arith.constant 0 : index
    %385 = vector.load %arg3[%c1136, %c0_117] : memref<1448x128xf32, #tpu.memory_space<vmem>>, vector<3x8xf32>
    %cst_118 = arith.constant dense<0.000000e+00> : vector<2x8xf32>
    %386 = tpu.matmul %384, %385, %cst_118 {dimension_numbers = #tpu.dot_dimension_numbers<[1], [0], [0], [1], [0, 0, 1, 1], [], []>} : vector<2x3xf32>, vector<3x8xf32>, vector<2x8xf32> -> vector<2x8xf32>
    %c1144 = arith.constant 1144 : index
    %c0_119 = arith.constant 0 : index
    %387 = vector.load %arg3[%c1144, %c0_119] : memref<1448x128xf32, #tpu.memory_space<vmem>>, vector<1x8xf32>
    %388 = vector.broadcast %387 : vector<1x8xf32> to vector<2x8xf32>
    %389 = arith.addf %386, %388 : vector<2x8xf32>
    %cst_120 = arith.constant 0.000000e+00 : f32
    %390 = vector.broadcast %cst_120 : f32 to vector<2x8xf32>
    %391 = arith.maximumf %389, %390 : vector<2x8xf32>
    %c1152_121 = arith.constant 1152 : index
    %c0_122 = arith.constant 0 : index
    %392 = vector.load %arg3[%c1152_121, %c0_122] : memref<1448x128xf32, #tpu.memory_space<vmem>>, vector<152x128xf32>
    %393 = vector.extract_strided_slice %392 {offsets = [0, 0], sizes = [128, 128], strides = [1, 1]} : vector<152x128xf32> to vector<128x128xf32>
    %cst_123 = arith.constant dense<0.000000e+00> : vector<2x128xf32>
    %394 = tpu.matmul %361, %393, %cst_123 {dimension_numbers = #tpu.dot_dimension_numbers<[1], [0], [0], [1], [0, 0, 1, 1], [], []>} : vector<2x128xf32>, vector<128x128xf32>, vector<2x128xf32> -> vector<2x128xf32>
    %395 = vector.extract_strided_slice %392 {offsets = [128, 0], sizes = [16, 128], strides = [1, 1]} : vector<152x128xf32> to vector<16x128xf32>
    %cst_124 = arith.constant dense<0.000000e+00> : vector<2x128xf32>
    %396 = tpu.matmul %376, %395, %cst_124 {dimension_numbers = #tpu.dot_dimension_numbers<[1], [0], [0], [1], [0, 0, 1, 1], [], []>} : vector<2x16xf32>, vector<16x128xf32>, vector<2x128xf32> -> vector<2x128xf32>
    %397 = arith.addf %394, %396 : vector<2x128xf32>
    %398 = vector.extract_strided_slice %392 {offsets = [144, 0], sizes = [8, 128], strides = [1, 1]} : vector<152x128xf32> to vector<8x128xf32>
    %cst_125 = arith.constant dense<0.000000e+00> : vector<2x128xf32>
    %399 = tpu.matmul %391, %398, %cst_125 {dimension_numbers = #tpu.dot_dimension_numbers<[1], [0], [0], [1], [0, 0, 1, 1], [], []>} : vector<2x8xf32>, vector<8x128xf32>, vector<2x128xf32> -> vector<2x128xf32>
    %400 = arith.addf %397, %399 : vector<2x128xf32>
    %c1304 = arith.constant 1304 : index
    %c0_126 = arith.constant 0 : index
    %401 = vector.load %arg3[%c1304, %c0_126] : memref<1448x128xf32, #tpu.memory_space<vmem>>, vector<1x128xf32>
    %402 = vector.broadcast %401 : vector<1x128xf32> to vector<2x128xf32>
    %403 = arith.addf %400, %402 : vector<2x128xf32>
    %cst_127 = arith.constant 0.000000e+00 : f32
    %404 = vector.broadcast %cst_127 : f32 to vector<2x128xf32>
    %405 = arith.maximumf %403, %404 : vector<2x128xf32>
    %c1312 = arith.constant 1312 : index
    %c0_128 = arith.constant 0 : index
    %406 = vector.load %arg3[%c1312, %c0_128] : memref<1448x128xf32, #tpu.memory_space<vmem>>, vector<128x3xf32>
    %cst_129 = arith.constant dense<0.000000e+00> : vector<2x3xf32>
    %407 = tpu.matmul %405, %406, %cst_129 {dimension_numbers = #tpu.dot_dimension_numbers<[1], [0], [0], [1], [0, 0, 1, 1], [], []>} : vector<2x128xf32>, vector<128x3xf32>, vector<2x3xf32> -> vector<2x3xf32>
    %c1440_130 = arith.constant 1440 : index
    %c0_131 = arith.constant 0 : index
    %408 = vector.load %arg3[%c1440_130, %c0_131] : memref<1448x128xf32, #tpu.memory_space<vmem>>, vector<1x3xf32>
    %409 = vector.broadcast %408 : vector<1x3xf32> to vector<2x3xf32>
    %410 = arith.addf %407, %409 : vector<2x3xf32>
    %c0_132 = arith.constant 0 : index
    %c0_133 = arith.constant 0 : index
    %411 = vector.load %arg5[%c0_132, %c0_133] : memref<2x3xf32, #tpu.memory_space<vmem>>, vector<2x3xf32>
    tpu.vector_store %arg5[%c0_132, %c0_133], %410 {strides = array<i32>} : memref<2x3xf32, #tpu.memory_space<vmem>>, vector<2x3xf32>,
    return
  }
}

</mosaic_0001>

<llo_original>
// kernel: forward.1
$region0: #{forward.1}
  #allocation0 [shape = 'u32[]', space=smem, size = 0x4, offset = 0x4, fixed_abs, tag = 'smem constant byte address 0x4 - core index']
  #allocation1 [shape = 'u32[72,128]{1,0:T(1,128)}', space=vmem, size = 0x9000, scoped, tag = 'internal scratch']
  %s0 = inlined_call_operand.vmem [shape: f32[128,45], index: 0, kind: input, shape index: {}]
  %s1 = inlined_call_operand.vmem [shape: f32[2,6], index: 1, kind: input, shape index: {}]
  %s2 = inlined_call_operand.vmem [shape: f32[2,3], index: 2, kind: input, shape index: {}]
  %s3 = inlined_call_operand.vmem [shape: f32[1448,128], index: 3, kind: input, shape index: {}]
  %s4 = inlined_call_operand.vmem [shape: bf16[1904,128], index: 4, kind: input, shape index: {}]
  %s5 = inlined_call_operand.hbm [shape: f32[2,3], index: 5, kind: output, shape index: {}]
  %s6 = sld [smem:[#allocation0]]
  $region30: #{forward.1} parent=0
    _
  %s8 = ssub.s32 1, %s6
  %s9 = scalar_select 0, %s8, %s6
  $region1: #{forward.1} parent=0
    #allocation2 [shape = 'u8[1024]{0}', space=vmem, size = 0x400, scoped, tag = 'output window, operand 0, single buffered']
    #allocation3 [shape = 's32[1]{0}', space=sflag, size = 0x4, scoped, tag = 'scoped memory for forward.1']
    %10 = vsyncpa [#allocation3], 0
    // Predicated region
    $region2: #{forward.1} parent=1 // pred_check
      _
    $region3: #{forward.1} parent=1 // pred_check_branch
      %12 = sbr.rel (0) target = $region5
    $region4: #{forward.1} parent=1 // pred_region
      _
    $region5: #{forward.1} parent=1 // pred_fallthru
      _
    // Predicated region
    $region6: #{forward.1} parent=1 // pred_check
      _
    $region7: #{forward.1} parent=1 // pred_check_branch
      %14 = sbr.rel (0) target = $region9
    $region8: #{forward.1} parent=1 // pred_region
      _
    $region9: #{forward.1} parent=1 // pred_fallthru
      _
    // Predicated region
    $region10: #{forward.1} parent=1 // pred_check
      _
    $region11: #{forward.1} parent=1 // pred_check_branch
      %16 = sbr.rel (0) target = $region13
    $region12: #{forward.1} parent=1 // pred_region
      _
    $region13: #{forward.1} parent=1 // pred_fallthru
      _
    // Predicated region
    $region14: #{forward.1} parent=1 // pred_check
      _
    $region15: #{forward.1} parent=1 // pred_check_branch
      %18 = sbr.rel (0) target = $region17
    $region16: #{forward.1} parent=1 // pred_region
      _
    $region17: #{forward.1} parent=1 // pred_fallthru
      _
    // Predicated region
    $region18: #{forward.1} parent=1 // pred_check
      _
    $region19: #{forward.1} parent=1 // pred_check_branch
      %20 = sbr.rel (0) target = $region21
    $region20: #{forward.1} parent=1 // pred_region
      _
    $region21: #{forward.1} parent=1 // pred_fallthru
      _
    %v21 = vld [vmem:[%s0] sm:$0xff]
    %v22 = vld [vmem:[%s0 + $0x8] sm:$0xff]
    %v23 = vld [vmem:[%s0 + $0x10] sm:$0xff]
    %v24 = vld [vmem:[%s0 + $0x18] sm:$0xff]
    %v25 = vld [vmem:[%s0 + $0x20] sm:$0xff]
    %v26 = vld [vmem:[%s0 + $0x28] sm:$0xff]
    %v27 = vld [vmem:[%s0 + $0x30] sm:$0xff]
    %v28 = vld [vmem:[%s0 + $0x38] sm:$0xff]
    %v29 = vld [vmem:[%s0 + $0x40] sm:$0xff]
    %v30 = vld [vmem:[%s0 + $0x48] sm:$0xff]
    %v31 = vld [vmem:[%s0 + $0x50] sm:$0xff]
    %v32 = vld [vmem:[%s0 + $0x58] sm:$0xff]
    %v33 = vld [vmem:[%s0 + $0x60] sm:$0xff]
    %v34 = vld [vmem:[%s0 + $0x68] sm:$0xff]
    %v35 = vld [vmem:[%s0 + $0x70] sm:$0xff]
    %v36 = vld [vmem:[%s0 + $0x78] sm:$0xff]
    %vm37 = vcmp.ne.f32.partialorder %v21, %v21
    %vm38 = vcmp.ne.f32.partialorder %v22, %v22
    %vm39 = vcmp.ne.f32.partialorder %v23, %v23
    %vm40 = vcmp.ne.f32.partialorder %v24, %v24
    %vm41 = vcmp.ne.f32.partialorder %v25, %v25
    %vm42 = vcmp.ne.f32.partialorder %v26, %v26
    %vm43 = vcmp.ne.f32.partialorder %v27, %v27
    %vm44 = vcmp.ne.f32.partialorder %v28, %v28
    %vm45 = vcmp.ne.f32.partialorder %v29, %v29
    %vm46 = vcmp.ne.f32.partialorder %v30, %v30
    %vm47 = vcmp.ne.f32.partialorder %v31, %v31
    %vm48 = vcmp.ne.f32.partialorder %v32, %v32
    %vm49 = vcmp.ne.f32.partialorder %v33, %v33
    %vm50 = vcmp.ne.f32.partialorder %v34, %v34
    %vm51 = vcmp.ne.f32.partialorder %v35, %v35
    %vm52 = vcmp.ne.f32.partialorder %v36, %v36
    %v53 = vsel %vm37, 0.0, %v21
    %v54 = vsel %vm38, 0.0, %v22
    %v55 = vsel %vm39, 0.0, %v23
    %v56 = vsel %vm40, 0.0, %v24
    %v57 = vsel %vm41, 0.0, %v25
    %v58 = vsel %vm42, 0.0, %v26
    %v59 = vsel %vm43, 0.0, %v27
    %v60 = vsel %vm44, 0.0, %v28
    %v61 = vsel %vm45, 0.0, %v29
    %v62 = vsel %vm46, 0.0, %v30
    %v63 = vsel %vm47, 0.0, %v31
    %v64 = vsel %vm48, 0.0, %v32
    %v65 = vsel %vm49, 0.0, %v33
    %v66 = vsel %vm50, 0.0, %v34
    %v67 = vsel %vm51, 0.0, %v35
    %v68 = vsel %vm52, 0.0, %v36
    %v69 = vmax.f32 %v53, -3.4028235e+38
    %v70 = vmax.f32 %v54, -3.4028235e+38
    %v71 = vmax.f32 %v55, -3.4028235e+38
    %v72 = vmax.f32 %v56, -3.4028235e+38
    %v73 = vmax.f32 %v57, -3.4028235e+38
    %v74 = vmax.f32 %v58, -3.4028235e+38
    %v75 = vmax.f32 %v59, -3.4028235e+38
    %v76 = vmax.f32 %v60, -3.4028235e+38
    %v77 = vmax.f32 %v61, -3.4028235e+38
    %v78 = vmax.f32 %v62, -3.4028235e+38
    %v79 = vmax.f32 %v63, -3.4028235e+38
    %v80 = vmax.f32 %v64, -3.4028235e+38
    %v81 = vmax.f32 %v65, -3.4028235e+38
    %v82 = vmax.f32 %v66, -3.4028235e+38
    %v83 = vmax.f32 %v67, -3.4028235e+38
    %v84 = vmax.f32 %v68, -3.4028235e+38
    %v85 = vmin.f32 %v69, 3.4028235e+38
    %v86 = vmin.f32 %v70, 3.4028235e+38
    %v87 = vmin.f32 %v71, 3.4028235e+38
    %v88 = vmin.f32 %v72, 3.4028235e+38
    %v89 = vmin.f32 %v73, 3.4028235e+38
    %v90 = vmin.f32 %v74, 3.4028235e+38
    %v91 = vmin.f32 %v75, 3.4028235e+38
    %v92 = vmin.f32 %v76, 3.4028235e+38
    %v93 = vmin.f32 %v77, 3.4028235e+38
    %v94 = vmin.f32 %v78, 3.4028235e+38
    %v95 = vmin.f32 %v79, 3.4028235e+38
    %v96 = vmin.f32 %v80, 3.4028235e+38
    %v97 = vmin.f32 %v81, 3.4028235e+38
    %v98 = vmin.f32 %v82, 3.4028235e+38
    %v99 = vmin.f32 %v83, 3.4028235e+38
    %v100 = vmin.f32 %v84, 3.4028235e+38
    %v101 = vld [vmem:[%s3] sm:$0xff]
    %v102 = vld [vmem:[%s3 + $0x8] sm:$0xff]
    %v103 = vld [vmem:[%s3 + $0x10] sm:$0xff]
    %v104 = vld [vmem:[%s3 + $0x18] sm:$0xff]
    %v105 = vld [vmem:[%s3 + $0x20] sm:$0xff]
    %v106 = vld [vmem:[%s3 + $0x28] sm:$0x1f]
    %vm107 = vcmask 367616
    %v109 = vsel %vm107, %v85, 0
    %v112 = vsel %vm107, %v86, 0
    %v115 = vsel %vm107, %v87, 0
    %v118 = vsel %vm107, %v88, 0
    %v121 = vsel %vm107, %v89, 0
    %v124 = vsel %vm107, %v90, 0
    %v127 = vsel %vm107, %v91, 0
    %v130 = vsel %vm107, %v92, 0
    %v133 = vsel %vm107, %v93, 0
    %v136 = vsel %vm107, %v94, 0
    %v139 = vsel %vm107, %v95, 0
    %v142 = vsel %vm107, %v96, 0
    %v145 = vsel %vm107, %v97, 0
    %v148 = vsel %vm107, %v98, 0
    %v151 = vsel %vm107, %v99, 0
    %v154 = vsel %vm107, %v100, 0
    %vm156 = vcmask 1044480
    %v158 = vsel %vm156, %v106, 0
    %160 = vmatpush.msra.mxu0 0.0
    %161 = vmatpush.msra.mxu0 0.0
    %162 = vmatpush.msra.mxu0 0.0
    %163 = vmatpush.msra.mxu0 0.0
    %164 = vmatpush.msra.mxu0 0.0
    %165 = vmatpush.msra.mxu0 0.0
    %166 = vmatpush.msra.mxu0 0.0
    %167 = vmatpush.msra.mxu0 0.0
    %168 = vmatpush.msra.mxu0 0.0
    %169 = vmatpush.msra.mxu0 0.0
    %170 = vmatpush.msra.mxu0 %v158
    %171 = vmatpush.msra.mxu0 %v105
    %172 = vmatpush.msra.mxu0 %v104
    %173 = vmatpush.msra.mxu0 %v103
    %174 = vmatpush.msra.mxu0 %v102
    %175 = vmatpush.msra.mxu0 %v101
    %176 = vmatmul.f32.gmra.mxu0 %v109
    %v177 = vpop.f32.mrf.mxu0
    %v178 = vadd.f32 0.0, %v177
    %179 = vmatmul.f32.gmra.mxu0 %v112
    %v180 = vpop.f32.mrf.mxu0
    %v181 = vadd.f32 0.0, %v180
    %182 = vmatmul.f32.gmra.mxu0 %v115
    %v183 = vpop.f32.mrf.mxu0
    %v184 = vadd.f32 0.0, %v183
    %185 = vmatmul.f32.gmra.mxu0 %v118
    %v186 = vpop.f32.mrf.mxu0
    %v187 = vadd.f32 0.0, %v186
    %188 = vmatmul.f32.gmra.mxu0 %v121
    %v189 = vpop.f32.mrf.mxu0
    %v190 = vadd.f32 0.0, %v189
    %191 = vmatmul.f32.gmra.mxu0 %v124
    %v192 = vpop.f32.mrf.mxu0
    %v193 = vadd.f32 0.0, %v192
    %194 = vmatmul.f32.gmra.mxu0 %v127
    %v195 = vpop.f32.mrf.mxu0
    %v196 = vadd.f32 0.0, %v195
    %197 = vmatmul.f32.gmra.mxu0 %v130
    %v198 = vpop.f32.mrf.mxu0
    %v199 = vadd.f32 0.0, %v198
    %200 = vmatmul.f32.gmra.mxu0 %v133
    %v201 = vpop.f32.mrf.mxu0
    %v202 = vadd.f32 0.0, %v201
    %203 = vmatmul.f32.gmra.mxu0 %v136
    %v204 = vpop.f32.mrf.mxu0
    %v205 = vadd.f32 0.0, %v204
    %206 = vmatmul.f32.gmra.mxu0 %v139
    %v207 = vpop.f32.mrf.mxu0
    %v208 = vadd.f32 0.0, %v207
    %209 = vmatmul.f32.gmra.mxu0 %v142
    %v210 = vpop.f32.mrf.mxu0
    %v211 = vadd.f32 0.0, %v210
    %212 = vmatmul.f32.gmra.mxu0 %v145
    %v213 = vpop.f32.mrf.mxu0
    %v214 = vadd.f32 0.0, %v213
    %215 = vmatmul.f32.gmra.mxu0 %v148
    %v216 = vpop.f32.mrf.mxu0
    %v217 = vadd.f32 0.0, %v216
    %218 = vmatmul.f32.gmra.mxu0 %v151
    %v219 = vpop.f32.mrf.mxu0
    %v220 = vadd.f32 0.0, %v219
    %221 = vmatmul.f32.gmra.mxu0 %v154
    %v222 = vpop.f32.mrf.mxu0
    %v223 = vadd.f32 0.0, %v222
    %224 = vdwg.mxu0
    %v225 = vand.u32 2147483647, %v178
    %v226 = vand.u32 2147483647, %v181
    %v227 = vand.u32 2147483647, %v184
    %v228 = vand.u32 2147483647, %v187
    %v229 = vand.u32 2147483647, %v190
    %v230 = vand.u32 2147483647, %v193
    %v231 = vand.u32 2147483647, %v196
    %v232 = vand.u32 2147483647, %v199
    %v233 = vand.u32 2147483647, %v202
    %v234 = vand.u32 2147483647, %v205
    %v235 = vand.u32 2147483647, %v208
    %v236 = vand.u32 2147483647, %v211
    %v237 = vand.u32 2147483647, %v214
    %v238 = vand.u32 2147483647, %v217
    %v239 = vand.u32 2147483647, %v220
    %v240 = vand.u32 2147483647, %v223
    %v241 = vsub.f32 0.0, %v225
    %v242 = vsub.f32 0.0, %v226
    %v243 = vsub.f32 0.0, %v227
    %v244 = vsub.f32 0.0, %v228
    %v245 = vsub.f32 0.0, %v229
    %v246 = vsub.f32 0.0, %v230
    %v247 = vsub.f32 0.0, %v231
    %v248 = vsub.f32 0.0, %v232
    %v249 = vsub.f32 0.0, %v233
    %v250 = vsub.f32 0.0, %v234
    %v251 = vsub.f32 0.0, %v235
    %v252 = vsub.f32 0.0, %v236
    %v253 = vsub.f32 0.0, %v237
    %v254 = vsub.f32 0.0, %v238
    %v255 = vsub.f32 0.0, %v239
    %v256 = vsub.f32 0.0, %v240
    %v257 = vmul.f32 %v241, 1.442695
    %v258 = vpow.pop %v257
    %v259 = vmul.f32 %v242, 1.442695
    %v260 = vpow.pop %v259
    %v261 = vmul.f32 %v243, 1.442695
    %v262 = vpow.pop %v261
    %v263 = vmul.f32 %v244, 1.442695
    %v264 = vpow.pop %v263
    %v265 = vmul.f32 %v245, 1.442695
    %v266 = vpow.pop %v265
    %v267 = vmul.f32 %v246, 1.442695
    %v268 = vpow.pop %v267
    %v269 = vmul.f32 %v247, 1.442695
    %v270 = vpow.pop %v269
    %v271 = vmul.f32 %v248, 1.442695
    %v272 = vpow.pop %v271
    %v273 = vmul.f32 %v249, 1.442695
    %v274 = vpow.pop %v273
    %v275 = vmul.f32 %v250, 1.442695
    %v276 = vpow.pop %v275
    %v277 = vmul.f32 %v251, 1.442695
    %v278 = vpow.pop %v277
    %v279 = vmul.f32 %v252, 1.442695
    %v280 = vpow.pop %v279
    %v281 = vmul.f32 %v253, 1.442695
    %v282 = vpow.pop %v281
    %v283 = vmul.f32 %v254, 1.442695
    %v284 = vpow.pop %v283
    %v285 = vmul.f32 %v255, 1.442695
    %v286 = vpow.pop %v285
    %v287 = vmul.f32 %v256, 1.442695
    %v288 = vpow.pop %v287
    %v289 = vadd.f32 %v258, 1.0
    %v290 = vadd.f32 %v260, 1.0
    %v291 = vadd.f32 %v262, 1.0
    %v292 = vadd.f32 %v264, 1.0
    %v293 = vadd.f32 %v266, 1.0
    %v294 = vadd.f32 %v268, 1.0
    %v295 = vadd.f32 %v270, 1.0
    %v296 = vadd.f32 %v272, 1.0
    %v297 = vadd.f32 %v274, 1.0
    %v298 = vadd.f32 %v276, 1.0
    %v299 = vadd.f32 %v278, 1.0
    %v300 = vadd.f32 %v280, 1.0
    %v301 = vadd.f32 %v282, 1.0
    %v302 = vadd.f32 %v284, 1.0
    %v303 = vadd.f32 %v286, 1.0
    %v304 = vadd.f32 %v288, 1.0
    %v305 = vrcp.pop %v289
    %v306 = vmul.f32 %v289, %v305
    %v307 = vsub.f32 1.0, %v306
    %v308 = vmul.f32 %v305, %v307
    %v309 = vadd.f32 %v305, %v308
    %vm310 = vweird.f32 %v289
    %vm311 = vweird.f32 %v305
    %vm312 = vmor %vm310, %vm311
    %v313 = vsel %vm312, %v305, %v309
    %v314 = vand.u32 2147483647, %v289
    %vm315 = vcmp.eq.f32.partialorder %v314, 8.507059e+37
    %v316 = vand.u32 %v289, 2147483648
    %v317 = vor.u32 1.1754944e-38, %v316
    %v318 = vsel %vm315, %v317, %v313
    %v319 = vmul.f32 1.0, %v318
    %v320 = vrcp.pop %v290
    %v321 = vmul.f32 %v290, %v320
    %v322 = vsub.f32 1.0, %v321
    %v323 = vmul.f32 %v320, %v322
    %v324 = vadd.f32 %v320, %v323
    %vm325 = vweird.f32 %v290
    %vm326 = vweird.f32 %v320
    %vm327 = vmor %vm325, %vm326
    %v328 = vsel %vm327, %v320, %v324
    %v329 = vand.u32 2147483647, %v290
    %vm330 = vcmp.eq.f32.partialorder %v329, 8.507059e+37
    %v331 = vand.u32 %v290, 2147483648
    %v332 = vor.u32 1.1754944e-38, %v331
    %v333 = vsel %vm330, %v332, %v328
    %v334 = vmul.f32 1.0, %v333
    %v335 = vrcp.pop %v291
    %v336 = vmul.f32 %v291, %v335
    %v337 = vsub.f32 1.0, %v336
    %v338 = vmul.f32 %v335, %v337
    %v339 = vadd.f32 %v335, %v338
    %vm340 = vweird.f32 %v291
    %vm341 = vweird.f32 %v335
    %vm342 = vmor %vm340, %vm341
    %v343 = vsel %vm342, %v335, %v339
    %v344 = vand.u32 2147483647, %v291
    %vm345 = vcmp.eq.f32.partialorder %v344, 8.507059e+37
    %v346 = vand.u32 %v291, 2147483648
    %v347 = vor.u32 1.1754944e-38, %v346
    %v348 = vsel %vm345, %v347, %v343
    %v349 = vmul.f32 1.0, %v348
    %v350 = vrcp.pop %v292
    %v351 = vmul.f32 %v292, %v350
    %v352 = vsub.f32 1.0, %v351
    %v353 = vmul.f32 %v350, %v352
    %v354 = vadd.f32 %v350, %v353
    %vm355 = vweird.f32 %v292
    %vm356 = vweird.f32 %v350
    %vm357 = vmor %vm355, %vm356
    %v358 = vsel %vm357, %v350, %v354
    %v359 = vand.u32 2147483647, %v292
    %vm360 = vcmp.eq.f32.partialorder %v359, 8.507059e+37
    %v361 = vand.u32 %v292, 2147483648
    %v362 = vor.u32 1.1754944e-38, %v361
    %v363 = vsel %vm360, %v362, %v358
    %v364 = vmul.f32 1.0, %v363
    %v365 = vrcp.pop %v293
    %v366 = vmul.f32 %v293, %v365
    %v367 = vsub.f32 1.0, %v366
    %v368 = vmul.f32 %v365, %v367
    %v369 = vadd.f32 %v365, %v368
    %vm370 = vweird.f32 %v293
    %vm371 = vweird.f32 %v365
    %vm372 = vmor %vm370, %vm371
    %v373 = vsel %vm372, %v365, %v369
    %v374 = vand.u32 2147483647, %v293
    %vm375 = vcmp.eq.f32.partialorder %v374, 8.507059e+37
    %v376 = vand.u32 %v293, 2147483648
    %v377 = vor.u32 1.1754944e-38, %v376
    %v378 = vsel %vm375, %v377, %v373
    %v379 = vmul.f32 1.0, %v378
    %v380 = vrcp.pop %v294
    %v381 = vmul.f32 %v294, %v380
    %v382 = vsub.f32 1.0, %v381
    %v383 = vmul.f32 %v380, %v382
    %v384 = vadd.f32 %v380, %v383
    %vm385 = vweird.f32 %v294
    %vm386 = vweird.f32 %v380
    %vm387 = vmor %vm385, %vm386
    %v388 = vsel %vm387, %v380, %v384
    %v389 = vand.u32 2147483647, %v294
    %vm390 = vcmp.eq.f32.partialorder %v389, 8.507059e+37
    %v391 = vand.u32 %v294, 2147483648
    %v392 = vor.u32 1.1754944e-38, %v391
    %v393 = vsel %vm390, %v392, %v388
    %v394 = vmul.f32 1.0, %v393
    %v395 = vrcp.pop %v295
    %v396 = vmul.f32 %v295, %v395
    %v397 = vsub.f32 1.0, %v396
    %v398 = vmul.f32 %v395, %v397
    %v399 = vadd.f32 %v395, %v398
    %vm400 = vweird.f32 %v295
    %vm401 = vweird.f32 %v395
    %vm402 = vmor %vm400, %vm401
    %v403 = vsel %vm402, %v395, %v399
    %v404 = vand.u32 2147483647, %v295
    %vm405 = vcmp.eq.f32.partialorder %v404, 8.507059e+37
    %v406 = vand.u32 %v295, 2147483648
    %v407 = vor.u32 1.1754944e-38, %v406
    %v408 = vsel %vm405, %v407, %v403
    %v409 = vmul.f32 1.0, %v408
    %v410 = vrcp.pop %v296
    %v411 = vmul.f32 %v296, %v410
    %v412 = vsub.f32 1.0, %v411
    %v413 = vmul.f32 %v410, %v412
    %v414 = vadd.f32 %v410, %v413
    %vm415 = vweird.f32 %v296
    %vm416 = vweird.f32 %v410
    %vm417 = vmor %vm415, %vm416
    %v418 = vsel %vm417, %v410, %v414
    %v419 = vand.u32 2147483647, %v296
    %vm420 = vcmp.eq.f32.partialorder %v419, 8.507059e+37
    %v421 = vand.u32 %v296, 2147483648
    %v422 = vor.u32 1.1754944e-38, %v421
    %v423 = vsel %vm420, %v422, %v418
    %v424 = vmul.f32 1.0, %v423
    %v425 = vrcp.pop %v297
    %v426 = vmul.f32 %v297, %v425
    %v427 = vsub.f32 1.0, %v426
    %v428 = vmul.f32 %v425, %v427
    %v429 = vadd.f32 %v425, %v428
    %vm430 = vweird.f32 %v297
    %vm431 = vweird.f32 %v425
    %vm432 = vmor %vm430, %vm431
    %v433 = vsel %vm432, %v425, %v429
    %v434 = vand.u32 2147483647, %v297
    %vm435 = vcmp.eq.f32.partialorder %v434, 8.507059e+37
    %v436 = vand.u32 %v297, 2147483648
    %v437 = vor.u32 1.1754944e-38, %v436
    %v438 = vsel %vm435, %v437, %v433
    %v439 = vmul.f32 1.0, %v438
    %v440 = vrcp.pop %v298
    %v441 = vmul.f32 %v298, %v440
    %v442 = vsub.f32 1.0, %v441
    %v443 = vmul.f32 %v440, %v442
    %v444 = vadd.f32 %v440, %v443
    %vm445 = vweird.f32 %v298
    %vm446 = vweird.f32 %v440
    %vm447 = vmor %vm445, %vm446
    %v448 = vsel %vm447, %v440, %v444
    %v449 = vand.u32 2147483647, %v298
    %vm450 = vcmp.eq.f32.partialorder %v449, 8.507059e+37
    %v451 = vand.u32 %v298, 2147483648
    %v452 = vor.u32 1.1754944e-38, %v451
    %v453 = vsel %vm450, %v452, %v448
    %v454 = vmul.f32 1.0, %v453
    %v455 = vrcp.pop %v299
    %v456 = vmul.f32 %v299, %v455
    %v457 = vsub.f32 1.0, %v456
    %v458 = vmul.f32 %v455, %v457
    %v459 = vadd.f32 %v455, %v458
    %vm460 = vweird.f32 %v299
    %vm461 = vweird.f32 %v455
    %vm462 = vmor %vm460, %vm461
    %v463 = vsel %vm462, %v455, %v459
    %v464 = vand.u32 2147483647, %v299
    %vm465 = vcmp.eq.f32.partialorder %v464, 8.507059e+37
    %v466 = vand.u32 %v299, 2147483648
    %v467 = vor.u32 1.1754944e-38, %v466
    %v468 = vsel %vm465, %v467, %v463
    %v469 = vmul.f32 1.0, %v468
    %v470 = vrcp.pop %v300
    %v471 = vmul.f32 %v300, %v470
    %v472 = vsub.f32 1.0, %v471
    %v473 = vmul.f32 %v470, %v472
    %v474 = vadd.f32 %v470, %v473
    %vm475 = vweird.f32 %v300
    %vm476 = vweird.f32 %v470
    %vm477 = vmor %vm475, %vm476
    %v478 = vsel %vm477, %v470, %v474
    %v479 = vand.u32 2147483647, %v300
    %vm480 = vcmp.eq.f32.partialorder %v479, 8.507059e+37
    %v481 = vand.u32 %v300, 2147483648
    %v482 = vor.u32 1.1754944e-38, %v481
    %v483 = vsel %vm480, %v482, %v478
    %v484 = vmul.f32 1.0, %v483
    %v485 = vrcp.pop %v301
    %v486 = vmul.f32 %v301, %v485
    %v487 = vsub.f32 1.0, %v486
    %v488 = vmul.f32 %v485, %v487
    %v489 = vadd.f32 %v485, %v488
    %vm490 = vweird.f32 %v301
    %vm491 = vweird.f32 %v485
    %vm492 = vmor %vm490, %vm491
    %v493 = vsel %vm492, %v485, %v489
    %v494 = vand.u32 2147483647, %v301
    %vm495 = vcmp.eq.f32.partialorder %v494, 8.507059e+37
    %v496 = vand.u32 %v301, 2147483648
    %v497 = vor.u32 1.1754944e-38, %v496
    %v498 = vsel %vm495, %v497, %v493
    %v499 = vmul.f32 1.0, %v498
    %v500 = vrcp.pop %v302
    %v501 = vmul.f32 %v302, %v500
    %v502 = vsub.f32 1.0, %v501
    %v503 = vmul.f32 %v500, %v502
    %v504 = vadd.f32 %v500, %v503
    %vm505 = vweird.f32 %v302
    %vm506 = vweird.f32 %v500
    %vm507 = vmor %vm505, %vm506
    %v508 = vsel %vm507, %v500, %v504
    %v509 = vand.u32 2147483647, %v302
    %vm510 = vcmp.eq.f32.partialorder %v509, 8.507059e+37
    %v511 = vand.u32 %v302, 2147483648
    %v512 = vor.u32 1.1754944e-38, %v511
    %v513 = vsel %vm510, %v512, %v508
    %v514 = vmul.f32 1.0, %v513
    %v515 = vrcp.pop %v303
    %v516 = vmul.f32 %v303, %v515
    %v517 = vsub.f32 1.0, %v516
    %v518 = vmul.f32 %v515, %v517
    %v519 = vadd.f32 %v515, %v518
    %vm520 = vweird.f32 %v303
    %vm521 = vweird.f32 %v515
    %vm522 = vmor %vm520, %vm521
    %v523 = vsel %vm522, %v515, %v519
    %v524 = vand.u32 2147483647, %v303
    %vm525 = vcmp.eq.f32.partialorder %v524, 8.507059e+37
    %v526 = vand.u32 %v303, 2147483648
    %v527 = vor.u32 1.1754944e-38, %v526
    %v528 = vsel %vm525, %v527, %v523
    %v529 = vmul.f32 1.0, %v528
    %v530 = vrcp.pop %v304
    %v531 = vmul.f32 %v304, %v530
    %v532 = vsub.f32 1.0, %v531
    %v533 = vmul.f32 %v530, %v532
    %v534 = vadd.f32 %v530, %v533
    %vm535 = vweird.f32 %v304
    %vm536 = vweird.f32 %v530
    %vm537 = vmor %vm535, %vm536
    %v538 = vsel %vm537, %v530, %v534
    %v539 = vand.u32 2147483647, %v304
    %vm540 = vcmp.eq.f32.partialorder %v539, 8.507059e+37
    %v541 = vand.u32 %v304, 2147483648
    %v542 = vor.u32 1.1754944e-38, %v541
    %v543 = vsel %vm540, %v542, %v538
    %v544 = vmul.f32 1.0, %v543
    %vm545 = vcmp.ge.f32.partialorder %v178, 0.0
    %vm546 = vcmp.ge.f32.partialorder %v181, 0.0
    %vm547 = vcmp.ge.f32.partialorder %v184, 0.0
    %vm548 = vcmp.ge.f32.partialorder %v187, 0.0
    %vm549 = vcmp.ge.f32.partialorder %v190, 0.0
    %vm550 = vcmp.ge.f32.partialorder %v193, 0.0
    %vm551 = vcmp.ge.f32.partialorder %v196, 0.0
    %vm552 = vcmp.ge.f32.partialorder %v199, 0.0
    %vm553 = vcmp.ge.f32.partialorder %v202, 0.0
    %vm554 = vcmp.ge.f32.partialorder %v205, 0.0
    %vm555 = vcmp.ge.f32.partialorder %v208, 0.0
    %vm556 = vcmp.ge.f32.partialorder %v211, 0.0
    %vm557 = vcmp.ge.f32.partialorder %v214, 0.0
    %vm558 = vcmp.ge.f32.partialorder %v217, 0.0
    %vm559 = vcmp.ge.f32.partialorder %v220, 0.0
    %vm560 = vcmp.ge.f32.partialorder %v223, 0.0
    %v561 = vmul.f32 %v258, %v319
    %v562 = vmul.f32 %v260, %v334
    %v563 = vmul.f32 %v262, %v349
    %v564 = vmul.f32 %v264, %v364
    %v565 = vmul.f32 %v266, %v379
    %v566 = vmul.f32 %v268, %v394
    %v567 = vmul.f32 %v270, %v409
    %v568 = vmul.f32 %v272, %v424
    %v569 = vmul.f32 %v274, %v439
    %v570 = vmul.f32 %v276, %v454
    %v571 = vmul.f32 %v278, %v469
    %v572 = vmul.f32 %v280, %v484
    %v573 = vmul.f32 %v282, %v499
    %v574 = vmul.f32 %v284, %v514
    %v575 = vmul.f32 %v286, %v529
    %v576 = vmul.f32 %v288, %v544
    %v577 = vsel %vm545, %v319, %v561
    %v578 = vsel %vm546, %v334, %v562
    %v579 = vsel %vm547, %v349, %v563
    %v580 = vsel %vm548, %v364, %v564
    %v581 = vsel %vm549, %v379, %v565
    %v582 = vsel %vm550, %v394, %v566
    %v583 = vsel %vm551, %v409, %v567
    %v584 = vsel %vm552, %v424, %v568
    %v585 = vsel %vm553, %v439, %v569
    %v586 = vsel %vm554, %v454, %v570
    %v587 = vsel %vm555, %v469, %v571
    %v588 = vsel %vm556, %v484, %v572
    %v589 = vsel %vm557, %v499, %v573
    %v590 = vsel %vm558, %v514, %v574
    %v591 = vsel %vm559, %v529, %v575
    %v592 = vsel %vm560, %v544, %v576
    %v593 = vmul.f32 %v178, %v577
    %v594 = vmul.f32 %v181, %v578
    %v595 = vmul.f32 %v184, %v579
    %v596 = vmul.f32 %v187, %v580
    %v597 = vmul.f32 %v190, %v581
    %v598 = vmul.f32 %v193, %v582
    %v599 = vmul.f32 %v196, %v583
    %v600 = vmul.f32 %v199, %v584
    %v601 = vmul.f32 %v202, %v585
    %v602 = vmul.f32 %v205, %v586
    %v603 = vmul.f32 %v208, %v587
    %v604 = vmul.f32 %v211, %v588
    %v605 = vmul.f32 %v214, %v589
    %v606 = vmul.f32 %v217, %v590
    %v607 = vmul.f32 %v220, %v591
    %v608 = vmul.f32 %v223, %v592
    %v609 = vld [vmem:[%s4] sm:$0xf]
    %v610 = vld [vmem:[%s4 + $0x4] sm:$0xf]
    %v611 = vld [vmem:[%s4 + $0x8] sm:$0xf]
    %v612 = vld [vmem:[%s4 + $0xc] sm:$0xf]
    %v613 = vld [vmem:[%s4 + $0x10] sm:$0xf]
    %v614 = vld [vmem:[%s4 + $0x14] sm:$0xf]
    %v615 = vld [vmem:[%s4 + $0x18] sm:$0xf]
    %v616 = vld [vmem:[%s4 + $0x1c] sm:$0xf]
    %v617 = vld [vmem:[%s4 + $0x20] sm:$0xf]
    %v618 = vld [vmem:[%s4 + $0x24] sm:$0xf]
    %v619 = vld [vmem:[%s4 + $0x28] sm:$0xf]
    %v620 = vld [vmem:[%s4 + $0x2c] sm:$0xf]
    %v621 = vld [vmem:[%s4 + $0x30] sm:$0xf]
    %v622 = vld [vmem:[%s4 + $0x34] sm:$0xf]
    %v623 = vld [vmem:[%s4 + $0x38] sm:$0xf]
    %v624 = vld [vmem:[%s4 + $0x3c] sm:$0xf]
    %v625 = vld [vmem:[%s4 + $0x40] sm:$0xf]
    %v626 = vld [vmem:[%s4 + $0x44] sm:$0xf]
    %v627 = vld [vmem:[%s4 + $0x48] sm:$0xf]
    %v628 = vld [vmem:[%s4 + $0x4c] sm:$0xf]
    %v629 = vld [vmem:[%s4 + $0x50] sm:$0xf]
    %v630 = vld [vmem:[%s4 + $0x54] sm:$0xf]
    %v631 = vld [vmem:[%s4 + $0x58] sm:$0xf]
    %v632 = vld [vmem:[%s4 + $0x5c] sm:$0xf]
    %v633 = vld [vmem:[%s4 + $0x60] sm:$0xf]
    %v634 = vld [vmem:[%s4 + $0x64] sm:$0xf]
    %v635 = vld [vmem:[%s4 + $0x68] sm:$0xf]
    %v636 = vld [vmem:[%s4 + $0x6c] sm:$0xf]
    %v637 = vld [vmem:[%s4 + $0x70] sm:$0xf]
    %v638 = vld [vmem:[%s4 + $0x74] sm:$0xf]
    %v639 = vld [vmem:[%s4 + $0x78] sm:$0xf]
    %v640 = vld [vmem:[%s4 + $0x7c] sm:$0xf]
    %v641 = vld [vmem:[%s4 + $0x80] sm:$0xf]
    %v642 = vld [vmem:[%s4 + $0x84] sm:$0xf]
    %v643 = vld [vmem:[%s4 + $0x88] sm:$0xf]
    %v644 = vld [vmem:[%s4 + $0x8c] sm:$0xf]
    %v645 = vld [vmem:[%s4 + $0x90] sm:$0xf]
    %v646 = vld [vmem:[%s4 + $0x94] sm:$0xf]
    %v647 = vld [vmem:[%s4 + $0x98] sm:$0xf]
    %v648 = vld [vmem:[%s4 + $0x9c] sm:$0xf]
    %v649 = vld [vmem:[%s4 + $0xa0] sm:$0xf]
    %v650 = vld [vmem:[%s4 + $0xa4] sm:$0xf]
    %v651 = vld [vmem:[%s4 + $0xa8] sm:$0xf]
    %v652 = vld [vmem:[%s4 + $0xac] sm:$0xf]
    %v653 = vld [vmem:[%s4 + $0xb0] sm:$0xf]
    %v654 = vld [vmem:[%s4 + $0xb4] sm:$0xf]
    %v655 = vld [vmem:[%s4 + $0xb8] sm:$0xf]
    %v656 = vld [vmem:[%s4 + $0xbc] sm:$0xf]
    %v657 = vld [vmem:[%s4 + $0xc0] sm:$0xf]
    %v658 = vld [vmem:[%s4 + $0xc4] sm:$0xf]
    %v659 = vld [vmem:[%s4 + $0xc8] sm:$0xf]
    %v660 = vld [vmem:[%s4 + $0xcc] sm:$0xf]
    %v661 = vld [vmem:[%s4 + $0xd0] sm:$0xf]
    %v662 = vld [vmem:[%s4 + $0xd4] sm:$0xf]
    %v663 = vld [vmem:[%s4 + $0xd8] sm:$0xf]
    %v664 = vld [vmem:[%s4 + $0xdc] sm:$0xf]
    %v665 = vld [vmem:[%s4 + $0xe0] sm:$0xf]
    %v666 = vld [vmem:[%s4 + $0xe4] sm:$0xf]
    %v667 = vld [vmem:[%s4 + $0xe8] sm:$0xf]
    %v668 = vld [vmem:[%s4 + $0xec] sm:$0xf]
    %v669 = vld [vmem:[%s4 + $0xf0] sm:$0xf]
    %v670 = vld [vmem:[%s4 + $0xf4] sm:$0xf]
    %v671 = vld [vmem:[%s4 + $0xf8] sm:$0xf]
    %v672 = vld [vmem:[%s4 + $0xfc] sm:$0xf]
    %v673 = vld [vmem:[%s4 + $0x100] sm:$0xf]
    %v674 = vld [vmem:[%s4 + $0x104] sm:$0xf]
    %v675 = vld [vmem:[%s4 + $0x108] sm:$0xf]
    %v676 = vld [vmem:[%s4 + $0x10c] sm:$0xf]
    %v677 = vld [vmem:[%s4 + $0x110] sm:$0xf]
    %v678 = vld [vmem:[%s4 + $0x114] sm:$0xf]
    %v679 = vld [vmem:[%s4 + $0x118] sm:$0xf]
    %v680 = vld [vmem:[%s4 + $0x11c] sm:$0xf]
    %v681 = vld [vmem:[%s4 + $0x120] sm:$0xf]
    %v682 = vld [vmem:[%s4 + $0x124] sm:$0xf]
    %v683 = vld [vmem:[%s4 + $0x128] sm:$0xf]
    %v684 = vld [vmem:[%s4 + $0x12c] sm:$0xf]
    %v685 = vld [vmem:[%s4 + $0x130] sm:$0xf]
    %v686 = vld [vmem:[%s4 + $0x134] sm:$0xf]
    %v687 = vld [vmem:[%s4 + $0x138] sm:$0xf]
    %v688 = vld [vmem:[%s4 + $0x13c] sm:$0xf]
    %v689 = vld [vmem:[%s4 + $0x140] sm:$0xf]
    %v690 = vld [vmem:[%s4 + $0x144] sm:$0xf]
    %v691 = vld [vmem:[%s4 + $0x148] sm:$0xf]
    %v692 = vld [vmem:[%s4 + $0x14c] sm:$0xf]
    %v693 = vld [vmem:[%s4 + $0x150] sm:$0xf]
    %v694 = vld [vmem:[%s4 + $0x154] sm:$0xf]
    %v695 = vld [vmem:[%s4 + $0x158] sm:$0xf]
    %v696 = vld [vmem:[%s4 + $0x15c] sm:$0xf]
    %v697 = vld [vmem:[%s4 + $0x160] sm:$0xf]
    %v698 = vld [vmem:[%s4 + $0x164] sm:$0xf]
    %v699 = vld [vmem:[%s4 + $0x168] sm:$0xf]
    %v700 = vld [vmem:[%s4 + $0x16c] sm:$0xf]
    %v701 = vld [vmem:[%s4 + $0x170] sm:$0xf]
    %v702 = vld [vmem:[%s4 + $0x174] sm:$0xf]
    %v703 = vld [vmem:[%s4 + $0x178] sm:$0xf]
    %v704 = vld [vmem:[%s4 + $0x17c] sm:$0xf]
    %v705 = vld [vmem:[%s4 + $0x180] sm:$0xf]
    %v706 = vld [vmem:[%s4 + $0x184] sm:$0xf]
    %v707 = vld [vmem:[%s4 + $0x188] sm:$0xf]
    %v708 = vld [vmem:[%s4 + $0x18c] sm:$0xf]
    %v709 = vld [vmem:[%s4 + $0x190] sm:$0xf]
    %v710 = vld [vmem:[%s4 + $0x194] sm:$0xf]
    %v711 = vld [vmem:[%s4 + $0x198] sm:$0xf]
    %v712 = vld [vmem:[%s4 + $0x19c] sm:$0xf]
    %v713 = vld [vmem:[%s4 + $0x1a0] sm:$0xf]
    %v714 = vld [vmem:[%s4 + $0x1a4] sm:$0xf]
    %v715 = vld [vmem:[%s4 + $0x1a8] sm:$0xf]
    %v716 = vld [vmem:[%s4 + $0x1ac] sm:$0xf]
    %v717 = vld [vmem:[%s4 + $0x1b0] sm:$0xf]
    %v718 = vld [vmem:[%s4 + $0x1b4] sm:$0xf]
    %v719 = vld [vmem:[%s4 + $0x1b8] sm:$0xf]
    %v720 = vld [vmem:[%s4 + $0x1bc] sm:$0xf]
    %v721 = vld [vmem:[%s4 + $0x1c0] sm:$0xf]
    %v722 = vld [vmem:[%s4 + $0x1c4] sm:$0xf]
    %v723 = vld [vmem:[%s4 + $0x1c8] sm:$0xf]
    %v724 = vld [vmem:[%s4 + $0x1cc] sm:$0xf]
    %v725 = vld [vmem:[%s4 + $0x1d0] sm:$0xf]
    %v726 = vld [vmem:[%s4 + $0x1d4] sm:$0xf]
    %v727 = vld [vmem:[%s4 + $0x1d8] sm:$0xf]
    %v728 = vld [vmem:[%s4 + $0x1dc] sm:$0xf]
    %v729 = vld [vmem:[%s4 + $0x1e0] sm:$0xf]
    %v730 = vld [vmem:[%s4 + $0x1e4] sm:$0xf]
    %v731 = vld [vmem:[%s4 + $0x1e8] sm:$0xf]
    %v732 = vld [vmem:[%s4 + $0x1ec] sm:$0xf]
    %v733 = vld [vmem:[%s4 + $0x1f0] sm:$0xf]
    %v734 = vld [vmem:[%s4 + $0x1f4] sm:$0xf]
    %v735 = vld [vmem:[%s4 + $0x1f8] sm:$0xf]
    %v736 = vld [vmem:[%s4 + $0x1fc] sm:$0xf]
    %v737 = vld [vmem:[%s4 + $0x200] sm:$0xf]
    %v738 = vld [vmem:[%s4 + $0x204] sm:$0xf]
    %v739 = vld [vmem:[%s4 + $0x208] sm:$0xf]
    %v740 = vld [vmem:[%s4 + $0x20c] sm:$0xf]
    %v741 = vld [vmem:[%s4 + $0x210] sm:$0xf]
    %v742 = vld [vmem:[%s4 + $0x214] sm:$0xf]
    %v743 = vld [vmem:[%s4 + $0x218] sm:$0xf]
    %v744 = vld [vmem:[%s4 + $0x21c] sm:$0xf]
    %v745 = vld [vmem:[%s4 + $0x220] sm:$0xf]
    %v746 = vld [vmem:[%s4 + $0x224] sm:$0xf]
    %v747 = vld [vmem:[%s4 + $0x228] sm:$0xf]
    %v748 = vld [vmem:[%s4 + $0x22c] sm:$0xf]
    %v749 = vld [vmem:[%s4 + $0x230] sm:$0xf]
    %v750 = vld [vmem:[%s4 + $0x234] sm:$0xf]
    %v751 = vld [vmem:[%s4 + $0x238] sm:$0xf]
    %v752 = vld [vmem:[%s4 + $0x23c] sm:$0xf]
    %v753 = vunpack.c.l.bf16 %v609
    %v754 = vunpack.c.l.bf16 %v610
    %v755 = vunpack.c.l.bf16 %v611
    %v756 = vunpack.c.l.bf16 %v612
    %v757 = vunpack.c.l.bf16 %v613
    %v758 = vunpack.c.l.bf16 %v614
    %v759 = vunpack.c.l.bf16 %v615
    %v760 = vunpack.c.l.bf16 %v616
    %v761 = vunpack.c.l.bf16 %v617
    %v762 = vunpack.c.l.bf16 %v618
    %v763 = vunpack.c.l.bf16 %v619
    %v764 = vunpack.c.l.bf16 %v620
    %v765 = vunpack.c.l.bf16 %v621
    %v766 = vunpack.c.l.bf16 %v622
    %v767 = vunpack.c.l.bf16 %v623
    %v768 = vunpack.c.l.bf16 %v624
    %v769 = vunpack.c.l.bf16 %v625
    %v770 = vunpack.c.l.bf16 %v626
    %v771 = vunpack.c.l.bf16 %v627
    %v772 = vunpack.c.l.bf16 %v628
    %v773 = vunpack.c.l.bf16 %v629
    %v774 = vunpack.c.l.bf16 %v630
    %v775 = vunpack.c.l.bf16 %v631
    %v776 = vunpack.c.l.bf16 %v632
    %v777 = vunpack.c.l.bf16 %v633
    %v778 = vunpack.c.l.bf16 %v634
    %v779 = vunpack.c.l.bf16 %v635
    %v780 = vunpack.c.l.bf16 %v636
    %v781 = vunpack.c.l.bf16 %v637
    %v782 = vunpack.c.l.bf16 %v638
    %v783 = vunpack.c.l.bf16 %v639
    %v784 = vunpack.c.l.bf16 %v640
    %v785 = vunpack.c.l.bf16 %v641
    %v786 = vunpack.c.l.bf16 %v642
    %v787 = vunpack.c.l.bf16 %v643
    %v788 = vunpack.c.l.bf16 %v644
    %v789 = vunpack.c.l.bf16 %v645
    %v790 = vunpack.c.l.bf16 %v646
    %v791 = vunpack.c.l.bf16 %v647
    %v792 = vunpack.c.l.bf16 %v648
    %v793 = vunpack.c.l.bf16 %v649
    %v794 = vunpack.c.l.bf16 %v650
    %v795 = vunpack.c.l.bf16 %v651
    %v796 = vunpack.c.l.bf16 %v652
    %v797 = vunpack.c.l.bf16 %v653
    %v798 = vunpack.c.l.bf16 %v654
    %v799 = vunpack.c.l.bf16 %v655
    %v800 = vunpack.c.l.bf16 %v656
    %v801 = vunpack.c.l.bf16 %v657
    %v802 = vunpack.c.l.bf16 %v658
    %v803 = vunpack.c.l.bf16 %v659
    %v804 = vunpack.c.l.bf16 %v660
    %v805 = vunpack.c.l.bf16 %v661
    %v806 = vunpack.c.l.bf16 %v662
    %v807 = vunpack.c.l.bf16 %v663
    %v808 = vunpack.c.l.bf16 %v664
    %v809 = vunpack.c.l.bf16 %v665
    %v810 = vunpack.c.l.bf16 %v666
    %v811 = vunpack.c.l.bf16 %v667
    %v812 = vunpack.c.l.bf16 %v668
    %v813 = vunpack.c.l.bf16 %v669
    %v814 = vunpack.c.l.bf16 %v670
    %v815 = vunpack.c.l.bf16 %v671
    %v816 = vunpack.c.l.bf16 %v672
    %v817 = vunpack.c.l.bf16 %v673
    %v818 = vunpack.c.l.bf16 %v674
    %v819 = vunpack.c.l.bf16 %v675
    %v820 = vunpack.c.l.bf16 %v676
    %v821 = vunpack.c.l.bf16 %v677
    %v822 = vunpack.c.l.bf16 %v678
    %v823 = vunpack.c.l.bf16 %v679
    %v824 = vunpack.c.l.bf16 %v680
    %v825 = vunpack.c.l.bf16 %v681
    %v826 = vunpack.c.l.bf16 %v682
    %v827 = vunpack.c.l.bf16 %v683
    %v828 = vunpack.c.l.bf16 %v684
    %v829 = vunpack.c.l.bf16 %v685
    %v830 = vunpack.c.l.bf16 %v686
    %v831 = vunpack.c.l.bf16 %v687
    %v832 = vunpack.c.l.bf16 %v688
    %v833 = vunpack.c.l.bf16 %v689
    %v834 = vunpack.c.l.bf16 %v690
    %v835 = vunpack.c.l.bf16 %v691
    %v836 = vunpack.c.l.bf16 %v692
    %v837 = vunpack.c.l.bf16 %v693
    %v838 = vunpack.c.l.bf16 %v694
    %v839 = vunpack.c.l.bf16 %v695
    %v840 = vunpack.c.l.bf16 %v696
    %v841 = vunpack.c.l.bf16 %v697
    %v842 = vunpack.c.l.bf16 %v698
    %v843 = vunpack.c.l.bf16 %v699
    %v844 = vunpack.c.l.bf16 %v700
    %v845 = vunpack.c.l.bf16 %v701
    %v846 = vunpack.c.l.bf16 %v702
    %v847 = vunpack.c.l.bf16 %v703
    %v848 = vunpack.c.l.bf16 %v704
    %v849 = vunpack.c.l.bf16 %v705
    %v850 = vunpack.c.l.bf16 %v706
    %v851 = vunpack.c.l.bf16 %v707
    %v852 = vunpack.c.l.bf16 %v708
    %v853 = vunpack.c.l.bf16 %v709
    %v854 = vunpack.c.l.bf16 %v710
    %v855 = vunpack.c.l.bf16 %v711
    %v856 = vunpack.c.l.bf16 %v712
    %v857 = vunpack.c.l.bf16 %v713
    %v858 = vunpack.c.l.bf16 %v714
    %v859 = vunpack.c.l.bf16 %v715
    %v860 = vunpack.c.l.bf16 %v716
    %v861 = vunpack.c.l.bf16 %v717
    %v862 = vunpack.c.l.bf16 %v718
    %v863 = vunpack.c.l.bf16 %v719
    %v864 = vunpack.c.l.bf16 %v720
    %v865 = vunpack.c.l.bf16 %v721
    %v866 = vunpack.c.l.bf16 %v722
    %v867 = vunpack.c.l.bf16 %v723
    %v868 = vunpack.c.l.bf16 %v724
    %v869 = vunpack.c.l.bf16 %v725
    %v870 = vunpack.c.l.bf16 %v726
    %v871 = vunpack.c.l.bf16 %v727
    %v872 = vunpack.c.l.bf16 %v728
    %v873 = vunpack.c.l.bf16 %v729
    %v874 = vunpack.c.l.bf16 %v730
    %v875 = vunpack.c.l.bf16 %v731
    %v876 = vunpack.c.l.bf16 %v732
    %v877 = vunpack.c.l.bf16 %v733
    %v878 = vunpack.c.l.bf16 %v734
    %v879 = vunpack.c.l.bf16 %v735
    %v880 = vunpack.c.l.bf16 %v736
    %v881 = vunpack.c.l.bf16 %v737
    %v882 = vunpack.c.l.bf16 %v738
    %v883 = vunpack.c.l.bf16 %v739
    %v884 = vunpack.c.l.bf16 %v740
    %v885 = vunpack.c.l.bf16 %v741
    %v886 = vunpack.c.l.bf16 %v742
    %v887 = vunpack.c.l.bf16 %v743
    %v888 = vunpack.c.l.bf16 %v744
    %v889 = vunpack.c.l.bf16 %v745
    %v890 = vunpack.c.l.bf16 %v746
    %v891 = vunpack.c.l.bf16 %v747
    %v892 = vunpack.c.l.bf16 %v748
    %v893 = vunpack.c.l.bf16 %v749
    %v894 = vunpack.c.l.bf16 %v750
    %v895 = vunpack.c.l.bf16 %v751
    %v896 = vunpack.c.l.bf16 %v752
    %v897 = vld [vmem:[%s3 + $0x30] sm:$0xff]
    %v898 = vld [vmem:[%s3 + $0x38] sm:$0xff]
    %v899 = vld [vmem:[%s3 + $0x40] sm:$0xff]
    %v900 = vld [vmem:[%s3 + $0x48] sm:$0xff]
    %v901 = vld [vmem:[%s3 + $0x50] sm:$0xff]
    %v902 = vld [vmem:[%s3 + $0x58] sm:$0xff]
    %v903 = vld [vmem:[%s3 + $0x60] sm:$0xff]
    %v904 = vld [vmem:[%s3 + $0x68] sm:$0xff]
    %v905 = vld [vmem:[%s3 + $0x70] sm:$0xff]
    %v906 = vld [vmem:[%s3 + $0x78] sm:$0xff]
    %v907 = vld [vmem:[%s3 + $0x80] sm:$0xff]
    %v908 = vld [vmem:[%s3 + $0x88] sm:$0xff]
    %v909 = vld [vmem:[%s3 + $0x90] sm:$0xff]
    %v910 = vld [vmem:[%s3 + $0x98] sm:$0xff]
    %v911 = vld [vmem:[%s3 + $0xa0] sm:$0xff]
    %v912 = vld [vmem:[%s3 + $0xa8] sm:$0xff]
    %v913 = vld [vmem:[%s3 + $0xb0] sm:$0xff]
    %v914 = vld [vmem:[%s3 + $0xb8] sm:$0xff]
    %915 = vmatpush.msra.mxu0 %v608
    %916 = vmatpush.msra.mxu0 %v607
    %917 = vmatpush.msra.mxu0 %v606
    %918 = vmatpush.msra.mxu0 %v605
    %919 = vmatpush.msra.mxu0 %v604
    %920 = vmatpush.msra.mxu0 %v603
    %921 = vmatpush.msra.mxu0 %v602
    %922 = vmatpush.msra.mxu0 %v601
    %923 = vmatpush.msra.mxu0 %v600
    %924 = vmatpush.msra.mxu0 %v599
    %925 = vmatpush.msra.mxu0 %v598
    %926 = vmatpush.msra.mxu0 %v597
    %927 = vmatpush.msra.mxu0 %v596
    %928 = vmatpush.msra.mxu0 %v595
    %929 = vmatpush.msra.mxu0 %v594
    %930 = vmatpush.msra.mxu0 %v593
    %931 = vmatmul.f32.gmra.mxu0 %v753
    %v932 = vpop.f32.mrf.mxu0
    %v933 = vadd.f32 0.0, %v932
    %934 = vmatmul.f32.gmra.mxu0 %v754
    %v935 = vpop.f32.mrf.mxu0
    %v936 = vadd.f32 0.0, %v935
    %937 = vmatmul.f32.gmra.mxu0 %v755
    %v938 = vpop.f32.mrf.mxu0
    %v939 = vadd.f32 0.0, %v938
    %940 = vmatmul.f32.gmra.mxu0 %v756
    %v941 = vpop.f32.mrf.mxu0
    %v942 = vadd.f32 0.0, %v941
    %943 = vmatmul.f32.gmra.mxu0 %v757
    %v944 = vpop.f32.mrf.mxu0
    %v945 = vadd.f32 0.0, %v944
    %946 = vmatmul.f32.gmra.mxu0 %v758
    %v947 = vpop.f32.mrf.mxu0
    %v948 = vadd.f32 0.0, %v947
    %949 = vmatmul.f32.gmra.mxu0 %v759
    %v950 = vpop.f32.mrf.mxu0
    %v951 = vadd.f32 0.0, %v950
    %952 = vmatmul.f32.gmra.mxu0 %v760
    %v953 = vpop.f32.mrf.mxu0
    %v954 = vadd.f32 0.0, %v953
    %955 = vmatmul.f32.gmra.mxu0 %v761
    %v956 = vpop.f32.mrf.mxu0
    %v957 = vadd.f32 0.0, %v956
    %958 = vmatmul.f32.gmra.mxu0 %v762
    %v959 = vpop.f32.mrf.mxu0
    %v960 = vadd.f32 0.0, %v959
    %961 = vmatmul.f32.gmra.mxu0 %v763
    %v962 = vpop.f32.mrf.mxu0
    %v963 = vadd.f32 0.0, %v962
    %964 = vmatmul.f32.gmra.mxu0 %v764
    %v965 = vpop.f32.mrf.mxu0
    %v966 = vadd.f32 0.0, %v965
    %967 = vmatmul.f32.gmra.mxu0 %v765
    %v968 = vpop.f32.mrf.mxu0
    %v969 = vadd.f32 0.0, %v968
    %970 = vmatmul.f32.gmra.mxu0 %v766
    %v971 = vpop.f32.mrf.mxu0
    %v972 = vadd.f32 0.0, %v971
    %973 = vmatmul.f32.gmra.mxu0 %v767
    %v974 = vpop.f32.mrf.mxu0
    %v975 = vadd.f32 0.0, %v974
    %976 = vmatmul.f32.gmra.mxu0 %v768
    %v977 = vpop.f32.mrf.mxu0
    %v978 = vadd.f32 0.0, %v977
    %979 = vmatmul.f32.gmra.mxu0 %v769
    %v980 = vpop.f32.mrf.mxu0
    %v981 = vadd.f32 0.0, %v980
    %982 = vmatmul.f32.gmra.mxu0 %v770
    %v983 = vpop.f32.mrf.mxu0
    %v984 = vadd.f32 0.0, %v983
    %985 = vmatmul.f32.gmra.mxu0 %v771
    %v986 = vpop.f32.mrf.mxu0
    %v987 = vadd.f32 0.0, %v986
    %988 = vmatmul.f32.gmra.mxu0 %v772
    %v989 = vpop.f32.mrf.mxu0
    %v990 = vadd.f32 0.0, %v989
    %991 = vmatmul.f32.gmra.mxu0 %v773
    %v992 = vpop.f32.mrf.mxu0
    %v993 = vadd.f32 0.0, %v992
    %994 = vmatmul.f32.gmra.mxu0 %v774
    %v995 = vpop.f32.mrf.mxu0
    %v996 = vadd.f32 0.0, %v995
    %997 = vmatmul.f32.gmra.mxu0 %v775
    %v998 = vpop.f32.mrf.mxu0
    %v999 = vadd.f32 0.0, %v998
    %1000 = vmatmul.f32.gmra.mxu0 %v776
    %v1001 = vpop.f32.mrf.mxu0
    %v1002 = vadd.f32 0.0, %v1001
    %1003 = vmatmul.f32.gmra.mxu0 %v777
    %v1004 = vpop.f32.mrf.mxu0
    %v1005 = vadd.f32 0.0, %v1004
    %1006 = vmatmul.f32.gmra.mxu0 %v778
    %v1007 = vpop.f32.mrf.mxu0
    %v1008 = vadd.f32 0.0, %v1007
    %1009 = vmatmul.f32.gmra.mxu0 %v779
    %v1010 = vpop.f32.mrf.mxu0
    %v1011 = vadd.f32 0.0, %v1010
    %1012 = vmatmul.f32.gmra.mxu0 %v780
    %v1013 = vpop.f32.mrf.mxu0
    %v1014 = vadd.f32 0.0, %v1013
    %1015 = vmatmul.f32.gmra.mxu0 %v781
    %v1016 = vpop.f32.mrf.mxu0
    %v1017 = vadd.f32 0.0, %v1016
    %1018 = vmatmul.f32.gmra.mxu0 %v782
    %v1019 = vpop.f32.mrf.mxu0
    %v1020 = vadd.f32 0.0, %v1019
    %1021 = vmatmul.f32.gmra.mxu0 %v783
    %v1022 = vpop.f32.mrf.mxu0
    %v1023 = vadd.f32 0.0, %v1022
    %1024 = vmatmul.f32.gmra.mxu0 %v784
    %v1025 = vpop.f32.mrf.mxu0
    %v1026 = vadd.f32 0.0, %v1025
    %1027 = vmatmul.f32.gmra.mxu0 %v785
    %v1028 = vpop.f32.mrf.mxu0
    %v1029 = vadd.f32 0.0, %v1028
    %1030 = vmatmul.f32.gmra.mxu0 %v786
    %v1031 = vpop.f32.mrf.mxu0
    %v1032 = vadd.f32 0.0, %v1031
    %1033 = vmatmul.f32.gmra.mxu0 %v787
    %v1034 = vpop.f32.mrf.mxu0
    %v1035 = vadd.f32 0.0, %v1034
    %1036 = vmatmul.f32.gmra.mxu0 %v788
    %v1037 = vpop.f32.mrf.mxu0
    %v1038 = vadd.f32 0.0, %v1037
    %1039 = vmatmul.f32.gmra.mxu0 %v789
    %v1040 = vpop.f32.mrf.mxu0
    %v1041 = vadd.f32 0.0, %v1040
    %1042 = vmatmul.f32.gmra.mxu0 %v790
    %v1043 = vpop.f32.mrf.mxu0
    %v1044 = vadd.f32 0.0, %v1043
    %1045 = vmatmul.f32.gmra.mxu0 %v791
    %v1046 = vpop.f32.mrf.mxu0
    %v1047 = vadd.f32 0.0, %v1046
    %1048 = vmatmul.f32.gmra.mxu0 %v792
    %v1049 = vpop.f32.mrf.mxu0
    %v1050 = vadd.f32 0.0, %v1049
    %1051 = vmatmul.f32.gmra.mxu0 %v793
    %v1052 = vpop.f32.mrf.mxu0
    %v1053 = vadd.f32 0.0, %v1052
    %1054 = vmatmul.f32.gmra.mxu0 %v794
    %v1055 = vpop.f32.mrf.mxu0
    %v1056 = vadd.f32 0.0, %v1055
    %1057 = vmatmul.f32.gmra.mxu0 %v795
    %v1058 = vpop.f32.mrf.mxu0
    %v1059 = vadd.f32 0.0, %v1058
    %1060 = vmatmul.f32.gmra.mxu0 %v796
    %v1061 = vpop.f32.mrf.mxu0
    %v1062 = vadd.f32 0.0, %v1061
    %1063 = vmatmul.f32.gmra.mxu0 %v797
    %v1064 = vpop.f32.mrf.mxu0
    %v1065 = vadd.f32 0.0, %v1064
    %1066 = vmatmul.f32.gmra.mxu0 %v798
    %v1067 = vpop.f32.mrf.mxu0
    %v1068 = vadd.f32 0.0, %v1067
    %1069 = vmatmul.f32.gmra.mxu0 %v799
    %v1070 = vpop.f32.mrf.mxu0
    %v1071 = vadd.f32 0.0, %v1070
    %1072 = vmatmul.f32.gmra.mxu0 %v800
    %v1073 = vpop.f32.mrf.mxu0
    %v1074 = vadd.f32 0.0, %v1073
    %1075 = vmatmul.f32.gmra.mxu0 %v801
    %v1076 = vpop.f32.mrf.mxu0
    %v1077 = vadd.f32 0.0, %v1076
    %1078 = vmatmul.f32.gmra.mxu0 %v802
    %v1079 = vpop.f32.mrf.mxu0
    %v1080 = vadd.f32 0.0, %v1079
    %1081 = vmatmul.f32.gmra.mxu0 %v803
    %v1082 = vpop.f32.mrf.mxu0
    %v1083 = vadd.f32 0.0, %v1082
    %1084 = vmatmul.f32.gmra.mxu0 %v804
    %v1085 = vpop.f32.mrf.mxu0
    %v1086 = vadd.f32 0.0, %v1085
    %1087 = vmatmul.f32.gmra.mxu0 %v805
    %v1088 = vpop.f32.mrf.mxu0
    %v1089 = vadd.f32 0.0, %v1088
    %1090 = vmatmul.f32.gmra.mxu0 %v806
    %v1091 = vpop.f32.mrf.mxu0
    %v1092 = vadd.f32 0.0, %v1091
    %1093 = vmatmul.f32.gmra.mxu0 %v807
    %v1094 = vpop.f32.mrf.mxu0
    %v1095 = vadd.f32 0.0, %v1094
    %1096 = vmatmul.f32.gmra.mxu0 %v808
    %v1097 = vpop.f32.mrf.mxu0
    %v1098 = vadd.f32 0.0, %v1097
    %1099 = vmatmul.f32.gmra.mxu0 %v809
    %v1100 = vpop.f32.mrf.mxu0
    %v1101 = vadd.f32 0.0, %v1100
    %1102 = vmatmul.f32.gmra.mxu0 %v810
    %v1103 = vpop.f32.mrf.mxu0
    %v1104 = vadd.f32 0.0, %v1103
    %1105 = vmatmul.f32.gmra.mxu0 %v811
    %v1106 = vpop.f32.mrf.mxu0
    %v1107 = vadd.f32 0.0, %v1106
    %1108 = vmatmul.f32.gmra.mxu0 %v812
    %v1109 = vpop.f32.mrf.mxu0
    %v1110 = vadd.f32 0.0, %v1109
    %1111 = vmatmul.f32.gmra.mxu0 %v813
    %v1112 = vpop.f32.mrf.mxu0
    %v1113 = vadd.f32 0.0, %v1112
    %1114 = vmatmul.f32.gmra.mxu0 %v814
    %v1115 = vpop.f32.mrf.mxu0
    %v1116 = vadd.f32 0.0, %v1115
    %1117 = vmatmul.f32.gmra.mxu0 %v815
    %v1118 = vpop.f32.mrf.mxu0
    %v1119 = vadd.f32 0.0, %v1118
    %1120 = vmatmul.f32.gmra.mxu0 %v816
    %v1121 = vpop.f32.mrf.mxu0
    %v1122 = vadd.f32 0.0, %v1121
    %1123 = vmatmul.f32.gmra.mxu0 %v817
    %v1124 = vpop.f32.mrf.mxu0
    %v1125 = vadd.f32 0.0, %v1124
    %1126 = vmatmul.f32.gmra.mxu0 %v818
    %v1127 = vpop.f32.mrf.mxu0
    %v1128 = vadd.f32 0.0, %v1127
    %1129 = vmatmul.f32.gmra.mxu0 %v819
    %v1130 = vpop.f32.mrf.mxu0
    %v1131 = vadd.f32 0.0, %v1130
    %1132 = vmatmul.f32.gmra.mxu0 %v820
    %v1133 = vpop.f32.mrf.mxu0
    %v1134 = vadd.f32 0.0, %v1133
    %1135 = vmatmul.f32.gmra.mxu0 %v821
    %v1136 = vpop.f32.mrf.mxu0
    %v1137 = vadd.f32 0.0, %v1136
    %1138 = vmatmul.f32.gmra.mxu0 %v822
    %v1139 = vpop.f32.mrf.mxu0
    %v1140 = vadd.f32 0.0, %v1139
    %1141 = vmatmul.f32.gmra.mxu0 %v823
    %v1142 = vpop.f32.mrf.mxu0
    %v1143 = vadd.f32 0.0, %v1142
    %1144 = vmatmul.f32.gmra.mxu0 %v824
    %v1145 = vpop.f32.mrf.mxu0
    %v1146 = vadd.f32 0.0, %v1145
    %1147 = vmatmul.f32.gmra.mxu0 %v825
    %v1148 = vpop.f32.mrf.mxu0
    %v1149 = vadd.f32 0.0, %v1148
    %1150 = vmatmul.f32.gmra.mxu0 %v826
    %v1151 = vpop.f32.mrf.mxu0
    %v1152 = vadd.f32 0.0, %v1151
    %1153 = vmatmul.f32.gmra.mxu0 %v827
    %v1154 = vpop.f32.mrf.mxu0
    %v1155 = vadd.f32 0.0, %v1154
    %1156 = vmatmul.f32.gmra.mxu0 %v828
    %v1157 = vpop.f32.mrf.mxu0
    %v1158 = vadd.f32 0.0, %v1157
    %1159 = vmatmul.f32.gmra.mxu0 %v829
    %v1160 = vpop.f32.mrf.mxu0
    %v1161 = vadd.f32 0.0, %v1160
    %1162 = vmatmul.f32.gmra.mxu0 %v830
    %v1163 = vpop.f32.mrf.mxu0
    %v1164 = vadd.f32 0.0, %v1163
    %1165 = vmatmul.f32.gmra.mxu0 %v831
    %v1166 = vpop.f32.mrf.mxu0
    %v1167 = vadd.f32 0.0, %v1166
    %1168 = vmatmul.f32.gmra.mxu0 %v832
    %v1169 = vpop.f32.mrf.mxu0
    %v1170 = vadd.f32 0.0, %v1169
    %1171 = vmatmul.f32.gmra.mxu0 %v833
    %v1172 = vpop.f32.mrf.mxu0
    %v1173 = vadd.f32 0.0, %v1172
    %1174 = vmatmul.f32.gmra.mxu0 %v834
    %v1175 = vpop.f32.mrf.mxu0
    %v1176 = vadd.f32 0.0, %v1175
    %1177 = vmatmul.f32.gmra.mxu0 %v835
    %v1178 = vpop.f32.mrf.mxu0
    %v1179 = vadd.f32 0.0, %v1178
    %1180 = vmatmul.f32.gmra.mxu0 %v836
    %v1181 = vpop.f32.mrf.mxu0
    %v1182 = vadd.f32 0.0, %v1181
    %1183 = vmatmul.f32.gmra.mxu0 %v837
    %v1184 = vpop.f32.mrf.mxu0
    %v1185 = vadd.f32 0.0, %v1184
    %1186 = vmatmul.f32.gmra.mxu0 %v838
    %v1187 = vpop.f32.mrf.mxu0
    %v1188 = vadd.f32 0.0, %v1187
    %1189 = vmatmul.f32.gmra.mxu0 %v839
    %v1190 = vpop.f32.mrf.mxu0
    %v1191 = vadd.f32 0.0, %v1190
    %1192 = vmatmul.f32.gmra.mxu0 %v840
    %v1193 = vpop.f32.mrf.mxu0
    %v1194 = vadd.f32 0.0, %v1193
    %1195 = vmatmul.f32.gmra.mxu0 %v841
    %v1196 = vpop.f32.mrf.mxu0
    %v1197 = vadd.f32 0.0, %v1196
    %1198 = vmatmul.f32.gmra.mxu0 %v842
    %v1199 = vpop.f32.mrf.mxu0
    %v1200 = vadd.f32 0.0, %v1199
    %1201 = vmatmul.f32.gmra.mxu0 %v843
    %v1202 = vpop.f32.mrf.mxu0
    %v1203 = vadd.f32 0.0, %v1202
    %1204 = vmatmul.f32.gmra.mxu0 %v844
    %v1205 = vpop.f32.mrf.mxu0
    %v1206 = vadd.f32 0.0, %v1205
    %1207 = vmatmul.f32.gmra.mxu0 %v845
    %v1208 = vpop.f32.mrf.mxu0
    %v1209 = vadd.f32 0.0, %v1208
    %1210 = vmatmul.f32.gmra.mxu0 %v846
    %v1211 = vpop.f32.mrf.mxu0
    %v1212 = vadd.f32 0.0, %v1211
    %1213 = vmatmul.f32.gmra.mxu0 %v847
    %v1214 = vpop.f32.mrf.mxu0
    %v1215 = vadd.f32 0.0, %v1214
    %1216 = vmatmul.f32.gmra.mxu0 %v848
    %v1217 = vpop.f32.mrf.mxu0
    %v1218 = vadd.f32 0.0, %v1217
    %1219 = vmatmul.f32.gmra.mxu0 %v849
    %v1220 = vpop.f32.mrf.mxu0
    %v1221 = vadd.f32 0.0, %v1220
    %1222 = vmatmul.f32.gmra.mxu0 %v850
    %v1223 = vpop.f32.mrf.mxu0
    %v1224 = vadd.f32 0.0, %v1223
    %1225 = vmatmul.f32.gmra.mxu0 %v851
    %v1226 = vpop.f32.mrf.mxu0
    %v1227 = vadd.f32 0.0, %v1226
    %1228 = vmatmul.f32.gmra.mxu0 %v852
    %v1229 = vpop.f32.mrf.mxu0
    %v1230 = vadd.f32 0.0, %v1229
    %1231 = vmatmul.f32.gmra.mxu0 %v853
    %v1232 = vpop.f32.mrf.mxu0
    %v1233 = vadd.f32 0.0, %v1232
    %1234 = vmatmul.f32.gmra.mxu0 %v854
    %v1235 = vpop.f32.mrf.mxu0
    %v1236 = vadd.f32 0.0, %v1235
    %1237 = vmatmul.f32.gmra.mxu0 %v855
    %v1238 = vpop.f32.mrf.mxu0
    %v1239 = vadd.f32 0.0, %v1238
    %1240 = vmatmul.f32.gmra.mxu0 %v856
    %v1241 = vpop.f32.mrf.mxu0
    %v1242 = vadd.f32 0.0, %v1241
    %1243 = vmatmul.f32.gmra.mxu0 %v857
    %v1244 = vpop.f32.mrf.mxu0
    %v1245 = vadd.f32 0.0, %v1244
    %1246 = vmatmul.f32.gmra.mxu0 %v858
    %v1247 = vpop.f32.mrf.mxu0
    %v1248 = vadd.f32 0.0, %v1247
    %1249 = vmatmul.f32.gmra.mxu0 %v859
    %v1250 = vpop.f32.mrf.mxu0
    %v1251 = vadd.f32 0.0, %v1250
    %1252 = vmatmul.f32.gmra.mxu0 %v860
    %v1253 = vpop.f32.mrf.mxu0
    %v1254 = vadd.f32 0.0, %v1253
    %1255 = vmatmul.f32.gmra.mxu0 %v861
    %v1256 = vpop.f32.mrf.mxu0
    %v1257 = vadd.f32 0.0, %v1256
    %1258 = vmatmul.f32.gmra.mxu0 %v862
    %v1259 = vpop.f32.mrf.mxu0
    %v1260 = vadd.f32 0.0, %v1259
    %1261 = vmatmul.f32.gmra.mxu0 %v863
    %v1262 = vpop.f32.mrf.mxu0
    %v1263 = vadd.f32 0.0, %v1262
    %1264 = vmatmul.f32.gmra.mxu0 %v864
    %v1265 = vpop.f32.mrf.mxu0
    %v1266 = vadd.f32 0.0, %v1265
    %1267 = vmatmul.f32.gmra.mxu0 %v865
    %v1268 = vpop.f32.mrf.mxu0
    %v1269 = vadd.f32 0.0, %v1268
    %1270 = vmatmul.f32.gmra.mxu0 %v866
    %v1271 = vpop.f32.mrf.mxu0
    %v1272 = vadd.f32 0.0, %v1271
    %1273 = vmatmul.f32.gmra.mxu0 %v867
    %v1274 = vpop.f32.mrf.mxu0
    %v1275 = vadd.f32 0.0, %v1274
    %1276 = vmatmul.f32.gmra.mxu0 %v868
    %v1277 = vpop.f32.mrf.mxu0
    %v1278 = vadd.f32 0.0, %v1277
    %1279 = vmatmul.f32.gmra.mxu0 %v869
    %v1280 = vpop.f32.mrf.mxu0
    %v1281 = vadd.f32 0.0, %v1280
    %1282 = vmatmul.f32.gmra.mxu0 %v870
    %v1283 = vpop.f32.mrf.mxu0
    %v1284 = vadd.f32 0.0, %v1283
    %1285 = vmatmul.f32.gmra.mxu0 %v871
    %v1286 = vpop.f32.mrf.mxu0
    %v1287 = vadd.f32 0.0, %v1286
    %1288 = vmatmul.f32.gmra.mxu0 %v872
    %v1289 = vpop.f32.mrf.mxu0
    %v1290 = vadd.f32 0.0, %v1289
    %1291 = vmatmul.f32.gmra.mxu0 %v873
    %v1292 = vpop.f32.mrf.mxu0
    %v1293 = vadd.f32 0.0, %v1292
    %1294 = vmatmul.f32.gmra.mxu0 %v874
    %v1295 = vpop.f32.mrf.mxu0
    %v1296 = vadd.f32 0.0, %v1295
    %1297 = vmatmul.f32.gmra.mxu0 %v875
    %v1298 = vpop.f32.mrf.mxu0
    %v1299 = vadd.f32 0.0, %v1298
    %1300 = vmatmul.f32.gmra.mxu0 %v876
    %v1301 = vpop.f32.mrf.mxu0
    %v1302 = vadd.f32 0.0, %v1301
    %1303 = vmatmul.f32.gmra.mxu0 %v877
    %v1304 = vpop.f32.mrf.mxu0
    %v1305 = vadd.f32 0.0, %v1304
    %1306 = vmatmul.f32.gmra.mxu0 %v878
    %v1307 = vpop.f32.mrf.mxu0
    %v1308 = vadd.f32 0.0, %v1307
    %1309 = vmatmul.f32.gmra.mxu0 %v879
    %v1310 = vpop.f32.mrf.mxu0
    %v1311 = vadd.f32 0.0, %v1310
    %1312 = vmatmul.f32.gmra.mxu0 %v880
    %v1313 = vpop.f32.mrf.mxu0
    %v1314 = vadd.f32 0.0, %v1313
    %1315 = vmatmul.f32.gmra.mxu0 %v881
    %v1316 = vpop.f32.mrf.mxu0
    %v1317 = vadd.f32 0.0, %v1316
    %1318 = vmatmul.f32.gmra.mxu0 %v882
    %v1319 = vpop.f32.mrf.mxu0
    %v1320 = vadd.f32 0.0, %v1319
    %1321 = vmatmul.f32.gmra.mxu0 %v883
    %v1322 = vpop.f32.mrf.mxu0
    %v1323 = vadd.f32 0.0, %v1322
    %1324 = vmatmul.f32.gmra.mxu0 %v884
    %v1325 = vpop.f32.mrf.mxu0
    %v1326 = vadd.f32 0.0, %v1325
    %1327 = vmatmul.f32.gmra.mxu0 %v885
    %v1328 = vpop.f32.mrf.mxu0
    %v1329 = vadd.f32 0.0, %v1328
    %1330 = vmatmul.f32.gmra.mxu0 %v886
    %v1331 = vpop.f32.mrf.mxu0
    %v1332 = vadd.f32 0.0, %v1331
    %1333 = vmatmul.f32.gmra.mxu0 %v887
    %v1334 = vpop.f32.mrf.mxu0
    %v1335 = vadd.f32 0.0, %v1334
    %1336 = vmatmul.f32.gmra.mxu0 %v888
    %v1337 = vpop.f32.mrf.mxu0
    %v1338 = vadd.f32 0.0, %v1337
    %1339 = vmatmul.f32.gmra.mxu0 %v889
    %v1340 = vpop.f32.mrf.mxu0
    %v1341 = vadd.f32 0.0, %v1340
    %1342 = vmatmul.f32.gmra.mxu0 %v890
    %v1343 = vpop.f32.mrf.mxu0
    %v1344 = vadd.f32 0.0, %v1343
    %1345 = vmatmul.f32.gmra.mxu0 %v891
    %v1346 = vpop.f32.mrf.mxu0
    %v1347 = vadd.f32 0.0, %v1346
    %1348 = vmatmul.f32.gmra.mxu0 %v892
    %v1349 = vpop.f32.mrf.mxu0
    %v1350 = vadd.f32 0.0, %v1349
    %1351 = vmatmul.f32.gmra.mxu0 %v893
    %v1352 = vpop.f32.mrf.mxu0
    %v1353 = vadd.f32 0.0, %v1352
    %1354 = vmatmul.f32.gmra.mxu0 %v894
    %v1355 = vpop.f32.mrf.mxu0
    %v1356 = vadd.f32 0.0, %v1355
    %1357 = vmatmul.f32.gmra.mxu0 %v895
    %v1358 = vpop.f32.mrf.mxu0
    %v1359 = vadd.f32 0.0, %v1358
    %1360 = vmatmul.f32.gmra.mxu0 %v896
    %v1361 = vpop.f32.mrf.mxu0
    %v1362 = vadd.f32 0.0, %v1361
    %1363 = vdwg.mxu0
    %vm1364 = vcmask 130048
    %v1366 = vsel %vm1364, %v981, 0
    %v1369 = vsel %vm1364, %v984, 0
    %v1372 = vsel %vm1364, %v987, 0
    %v1375 = vsel %vm1364, %v990, 0
    %v1378 = vsel %vm1364, %v993, 0
    %v1381 = vsel %vm1364, %v996, 0
    %v1384 = vsel %vm1364, %v999, 0
    %v1387 = vsel %vm1364, %v1002, 0
    %v1390 = vsel %vm1364, %v1005, 0
    %v1393 = vsel %vm1364, %v1008, 0
    %v1396 = vsel %vm1364, %v1011, 0
    %v1399 = vsel %vm1364, %v1014, 0
    %v1402 = vsel %vm1364, %v1017, 0
    %v1405 = vsel %vm1364, %v1020, 0
    %v1408 = vsel %vm1364, %v1023, 0
    %v1411 = vsel %vm1364, %v1026, 0
    %1413 = vmatpush.msra.mxu0 0.0
    %1414 = vmatpush.msra.mxu0 0.0
    %1415 = vmatpush.msra.mxu0 0.0
    %1416 = vmatpush.msra.mxu0 0.0
    %1417 = vmatpush.msra.mxu0 0.0
    %1418 = vmatpush.msra.mxu0 0.0
    %1419 = vmatpush.msra.mxu0 0.0
    %1420 = vmatpush.msra.mxu0 0.0
    %1421 = vmatpush.msra.mxu0 0.0
    %1422 = vmatpush.msra.mxu0 0.0
    %1423 = vmatpush.msra.mxu0 0.0
    %1424 = vmatpush.msra.mxu0 0.0
    %1425 = vmatpush.msra.mxu0 0.0
    %1426 = vmatpush.msra.mxu0 0.0
    %1427 = vmatpush.msra.mxu0 %v900
    %1428 = vmatpush.msra.mxu0 %v899
    %1429 = vmatmul.f32.gmra.mxu0 %v1366
    %v1430 = vpop.f32.mrf.mxu0
    %v1431 = vadd.f32 0.0, %v1430
    %1432 = vmatmul.f32.gmra.mxu0 %v1369
    %v1433 = vpop.f32.mrf.mxu0
    %v1434 = vadd.f32 0.0, %v1433
    %1435 = vmatmul.f32.gmra.mxu0 %v1372
    %v1436 = vpop.f32.mrf.mxu0
    %v1437 = vadd.f32 0.0, %v1436
    %1438 = vmatmul.f32.gmra.mxu0 %v1375
    %v1439 = vpop.f32.mrf.mxu0
    %v1440 = vadd.f32 0.0, %v1439
    %1441 = vmatmul.f32.gmra.mxu0 %v1378
    %v1442 = vpop.f32.mrf.mxu0
    %v1443 = vadd.f32 0.0, %v1442
    %1444 = vmatmul.f32.gmra.mxu0 %v1381
    %v1445 = vpop.f32.mrf.mxu0
    %v1446 = vadd.f32 0.0, %v1445
    %1447 = vmatmul.f32.gmra.mxu0 %v1384
    %v1448 = vpop.f32.mrf.mxu0
    %v1449 = vadd.f32 0.0, %v1448
    %1450 = vmatmul.f32.gmra.mxu0 %v1387
    %v1451 = vpop.f32.mrf.mxu0
    %v1452 = vadd.f32 0.0, %v1451
    %1453 = vmatmul.f32.gmra.mxu0 %v1390
    %v1454 = vpop.f32.mrf.mxu0
    %v1455 = vadd.f32 0.0, %v1454
    %1456 = vmatmul.f32.gmra.mxu0 %v1393
    %v1457 = vpop.f32.mrf.mxu0
    %v1458 = vadd.f32 0.0, %v1457
    %1459 = vmatmul.f32.gmra.mxu0 %v1396
    %v1460 = vpop.f32.mrf.mxu0
    %v1461 = vadd.f32 0.0, %v1460
    %1462 = vmatmul.f32.gmra.mxu0 %v1399
    %v1463 = vpop.f32.mrf.mxu0
    %v1464 = vadd.f32 0.0, %v1463
    %1465 = vmatmul.f32.gmra.mxu0 %v1402
    %v1466 = vpop.f32.mrf.mxu0
    %v1467 = vadd.f32 0.0, %v1466
    %1468 = vmatmul.f32.gmra.mxu0 %v1405
    %v1469 = vpop.f32.mrf.mxu0
    %v1470 = vadd.f32 0.0, %v1469
    %1471 = vmatmul.f32.gmra.mxu0 %v1408
    %v1472 = vpop.f32.mrf.mxu0
    %v1473 = vadd.f32 0.0, %v1472
    %1474 = vmatmul.f32.gmra.mxu0 %v1411
    %v1475 = vpop.f32.mrf.mxu0
    %v1476 = vadd.f32 0.0, %v1475
    %1477 = vdwg.mxu0
    %v1479 = vsel %vm1364, %v933, 0
    %v1482 = vsel %vm1364, %v936, 0
    %v1485 = vsel %vm1364, %v939, 0
    %v1488 = vsel %vm1364, %v942, 0
    %v1491 = vsel %vm1364, %v945, 0
    %v1494 = vsel %vm1364, %v948, 0
    %v1497 = vsel %vm1364, %v951, 0
    %v1500 = vsel %vm1364, %v954, 0
    %v1503 = vsel %vm1364, %v957, 0
    %v1506 = vsel %vm1364, %v960, 0
    %v1509 = vsel %vm1364, %v963, 0
    %v1512 = vsel %vm1364, %v966, 0
    %v1515 = vsel %vm1364, %v969, 0
    %v1518 = vsel %vm1364, %v972, 0
    %v1521 = vsel %vm1364, %v975, 0
    %v1524 = vsel %vm1364, %v978, 0
    %1526 = vmatpush.msra.mxu0 0.0
    %1527 = vmatpush.msra.mxu0 0.0
    %1528 = vmatpush.msra.mxu0 0.0
    %1529 = vmatpush.msra.mxu0 0.0
    %1530 = vmatpush.msra.mxu0 0.0
    %1531 = vmatpush.msra.mxu0 0.0
    %1532 = vmatpush.msra.mxu0 0.0
    %1533 = vmatpush.msra.mxu0 0.0
    %1534 = vmatpush.msra.mxu0 0.0
    %1535 = vmatpush.msra.mxu0 0.0
    %1536 = vmatpush.msra.mxu0 0.0
    %1537 = vmatpush.msra.mxu0 0.0
    %1538 = vmatpush.msra.mxu0 0.0
    %1539 = vmatpush.msra.mxu0 0.0
    %1540 = vmatpush.msra.mxu0 %v898
    %1541 = vmatpush.msra.mxu0 %v897
    %1542 = vmatmul.f32.gmra.mxu0 %v1479
    %v1543 = vpop.f32.mrf.mxu0
    %v1544 = vadd.f32 %v1431, %v1543
    %1545 = vmatmul.f32.gmra.mxu0 %v1482
    %v1546 = vpop.f32.mrf.mxu0
    %v1547 = vadd.f32 %v1434, %v1546
    %1548 = vmatmul.f32.gmra.mxu0 %v1485
    %v1549 = vpop.f32.mrf.mxu0
    %v1550 = vadd.f32 %v1437, %v1549
    %1551 = vmatmul.f32.gmra.mxu0 %v1488
    %v1552 = vpop.f32.mrf.mxu0
    %v1553 = vadd.f32 %v1440, %v1552
    %1554 = vmatmul.f32.gmra.mxu0 %v1491
    %v1555 = vpop.f32.mrf.mxu0
    %v1556 = vadd.f32 %v1443, %v1555
    %1557 = vmatmul.f32.gmra.mxu0 %v1494
    %v1558 = vpop.f32.mrf.mxu0
    %v1559 = vadd.f32 %v1446, %v1558
    %1560 = vmatmul.f32.gmra.mxu0 %v1497
    %v1561 = vpop.f32.mrf.mxu0
    %v1562 = vadd.f32 %v1449, %v1561
    %1563 = vmatmul.f32.gmra.mxu0 %v1500
    %v1564 = vpop.f32.mrf.mxu0
    %v1565 = vadd.f32 %v1452, %v1564
    %1566 = vmatmul.f32.gmra.mxu0 %v1503
    %v1567 = vpop.f32.mrf.mxu0
    %v1568 = vadd.f32 %v1455, %v1567
    %1569 = vmatmul.f32.gmra.mxu0 %v1506
    %v1570 = vpop.f32.mrf.mxu0
    %v1571 = vadd.f32 %v1458, %v1570
    %1572 = vmatmul.f32.gmra.mxu0 %v1509
    %v1573 = vpop.f32.mrf.mxu0
    %v1574 = vadd.f32 %v1461, %v1573
    %1575 = vmatmul.f32.gmra.mxu0 %v1512
    %v1576 = vpop.f32.mrf.mxu0
    %v1577 = vadd.f32 %v1464, %v1576
    %1578 = vmatmul.f32.gmra.mxu0 %v1515
    %v1579 = vpop.f32.mrf.mxu0
    %v1580 = vadd.f32 %v1467, %v1579
    %1581 = vmatmul.f32.gmra.mxu0 %v1518
    %v1582 = vpop.f32.mrf.mxu0
    %v1583 = vadd.f32 %v1470, %v1582
    %1584 = vmatmul.f32.gmra.mxu0 %v1521
    %v1585 = vpop.f32.mrf.mxu0
    %v1586 = vadd.f32 %v1473, %v1585
    %1587 = vmatmul.f32.gmra.mxu0 %v1524
    %v1588 = vpop.f32.mrf.mxu0
    %v1589 = vadd.f32 %v1476, %v1588
    %1590 = vdwg.mxu0
    %v1592 = vsel %vm1364, %v1029, 0
    %v1595 = vsel %vm1364, %v1032, 0
    %v1598 = vsel %vm1364, %v1035, 0
    %v1601 = vsel %vm1364, %v1038, 0
    %v1604 = vsel %vm1364, %v1041, 0
    %v1607 = vsel %vm1364, %v1044, 0
    %v1610 = vsel %vm1364, %v1047, 0
    %v1613 = vsel %vm1364, %v1050, 0
    %v1616 = vsel %vm1364, %v1053, 0
    %v1619 = vsel %vm1364, %v1056, 0
    %v1622 = vsel %vm1364, %v1059, 0
    %v1625 = vsel %vm1364, %v1062, 0
    %v1628 = vsel %vm1364, %v1065, 0
    %v1631 = vsel %vm1364, %v1068, 0
    %v1634 = vsel %vm1364, %v1071, 0
    %v1637 = vsel %vm1364, %v1074, 0
    %1639 = vmatpush.msra.mxu0 0.0
    %1640 = vmatpush.msra.mxu0 0.0
    %1641 = vmatpush.msra.mxu0 0.0
    %1642 = vmatpush.msra.mxu0 0.0
    %1643 = vmatpush.msra.mxu0 0.0
    %1644 = vmatpush.msra.mxu0 0.0
    %1645 = vmatpush.msra.mxu0 0.0
    %1646 = vmatpush.msra.mxu0 0.0
    %1647 = vmatpush.msra.mxu0 0.0
    %1648 = vmatpush.msra.mxu0 0.0
    %1649 = vmatpush.msra.mxu0 0.0
    %1650 = vmatpush.msra.mxu0 0.0
    %1651 = vmatpush.msra.mxu0 0.0
    %1652 = vmatpush.msra.mxu0 0.0
    %1653 = vmatpush.msra.mxu0 %v902
    %1654 = vmatpush.msra.mxu0 %v901
    %1655 = vmatmul.f32.gmra.mxu0 %v1592
    %v1656 = vpop.f32.mrf.mxu0
    %v1657 = vadd.f32 0.0, %v1656
    %1658 = vmatmul.f32.gmra.mxu0 %v1595
    %v1659 = vpop.f32.mrf.mxu0
    %v1660 = vadd.f32 0.0, %v1659
    %1661 = vmatmul.f32.gmra.mxu0 %v1598
    %v1662 = vpop.f32.mrf.mxu0
    %v1663 = vadd.f32 0.0, %v1662
    %1664 = vmatmul.f32.gmra.mxu0 %v1601
    %v1665 = vpop.f32.mrf.mxu0
    %v1666 = vadd.f32 0.0, %v1665
    %1667 = vmatmul.f32.gmra.mxu0 %v1604
    %v1668 = vpop.f32.mrf.mxu0
    %v1669 = vadd.f32 0.0, %v1668
    %1670 = vmatmul.f32.gmra.mxu0 %v1607
    %v1671 = vpop.f32.mrf.mxu0
    %v1672 = vadd.f32 0.0, %v1671
    %1673 = vmatmul.f32.gmra.mxu0 %v1610
    %v1674 = vpop.f32.mrf.mxu0
    %v1675 = vadd.f32 0.0, %v1674
    %1676 = vmatmul.f32.gmra.mxu0 %v1613
    %v1677 = vpop.f32.mrf.mxu0
    %v1678 = vadd.f32 0.0, %v1677
    %1679 = vmatmul.f32.gmra.mxu0 %v1616
    %v1680 = vpop.f32.mrf.mxu0
    %v1681 = vadd.f32 0.0, %v1680
    %1682 = vmatmul.f32.gmra.mxu0 %v1619
    %v1683 = vpop.f32.mrf.mxu0
    %v1684 = vadd.f32 0.0, %v1683
    %1685 = vmatmul.f32.gmra.mxu0 %v1622
    %v1686 = vpop.f32.mrf.mxu0
    %v1687 = vadd.f32 0.0, %v1686
    %1688 = vmatmul.f32.gmra.mxu0 %v1625
    %v1689 = vpop.f32.mrf.mxu0
    %v1690 = vadd.f32 0.0, %v1689
    %1691 = vmatmul.f32.gmra.mxu0 %v1628
    %v1692 = vpop.f32.mrf.mxu0
    %v1693 = vadd.f32 0.0, %v1692
    %1694 = vmatmul.f32.gmra.mxu0 %v1631
    %v1695 = vpop.f32.mrf.mxu0
    %v1696 = vadd.f32 0.0, %v1695
    %1697 = vmatmul.f32.gmra.mxu0 %v1634
    %v1698 = vpop.f32.mrf.mxu0
    %v1699 = vadd.f32 0.0, %v1698
    %1700 = vmatmul.f32.gmra.mxu0 %v1637
    %v1701 = vpop.f32.mrf.mxu0
    %v1702 = vadd.f32 0.0, %v1701
    %1703 = vdwg.mxu0
    %v1704 = vadd.f32 %v1544, %v1657
    %v1705 = vadd.f32 %v1547, %v1660
    %v1706 = vadd.f32 %v1550, %v1663
    %v1707 = vadd.f32 %v1553, %v1666
    %v1708 = vadd.f32 %v1556, %v1669
    %v1709 = vadd.f32 %v1559, %v1672
    %v1710 = vadd.f32 %v1562, %v1675
    %v1711 = vadd.f32 %v1565, %v1678
    %v1712 = vadd.f32 %v1568, %v1681
    %v1713 = vadd.f32 %v1571, %v1684
    %v1714 = vadd.f32 %v1574, %v1687
    %v1715 = vadd.f32 %v1577, %v1690
    %v1716 = vadd.f32 %v1580, %v1693
    %v1717 = vadd.f32 %v1583, %v1696
    %v1718 = vadd.f32 %v1586, %v1699
    %v1719 = vadd.f32 %v1589, %v1702
    %v1721 = vsel %vm1364, %v1077, 0
    %v1724 = vsel %vm1364, %v1080, 0
    %v1727 = vsel %vm1364, %v1083, 0
    %v1730 = vsel %vm1364, %v1086, 0
    %v1733 = vsel %vm1364, %v1089, 0
    %v1736 = vsel %vm1364, %v1092, 0
    %v1739 = vsel %vm1364, %v1095, 0
    %v1742 = vsel %vm1364, %v1098, 0
    %v1745 = vsel %vm1364, %v1101, 0
    %v1748 = vsel %vm1364, %v1104, 0
    %v1751 = vsel %vm1364, %v1107, 0
    %v1754 = vsel %vm1364, %v1110, 0
    %v1757 = vsel %vm1364, %v1113, 0
    %v1760 = vsel %vm1364, %v1116, 0
    %v1763 = vsel %vm1364, %v1119, 0
    %v1766 = vsel %vm1364, %v1122, 0
    %1768 = vmatpush.msra.mxu0 0.0
    %1769 = vmatpush.msra.mxu0 0.0
    %1770 = vmatpush.msra.mxu0 0.0
    %1771 = vmatpush.msra.mxu0 0.0
    %1772 = vmatpush.msra.mxu0 0.0
    %1773 = vmatpush.msra.mxu0 0.0
    %1774 = vmatpush.msra.mxu0 0.0
    %1775 = vmatpush.msra.mxu0 0.0
    %1776 = vmatpush.msra.mxu0 0.0
    %1777 = vmatpush.msra.mxu0 0.0
    %1778 = vmatpush.msra.mxu0 0.0
    %1779 = vmatpush.msra.mxu0 0.0
    %1780 = vmatpush.msra.mxu0 0.0
    %1781 = vmatpush.msra.mxu0 0.0
    %1782 = vmatpush.msra.mxu0 %v904
    %1783 = vmatpush.msra.mxu0 %v903
    %1784 = vmatmul.f32.gmra.mxu0 %v1721
    %v1785 = vpop.f32.mrf.mxu0
    %v1786 = vadd.f32 0.0, %v1785
    %1787 = vmatmul.f32.gmra.mxu0 %v1724
    %v1788 = vpop.f32.mrf.mxu0
    %v1789 = vadd.f32 0.0, %v1788
    %1790 = vmatmul.f32.gmra.mxu0 %v1727
    %v1791 = vpop.f32.mrf.mxu0
    %v1792 = vadd.f32 0.0, %v1791
    %1793 = vmatmul.f32.gmra.mxu0 %v1730
    %v1794 = vpop.f32.mrf.mxu0
    %v1795 = vadd.f32 0.0, %v1794
    %1796 = vmatmul.f32.gmra.mxu0 %v1733
    %v1797 = vpop.f32.mrf.mxu0
    %v1798 = vadd.f32 0.0, %v1797
    %1799 = vmatmul.f32.gmra.mxu0 %v1736
    %v1800 = vpop.f32.mrf.mxu0
    %v1801 = vadd.f32 0.0, %v1800
    %1802 = vmatmul.f32.gmra.mxu0 %v1739
    %v1803 = vpop.f32.mrf.mxu0
    %v1804 = vadd.f32 0.0, %v1803
    %1805 = vmatmul.f32.gmra.mxu0 %v1742
    %v1806 = vpop.f32.mrf.mxu0
    %v1807 = vadd.f32 0.0, %v1806
    %1808 = vmatmul.f32.gmra.mxu0 %v1745
    %v1809 = vpop.f32.mrf.mxu0
    %v1810 = vadd.f32 0.0, %v1809
    %1811 = vmatmul.f32.gmra.mxu0 %v1748
    %v1812 = vpop.f32.mrf.mxu0
    %v1813 = vadd.f32 0.0, %v1812
    %1814 = vmatmul.f32.gmra.mxu0 %v1751
    %v1815 = vpop.f32.mrf.mxu0
    %v1816 = vadd.f32 0.0, %v1815
    %1817 = vmatmul.f32.gmra.mxu0 %v1754
    %v1818 = vpop.f32.mrf.mxu0
    %v1819 = vadd.f32 0.0, %v1818
    %1820 = vmatmul.f32.gmra.mxu0 %v1757
    %v1821 = vpop.f32.mrf.mxu0
    %v1822 = vadd.f32 0.0, %v1821
    %1823 = vmatmul.f32.gmra.mxu0 %v1760
    %v1824 = vpop.f32.mrf.mxu0
    %v1825 = vadd.f32 0.0, %v1824
    %1826 = vmatmul.f32.gmra.mxu0 %v1763
    %v1827 = vpop.f32.mrf.mxu0
    %v1828 = vadd.f32 0.0, %v1827
    %1829 = vmatmul.f32.gmra.mxu0 %v1766
    %v1830 = vpop.f32.mrf.mxu0
    %v1831 = vadd.f32 0.0, %v1830
    %1832 = vdwg.mxu0
    %v1833 = vadd.f32 %v1704, %v1786
    %v1834 = vadd.f32 %v1705, %v1789
    %v1835 = vadd.f32 %v1706, %v1792
    %v1836 = vadd.f32 %v1707, %v1795
    %v1837 = vadd.f32 %v1708, %v1798
    %v1838 = vadd.f32 %v1709, %v1801
    %v1839 = vadd.f32 %v1710, %v1804
    %v1840 = vadd.f32 %v1711, %v1807
    %v1841 = vadd.f32 %v1712, %v1810
    %v1842 = vadd.f32 %v1713, %v1813
    %v1843 = vadd.f32 %v1714, %v1816
    %v1844 = vadd.f32 %v1715, %v1819
    %v1845 = vadd.f32 %v1716, %v1822
    %v1846 = vadd.f32 %v1717, %v1825
    %v1847 = vadd.f32 %v1718, %v1828
    %v1848 = vadd.f32 %v1719, %v1831
    %v1850 = vsel %vm1364, %v1125, 0
    %v1853 = vsel %vm1364, %v1128, 0
    %v1856 = vsel %vm1364, %v1131, 0
    %v1859 = vsel %vm1364, %v1134, 0
    %v1862 = vsel %vm1364, %v1137, 0
    %v1865 = vsel %vm1364, %v1140, 0
    %v1868 = vsel %vm1364, %v1143, 0
    %v1871 = vsel %vm1364, %v1146, 0
    %v1874 = vsel %vm1364, %v1149, 0
    %v1877 = vsel %vm1364, %v1152, 0
    %v1880 = vsel %vm1364, %v1155, 0
    %v1883 = vsel %vm1364, %v1158, 0
    %v1886 = vsel %vm1364, %v1161, 0
    %v1889 = vsel %vm1364, %v1164, 0
    %v1892 = vsel %vm1364, %v1167, 0
    %v1895 = vsel %vm1364, %v1170, 0
    %1897 = vmatpush.msra.mxu0 0.0
    %1898 = vmatpush.msra.mxu0 0.0
    %1899 = vmatpush.msra.mxu0 0.0
    %1900 = vmatpush.msra.mxu0 0.0
    %1901 = vmatpush.msra.mxu0 0.0
    %1902 = vmatpush.msra.mxu0 0.0
    %1903 = vmatpush.msra.mxu0 0.0
    %1904 = vmatpush.msra.mxu0 0.0
    %1905 = vmatpush.msra.mxu0 0.0
    %1906 = vmatpush.msra.mxu0 0.0
    %1907 = vmatpush.msra.mxu0 0.0
    %1908 = vmatpush.msra.mxu0 0.0
    %1909 = vmatpush.msra.mxu0 0.0
    %1910 = vmatpush.msra.mxu0 0.0
    %1911 = vmatpush.msra.mxu0 %v906
    %1912 = vmatpush.msra.mxu0 %v905
    %1913 = vmatmul.f32.gmra.mxu0 %v1850
    %v1914 = vpop.f32.mrf.mxu0
    %v1915 = vadd.f32 0.0, %v1914
    %1916 = vmatmul.f32.gmra.mxu0 %v1853
    %v1917 = vpop.f32.mrf.mxu0
    %v1918 = vadd.f32 0.0, %v1917
    %1919 = vmatmul.f32.gmra.mxu0 %v1856
    %v1920 = vpop.f32.mrf.mxu0
    %v1921 = vadd.f32 0.0, %v1920
    %1922 = vmatmul.f32.gmra.mxu0 %v1859
    %v1923 = vpop.f32.mrf.mxu0
    %v1924 = vadd.f32 0.0, %v1923
    %1925 = vmatmul.f32.gmra.mxu0 %v1862
    %v1926 = vpop.f32.mrf.mxu0
    %v1927 = vadd.f32 0.0, %v1926
    %1928 = vmatmul.f32.gmra.mxu0 %v1865
    %v1929 = vpop.f32.mrf.mxu0
    %v1930 = vadd.f32 0.0, %v1929
    %1931 = vmatmul.f32.gmra.mxu0 %v1868
    %v1932 = vpop.f32.mrf.mxu0
    %v1933 = vadd.f32 0.0, %v1932
    %1934 = vmatmul.f32.gmra.mxu0 %v1871
    %v1935 = vpop.f32.mrf.mxu0
    %v1936 = vadd.f32 0.0, %v1935
    %1937 = vmatmul.f32.gmra.mxu0 %v1874
    %v1938 = vpop.f32.mrf.mxu0
    %v1939 = vadd.f32 0.0, %v1938
    %1940 = vmatmul.f32.gmra.mxu0 %v1877
    %v1941 = vpop.f32.mrf.mxu0
    %v1942 = vadd.f32 0.0, %v1941
    %1943 = vmatmul.f32.gmra.mxu0 %v1880
    %v1944 = vpop.f32.mrf.mxu0
    %v1945 = vadd.f32 0.0, %v1944
    %1946 = vmatmul.f32.gmra.mxu0 %v1883
    %v1947 = vpop.f32.mrf.mxu0
    %v1948 = vadd.f32 0.0, %v1947
    %1949 = vmatmul.f32.gmra.mxu0 %v1886
    %v1950 = vpop.f32.mrf.mxu0
    %v1951 = vadd.f32 0.0, %v1950
    %1952 = vmatmul.f32.gmra.mxu0 %v1889
    %v1953 = vpop.f32.mrf.mxu0
    %v1954 = vadd.f32 0.0, %v1953
    %1955 = vmatmul.f32.gmra.mxu0 %v1892
    %v1956 = vpop.f32.mrf.mxu0
    %v1957 = vadd.f32 0.0, %v1956
    %1958 = vmatmul.f32.gmra.mxu0 %v1895
    %v1959 = vpop.f32.mrf.mxu0
    %v1960 = vadd.f32 0.0, %v1959
    %1961 = vdwg.mxu0
    %v1962 = vadd.f32 %v1833, %v1915
    %v1963 = vadd.f32 %v1834, %v1918
    %v1964 = vadd.f32 %v1835, %v1921
    %v1965 = vadd.f32 %v1836, %v1924
    %v1966 = vadd.f32 %v1837, %v1927
    %v1967 = vadd.f32 %v1838, %v1930
    %v1968 = vadd.f32 %v1839, %v1933
    %v1969 = vadd.f32 %v1840, %v1936
    %v1970 = vadd.f32 %v1841, %v1939
    %v1971 = vadd.f32 %v1842, %v1942
    %v1972 = vadd.f32 %v1843, %v1945
    %v1973 = vadd.f32 %v1844, %v1948
    %v1974 = vadd.f32 %v1845, %v1951
    %v1975 = vadd.f32 %v1846, %v1954
    %v1976 = vadd.f32 %v1847, %v1957
    %v1977 = vadd.f32 %v1848, %v1960
    %v1979 = vsel %vm1364, %v1173, 0
    %v1982 = vsel %vm1364, %v1176, 0
    %v1985 = vsel %vm1364, %v1179, 0
    %v1988 = vsel %vm1364, %v1182, 0
    %v1991 = vsel %vm1364, %v1185, 0
    %v1994 = vsel %vm1364, %v1188, 0
    %v1997 = vsel %vm1364, %v1191, 0
    %v2000 = vsel %vm1364, %v1194, 0
    %v2003 = vsel %vm1364, %v1197, 0
    %v2006 = vsel %vm1364, %v1200, 0
    %v2009 = vsel %vm1364, %v1203, 0
    %v2012 = vsel %vm1364, %v1206, 0
    %v2015 = vsel %vm1364, %v1209, 0
    %v2018 = vsel %vm1364, %v1212, 0
    %v2021 = vsel %vm1364, %v1215, 0
    %v2024 = vsel %vm1364, %v1218, 0
    %2026 = vmatpush.msra.mxu0 0.0
    %2027 = vmatpush.msra.mxu0 0.0
    %2028 = vmatpush.msra.mxu0 0.0
    %2029 = vmatpush.msra.mxu0 0.0
    %2030 = vmatpush.msra.mxu0 0.0
    %2031 = vmatpush.msra.mxu0 0.0
    %2032 = vmatpush.msra.mxu0 0.0
    %2033 = vmatpush.msra.mxu0 0.0
    %2034 = vmatpush.msra.mxu0 0.0
    %2035 = vmatpush.msra.mxu0 0.0
    %2036 = vmatpush.msra.mxu0 0.0
    %2037 = vmatpush.msra.mxu0 0.0
    %2038 = vmatpush.msra.mxu0 0.0
    %2039 = vmatpush.msra.mxu0 0.0
    %2040 = vmatpush.msra.mxu0 %v908
    %2041 = vmatpush.msra.mxu0 %v907
    %2042 = vmatmul.f32.gmra.mxu0 %v1979
    %v2043 = vpop.f32.mrf.mxu0
    %v2044 = vadd.f32 0.0, %v2043
    %2045 = vmatmul.f32.gmra.mxu0 %v1982
    %v2046 = vpop.f32.mrf.mxu0
    %v2047 = vadd.f32 0.0, %v2046
    %2048 = vmatmul.f32.gmra.mxu0 %v1985
    %v2049 = vpop.f32.mrf.mxu0
    %v2050 = vadd.f32 0.0, %v2049
    %2051 = vmatmul.f32.gmra.mxu0 %v1988
    %v2052 = vpop.f32.mrf.mxu0
    %v2053 = vadd.f32 0.0, %v2052
    %2054 = vmatmul.f32.gmra.mxu0 %v1991
    %v2055 = vpop.f32.mrf.mxu0
    %v2056 = vadd.f32 0.0, %v2055
    %2057 = vmatmul.f32.gmra.mxu0 %v1994
    %v2058 = vpop.f32.mrf.mxu0
    %v2059 = vadd.f32 0.0, %v2058
    %2060 = vmatmul.f32.gmra.mxu0 %v1997
    %v2061 = vpop.f32.mrf.mxu0
    %v2062 = vadd.f32 0.0, %v2061
    %2063 = vmatmul.f32.gmra.mxu0 %v2000
    %v2064 = vpop.f32.mrf.mxu0
    %v2065 = vadd.f32 0.0, %v2064
    %2066 = vmatmul.f32.gmra.mxu0 %v2003
    %v2067 = vpop.f32.mrf.mxu0
    %v2068 = vadd.f32 0.0, %v2067
    %2069 = vmatmul.f32.gmra.mxu0 %v2006
    %v2070 = vpop.f32.mrf.mxu0
    %v2071 = vadd.f32 0.0, %v2070
    %2072 = vmatmul.f32.gmra.mxu0 %v2009
    %v2073 = vpop.f32.mrf.mxu0
    %v2074 = vadd.f32 0.0, %v2073
    %2075 = vmatmul.f32.gmra.mxu0 %v2012
    %v2076 = vpop.f32.mrf.mxu0
    %v2077 = vadd.f32 0.0, %v2076
    %2078 = vmatmul.f32.gmra.mxu0 %v2015
    %v2079 = vpop.f32.mrf.mxu0
    %v2080 = vadd.f32 0.0, %v2079
    %2081 = vmatmul.f32.gmra.mxu0 %v2018
    %v2082 = vpop.f32.mrf.mxu0
    %v2083 = vadd.f32 0.0, %v2082
    %2084 = vmatmul.f32.gmra.mxu0 %v2021
    %v2085 = vpop.f32.mrf.mxu0
    %v2086 = vadd.f32 0.0, %v2085
    %2087 = vmatmul.f32.gmra.mxu0 %v2024
    %v2088 = vpop.f32.mrf.mxu0
    %v2089 = vadd.f32 0.0, %v2088
    %2090 = vdwg.mxu0
    %v2091 = vadd.f32 %v1962, %v2044
    %v2092 = vadd.f32 %v1963, %v2047
    %v2093 = vadd.f32 %v1964, %v2050
    %v2094 = vadd.f32 %v1965, %v2053
    %v2095 = vadd.f32 %v1966, %v2056
    %v2096 = vadd.f32 %v1967, %v2059
    %v2097 = vadd.f32 %v1968, %v2062
    %v2098 = vadd.f32 %v1969, %v2065
    %v2099 = vadd.f32 %v1970, %v2068
    %v2100 = vadd.f32 %v1971, %v2071
    %v2101 = vadd.f32 %v1972, %v2074
    %v2102 = vadd.f32 %v1973, %v2077
    %v2103 = vadd.f32 %v1974, %v2080
    %v2104 = vadd.f32 %v1975, %v2083
    %v2105 = vadd.f32 %v1976, %v2086
    %v2106 = vadd.f32 %v1977, %v2089
    %v2108 = vsel %vm1364, %v1221, 0
    %v2111 = vsel %vm1364, %v1224, 0
    %v2114 = vsel %vm1364, %v1227, 0
    %v2117 = vsel %vm1364, %v1230, 0
    %v2120 = vsel %vm1364, %v1233, 0
    %v2123 = vsel %vm1364, %v1236, 0
    %v2126 = vsel %vm1364, %v1239, 0
    %v2129 = vsel %vm1364, %v1242, 0
    %v2132 = vsel %vm1364, %v1245, 0
    %v2135 = vsel %vm1364, %v1248, 0
    %v2138 = vsel %vm1364, %v1251, 0
    %v2141 = vsel %vm1364, %v1254, 0
    %v2144 = vsel %vm1364, %v1257, 0
    %v2147 = vsel %vm1364, %v1260, 0
    %v2150 = vsel %vm1364, %v1263, 0
    %v2153 = vsel %vm1364, %v1266, 0
    %2155 = vmatpush.msra.mxu0 0.0
    %2156 = vmatpush.msra.mxu0 0.0
    %2157 = vmatpush.msra.mxu0 0.0
    %2158 = vmatpush.msra.mxu0 0.0
    %2159 = vmatpush.msra.mxu0 0.0
    %2160 = vmatpush.msra.mxu0 0.0
    %2161 = vmatpush.msra.mxu0 0.0
    %2162 = vmatpush.msra.mxu0 0.0
    %2163 = vmatpush.msra.mxu0 0.0
    %2164 = vmatpush.msra.mxu0 0.0
    %2165 = vmatpush.msra.mxu0 0.0
    %2166 = vmatpush.msra.mxu0 0.0
    %2167 = vmatpush.msra.mxu0 0.0
    %2168 = vmatpush.msra.mxu0 0.0
    %2169 = vmatpush.msra.mxu0 %v910
    %2170 = vmatpush.msra.mxu0 %v909
    %2171 = vmatmul.f32.gmra.mxu0 %v2108
    %v2172 = vpop.f32.mrf.mxu0
    %v2173 = vadd.f32 0.0, %v2172
    %2174 = vmatmul.f32.gmra.mxu0 %v2111
    %v2175 = vpop.f32.mrf.mxu0
    %v2176 = vadd.f32 0.0, %v2175
    %2177 = vmatmul.f32.gmra.mxu0 %v2114
    %v2178 = vpop.f32.mrf.mxu0
    %v2179 = vadd.f32 0.0, %v2178
    %2180 = vmatmul.f32.gmra.mxu0 %v2117
    %v2181 = vpop.f32.mrf.mxu0
    %v2182 = vadd.f32 0.0, %v2181
    %2183 = vmatmul.f32.gmra.mxu0 %v2120
    %v2184 = vpop.f32.mrf.mxu0
    %v2185 = vadd.f32 0.0, %v2184
    %2186 = vmatmul.f32.gmra.mxu0 %v2123
    %v2187 = vpop.f32.mrf.mxu0
    %v2188 = vadd.f32 0.0, %v2187
    %2189 = vmatmul.f32.gmra.mxu0 %v2126
    %v2190 = vpop.f32.mrf.mxu0
    %v2191 = vadd.f32 0.0, %v2190
    %2192 = vmatmul.f32.gmra.mxu0 %v2129
    %v2193 = vpop.f32.mrf.mxu0
    %v2194 = vadd.f32 0.0, %v2193
    %2195 = vmatmul.f32.gmra.mxu0 %v2132
    %v2196 = vpop.f32.mrf.mxu0
    %v2197 = vadd.f32 0.0, %v2196
    %2198 = vmatmul.f32.gmra.mxu0 %v2135
    %v2199 = vpop.f32.mrf.mxu0
    %v2200 = vadd.f32 0.0, %v2199
    %2201 = vmatmul.f32.gmra.mxu0 %v2138
    %v2202 = vpop.f32.mrf.mxu0
    %v2203 = vadd.f32 0.0, %v2202
    %2204 = vmatmul.f32.gmra.mxu0 %v2141
    %v2205 = vpop.f32.mrf.mxu0
    %v2206 = vadd.f32 0.0, %v2205
    %2207 = vmatmul.f32.gmra.mxu0 %v2144
    %v2208 = vpop.f32.mrf.mxu0
    %v2209 = vadd.f32 0.0, %v2208
    %2210 = vmatmul.f32.gmra.mxu0 %v2147
    %v2211 = vpop.f32.mrf.mxu0
    %v2212 = vadd.f32 0.0, %v2211
    %2213 = vmatmul.f32.gmra.mxu0 %v2150
    %v2214 = vpop.f32.mrf.mxu0
    %v2215 = vadd.f32 0.0, %v2214
    %2216 = vmatmul.f32.gmra.mxu0 %v2153
    %v2217 = vpop.f32.mrf.mxu0
    %v2218 = vadd.f32 0.0, %v2217
    %2219 = vdwg.mxu0
    %v2220 = vadd.f32 %v2091, %v2173
    %v2221 = vadd.f32 %v2092, %v2176
    %v2222 = vadd.f32 %v2093, %v2179
    %v2223 = vadd.f32 %v2094, %v2182
    %v2224 = vadd.f32 %v2095, %v2185
    %v2225 = vadd.f32 %v2096, %v2188
    %v2226 = vadd.f32 %v2097, %v2191
    %v2227 = vadd.f32 %v2098, %v2194
    %v2228 = vadd.f32 %v2099, %v2197
    %v2229 = vadd.f32 %v2100, %v2200
    %v2230 = vadd.f32 %v2101, %v2203
    %v2231 = vadd.f32 %v2102, %v2206
    %v2232 = vadd.f32 %v2103, %v2209
    %v2233 = vadd.f32 %v2104, %v2212
    %v2234 = vadd.f32 %v2105, %v2215
    %v2235 = vadd.f32 %v2106, %v2218
    %v2237 = vsel %vm1364, %v1269, 0
    %v2240 = vsel %vm1364, %v1272, 0
    %v2243 = vsel %vm1364, %v1275, 0
    %v2246 = vsel %vm1364, %v1278, 0
    %v2249 = vsel %vm1364, %v1281, 0
    %v2252 = vsel %vm1364, %v1284, 0
    %v2255 = vsel %vm1364, %v1287, 0
    %v2258 = vsel %vm1364, %v1290, 0
    %v2261 = vsel %vm1364, %v1293, 0
    %v2264 = vsel %vm1364, %v1296, 0
    %v2267 = vsel %vm1364, %v1299, 0
    %v2270 = vsel %vm1364, %v1302, 0
    %v2273 = vsel %vm1364, %v1305, 0
    %v2276 = vsel %vm1364, %v1308, 0
    %v2279 = vsel %vm1364, %v1311, 0
    %v2282 = vsel %vm1364, %v1314, 0
    %2284 = vmatpush.msra.mxu0 0.0
    %2285 = vmatpush.msra.mxu0 0.0
    %2286 = vmatpush.msra.mxu0 0.0
    %2287 = vmatpush.msra.mxu0 0.0
    %2288 = vmatpush.msra.mxu0 0.0
    %2289 = vmatpush.msra.mxu0 0.0
    %2290 = vmatpush.msra.mxu0 0.0
    %2291 = vmatpush.msra.mxu0 0.0
    %2292 = vmatpush.msra.mxu0 0.0
    %2293 = vmatpush.msra.mxu0 0.0
    %2294 = vmatpush.msra.mxu0 0.0
    %2295 = vmatpush.msra.mxu0 0.0
    %2296 = vmatpush.msra.mxu0 0.0
    %2297 = vmatpush.msra.mxu0 0.0
    %2298 = vmatpush.msra.mxu0 %v912
    %2299 = vmatpush.msra.mxu0 %v911
    %2300 = vmatmul.f32.gmra.mxu0 %v2237
    %v2301 = vpop.f32.mrf.mxu0
    %v2302 = vadd.f32 0.0, %v2301
    %2303 = vmatmul.f32.gmra.mxu0 %v2240
    %v2304 = vpop.f32.mrf.mxu0
    %v2305 = vadd.f32 0.0, %v2304
    %2306 = vmatmul.f32.gmra.mxu0 %v2243
    %v2307 = vpop.f32.mrf.mxu0
    %v2308 = vadd.f32 0.0, %v2307
    %2309 = vmatmul.f32.gmra.mxu0 %v2246
    %v2310 = vpop.f32.mrf.mxu0
    %v2311 = vadd.f32 0.0, %v2310
    %2312 = vmatmul.f32.gmra.mxu0 %v2249
    %v2313 = vpop.f32.mrf.mxu0
    %v2314 = vadd.f32 0.0, %v2313
    %2315 = vmatmul.f32.gmra.mxu0 %v2252
    %v2316 = vpop.f32.mrf.mxu0
    %v2317 = vadd.f32 0.0, %v2316
    %2318 = vmatmul.f32.gmra.mxu0 %v2255
    %v2319 = vpop.f32.mrf.mxu0
    %v2320 = vadd.f32 0.0, %v2319
    %2321 = vmatmul.f32.gmra.mxu0 %v2258
    %v2322 = vpop.f32.mrf.mxu0
    %v2323 = vadd.f32 0.0, %v2322
    %2324 = vmatmul.f32.gmra.mxu0 %v2261
    %v2325 = vpop.f32.mrf.mxu0
    %v2326 = vadd.f32 0.0, %v2325
    %2327 = vmatmul.f32.gmra.mxu0 %v2264
    %v2328 = vpop.f32.mrf.mxu0
    %v2329 = vadd.f32 0.0, %v2328
    %2330 = vmatmul.f32.gmra.mxu0 %v2267
    %v2331 = vpop.f32.mrf.mxu0
    %v2332 = vadd.f32 0.0, %v2331
    %2333 = vmatmul.f32.gmra.mxu0 %v2270
    %v2334 = vpop.f32.mrf.mxu0
    %v2335 = vadd.f32 0.0, %v2334
    %2336 = vmatmul.f32.gmra.mxu0 %v2273
    %v2337 = vpop.f32.mrf.mxu0
    %v2338 = vadd.f32 0.0, %v2337
    %2339 = vmatmul.f32.gmra.mxu0 %v2276
    %v2340 = vpop.f32.mrf.mxu0
    %v2341 = vadd.f32 0.0, %v2340
    %2342 = vmatmul.f32.gmra.mxu0 %v2279
    %v2343 = vpop.f32.mrf.mxu0
    %v2344 = vadd.f32 0.0, %v2343
    %2345 = vmatmul.f32.gmra.mxu0 %v2282
    %v2346 = vpop.f32.mrf.mxu0
    %v2347 = vadd.f32 0.0, %v2346
    %2348 = vdwg.mxu0
    %v2349 = vadd.f32 %v2220, %v2302
    %v2350 = vadd.f32 %v2221, %v2305
    %v2351 = vadd.f32 %v2222, %v2308
    %v2352 = vadd.f32 %v2223, %v2311
    %v2353 = vadd.f32 %v2224, %v2314
    %v2354 = vadd.f32 %v2225, %v2317
    %v2355 = vadd.f32 %v2226, %v2320
    %v2356 = vadd.f32 %v2227, %v2323
    %v2357 = vadd.f32 %v2228, %v2326
    %v2358 = vadd.f32 %v2229, %v2329
    %v2359 = vadd.f32 %v2230, %v2332
    %v2360 = vadd.f32 %v2231, %v2335
    %v2361 = vadd.f32 %v2232, %v2338
    %v2362 = vadd.f32 %v2233, %v2341
    %v2363 = vadd.f32 %v2234, %v2344
    %v2364 = vadd.f32 %v2235, %v2347
    %v2366 = vsel %vm1364, %v1317, 0
    %v2369 = vsel %vm1364, %v1320, 0
    %v2372 = vsel %vm1364, %v1323, 0
    %v2375 = vsel %vm1364, %v1326, 0
    %v2378 = vsel %vm1364, %v1329, 0
    %v2381 = vsel %vm1364, %v1332, 0
    %v2384 = vsel %vm1364, %v1335, 0
    %v2387 = vsel %vm1364, %v1338, 0
    %v2390 = vsel %vm1364, %v1341, 0
    %v2393 = vsel %vm1364, %v1344, 0
    %v2396 = vsel %vm1364, %v1347, 0
    %v2399 = vsel %vm1364, %v1350, 0
    %v2402 = vsel %vm1364, %v1353, 0
    %v2405 = vsel %vm1364, %v1356, 0
    %v2408 = vsel %vm1364, %v1359, 0
    %v2411 = vsel %vm1364, %v1362, 0
    %2413 = vmatpush.msra.mxu0 0.0
    %2414 = vmatpush.msra.mxu0 0.0
    %2415 = vmatpush.msra.mxu0 0.0
    %2416 = vmatpush.msra.mxu0 0.0
    %2417 = vmatpush.msra.mxu0 0.0
    %2418 = vmatpush.msra.mxu0 0.0
    %2419 = vmatpush.msra.mxu0 0.0
    %2420 = vmatpush.msra.mxu0 0.0
    %2421 = vmatpush.msra.mxu0 0.0
    %2422 = vmatpush.msra.mxu0 0.0
    %2423 = vmatpush.msra.mxu0 0.0
    %2424 = vmatpush.msra.mxu0 0.0
    %2425 = vmatpush.msra.mxu0 0.0
    %2426 = vmatpush.msra.mxu0 0.0
    %2427 = vmatpush.msra.mxu0 %v914
    %2428 = vmatpush.msra.mxu0 %v913
    %2429 = vmatmul.f32.gmra.mxu0 %v2366
    %v2430 = vpop.f32.mrf.mxu0
    %v2431 = vadd.f32 0.0, %v2430
    %2432 = vmatmul.f32.gmra.mxu0 %v2369
    %v2433 = vpop.f32.mrf.mxu0
    %v2434 = vadd.f32 0.0, %v2433
    %2435 = vmatmul.f32.gmra.mxu0 %v2372
    %v2436 = vpop.f32.mrf.mxu0
    %v2437 = vadd.f32 0.0, %v2436
    %2438 = vmatmul.f32.gmra.mxu0 %v2375
    %v2439 = vpop.f32.mrf.mxu0
    %v2440 = vadd.f32 0.0, %v2439
    %2441 = vmatmul.f32.gmra.mxu0 %v2378
    %v2442 = vpop.f32.mrf.mxu0
    %v2443 = vadd.f32 0.0, %v2442
    %2444 = vmatmul.f32.gmra.mxu0 %v2381
    %v2445 = vpop.f32.mrf.mxu0
    %v2446 = vadd.f32 0.0, %v2445
    %2447 = vmatmul.f32.gmra.mxu0 %v2384
    %v2448 = vpop.f32.mrf.mxu0
    %v2449 = vadd.f32 0.0, %v2448
    %2450 = vmatmul.f32.gmra.mxu0 %v2387
    %v2451 = vpop.f32.mrf.mxu0
    %v2452 = vadd.f32 0.0, %v2451
    %2453 = vmatmul.f32.gmra.mxu0 %v2390
    %v2454 = vpop.f32.mrf.mxu0
    %v2455 = vadd.f32 0.0, %v2454
    %2456 = vmatmul.f32.gmra.mxu0 %v2393
    %v2457 = vpop.f32.mrf.mxu0
    %v2458 = vadd.f32 0.0, %v2457
    %2459 = vmatmul.f32.gmra.mxu0 %v2396
    %v2460 = vpop.f32.mrf.mxu0
    %v2461 = vadd.f32 0.0, %v2460
    %2462 = vmatmul.f32.gmra.mxu0 %v2399
    %v2463 = vpop.f32.mrf.mxu0
    %v2464 = vadd.f32 0.0, %v2463
    %2465 = vmatmul.f32.gmra.mxu0 %v2402
    %v2466 = vpop.f32.mrf.mxu0
    %v2467 = vadd.f32 0.0, %v2466
    %2468 = vmatmul.f32.gmra.mxu0 %v2405
    %v2469 = vpop.f32.mrf.mxu0
    %v2470 = vadd.f32 0.0, %v2469
    %2471 = vmatmul.f32.gmra.mxu0 %v2408
    %v2472 = vpop.f32.mrf.mxu0
    %v2473 = vadd.f32 0.0, %v2472
    %2474 = vmatmul.f32.gmra.mxu0 %v2411
    %v2475 = vpop.f32.mrf.mxu0
    %v2476 = vadd.f32 0.0, %v2475
    %2477 = vdwg.mxu0
    %v2478 = vadd.f32 %v2349, %v2431
    %v2479 = vadd.f32 %v2350, %v2434
    %v2480 = vadd.f32 %v2351, %v2437
    %v2481 = vadd.f32 %v2352, %v2440
    %v2482 = vadd.f32 %v2353, %v2443
    %v2483 = vadd.f32 %v2354, %v2446
    %v2484 = vadd.f32 %v2355, %v2449
    %v2485 = vadd.f32 %v2356, %v2452
    %v2486 = vadd.f32 %v2357, %v2455
    %v2487 = vadd.f32 %v2358, %v2458
    %v2488 = vadd.f32 %v2359, %v2461
    %v2489 = vadd.f32 %v2360, %v2464
    %v2490 = vadd.f32 %v2361, %v2467
    %v2491 = vadd.f32 %v2362, %v2470
    %v2492 = vadd.f32 %v2363, %v2473
    %v2493 = vadd.f32 %v2364, %v2476
    %v2494 = vand.u32 2147483647, %v2478
    %v2495 = vand.u32 2147483647, %v2479
    %v2496 = vand.u32 2147483647, %v2480
    %v2497 = vand.u32 2147483647, %v2481
    %v2498 = vand.u32 2147483647, %v2482
    %v2499 = vand.u32 2147483647, %v2483
    %v2500 = vand.u32 2147483647, %v2484
    %v2501 = vand.u32 2147483647, %v2485
    %v2502 = vand.u32 2147483647, %v2486
    %v2503 = vand.u32 2147483647, %v2487
    %v2504 = vand.u32 2147483647, %v2488
    %v2505 = vand.u32 2147483647, %v2489
    %v2506 = vand.u32 2147483647, %v2490
    %v2507 = vand.u32 2147483647, %v2491
    %v2508 = vand.u32 2147483647, %v2492
    %v2509 = vand.u32 2147483647, %v2493
    %v2510 = vsub.f32 0.0, %v2494
    %v2511 = vsub.f32 0.0, %v2495
    %v2512 = vsub.f32 0.0, %v2496
    %v2513 = vsub.f32 0.0, %v2497
    %v2514 = vsub.f32 0.0, %v2498
    %v2515 = vsub.f32 0.0, %v2499
    %v2516 = vsub.f32 0.0, %v2500
    %v2517 = vsub.f32 0.0, %v2501
    %v2518 = vsub.f32 0.0, %v2502
    %v2519 = vsub.f32 0.0, %v2503
    %v2520 = vsub.f32 0.0, %v2504
    %v2521 = vsub.f32 0.0, %v2505
    %v2522 = vsub.f32 0.0, %v2506
    %v2523 = vsub.f32 0.0, %v2507
    %v2524 = vsub.f32 0.0, %v2508
    %v2525 = vsub.f32 0.0, %v2509
    %v2526 = vmul.f32 %v2510, 1.442695
    %v2527 = vpow.pop %v2526
    %v2528 = vmul.f32 %v2511, 1.442695
    %v2529 = vpow.pop %v2528
    %v2530 = vmul.f32 %v2512, 1.442695
    %v2531 = vpow.pop %v2530
    %v2532 = vmul.f32 %v2513, 1.442695
    %v2533 = vpow.pop %v2532
    %v2534 = vmul.f32 %v2514, 1.442695
    %v2535 = vpow.pop %v2534
    %v2536 = vmul.f32 %v2515, 1.442695
    %v2537 = vpow.pop %v2536
    %v2538 = vmul.f32 %v2516, 1.442695
    %v2539 = vpow.pop %v2538
    %v2540 = vmul.f32 %v2517, 1.442695
    %v2541 = vpow.pop %v2540
    %v2542 = vmul.f32 %v2518, 1.442695
    %v2543 = vpow.pop %v2542
    %v2544 = vmul.f32 %v2519, 1.442695
    %v2545 = vpow.pop %v2544
    %v2546 = vmul.f32 %v2520, 1.442695
    %v2547 = vpow.pop %v2546
    %v2548 = vmul.f32 %v2521, 1.442695
    %v2549 = vpow.pop %v2548
    %v2550 = vmul.f32 %v2522, 1.442695
    %v2551 = vpow.pop %v2550
    %v2552 = vmul.f32 %v2523, 1.442695
    %v2553 = vpow.pop %v2552
    %v2554 = vmul.f32 %v2524, 1.442695
    %v2555 = vpow.pop %v2554
    %v2556 = vmul.f32 %v2525, 1.442695
    %v2557 = vpow.pop %v2556
    %v2558 = vadd.f32 %v2527, 1.0
    %v2559 = vadd.f32 %v2529, 1.0
    %v2560 = vadd.f32 %v2531, 1.0
    %v2561 = vadd.f32 %v2533, 1.0
    %v2562 = vadd.f32 %v2535, 1.0
    %v2563 = vadd.f32 %v2537, 1.0
    %v2564 = vadd.f32 %v2539, 1.0
    %v2565 = vadd.f32 %v2541, 1.0
    %v2566 = vadd.f32 %v2543, 1.0
    %v2567 = vadd.f32 %v2545, 1.0
    %v2568 = vadd.f32 %v2547, 1.0
    %v2569 = vadd.f32 %v2549, 1.0
    %v2570 = vadd.f32 %v2551, 1.0
    %v2571 = vadd.f32 %v2553, 1.0
    %v2572 = vadd.f32 %v2555, 1.0
    %v2573 = vadd.f32 %v2557, 1.0
    %v2574 = vrcp.pop %v2558
    %v2575 = vmul.f32 %v2558, %v2574
    %v2576 = vsub.f32 1.0, %v2575
    %v2577 = vmul.f32 %v2574, %v2576
    %v2578 = vadd.f32 %v2574, %v2577
    %vm2579 = vweird.f32 %v2558
    %vm2580 = vweird.f32 %v2574
    %vm2581 = vmor %vm2579, %vm2580
    %v2582 = vsel %vm2581, %v2574, %v2578
    %v2583 = vand.u32 2147483647, %v2558
    %vm2584 = vcmp.eq.f32.partialorder %v2583, 8.507059e+37
    %v2585 = vand.u32 %v2558, 2147483648
    %v2586 = vor.u32 1.1754944e-38, %v2585
    %v2587 = vsel %vm2584, %v2586, %v2582
    %v2588 = vmul.f32 1.0, %v2587
    %v2589 = vrcp.pop %v2559
    %v2590 = vmul.f32 %v2559, %v2589
    %v2591 = vsub.f32 1.0, %v2590
    %v2592 = vmul.f32 %v2589, %v2591
    %v2593 = vadd.f32 %v2589, %v2592
    %vm2594 = vweird.f32 %v2559
    %vm2595 = vweird.f32 %v2589
    %vm2596 = vmor %vm2594, %vm2595
    %v2597 = vsel %vm2596, %v2589, %v2593
    %v2598 = vand.u32 2147483647, %v2559
    %vm2599 = vcmp.eq.f32.partialorder %v2598, 8.507059e+37
    %v2600 = vand.u32 %v2559, 2147483648
    %v2601 = vor.u32 1.1754944e-38, %v2600
    %v2602 = vsel %vm2599, %v2601, %v2597
    %v2603 = vmul.f32 1.0, %v2602
    %v2604 = vrcp.pop %v2560
    %v2605 = vmul.f32 %v2560, %v2604
    %v2606 = vsub.f32 1.0, %v2605
    %v2607 = vmul.f32 %v2604, %v2606
    %v2608 = vadd.f32 %v2604, %v2607
    %vm2609 = vweird.f32 %v2560
    %vm2610 = vweird.f32 %v2604
    %vm2611 = vmor %vm2609, %vm2610
    %v2612 = vsel %vm2611, %v2604, %v2608
    %v2613 = vand.u32 2147483647, %v2560
    %vm2614 = vcmp.eq.f32.partialorder %v2613, 8.507059e+37
    %v2615 = vand.u32 %v2560, 2147483648
    %v2616 = vor.u32 1.1754944e-38, %v2615
    %v2617 = vsel %vm2614, %v2616, %v2612
    %v2618 = vmul.f32 1.0, %v2617
    %v2619 = vrcp.pop %v2561
    %v2620 = vmul.f32 %v2561, %v2619
    %v2621 = vsub.f32 1.0, %v2620
    %v2622 = vmul.f32 %v2619, %v2621
    %v2623 = vadd.f32 %v2619, %v2622
    %vm2624 = vweird.f32 %v2561
    %vm2625 = vweird.f32 %v2619
    %vm2626 = vmor %vm2624, %vm2625
    %v2627 = vsel %vm2626, %v2619, %v2623
    %v2628 = vand.u32 2147483647, %v2561
    %vm2629 = vcmp.eq.f32.partialorder %v2628, 8.507059e+37
    %v2630 = vand.u32 %v2561, 2147483648
    %v2631 = vor.u32 1.1754944e-38, %v2630
    %v2632 = vsel %vm2629, %v2631, %v2627
    %v2633 = vmul.f32 1.0, %v2632
    %v2634 = vrcp.pop %v2562
    %v2635 = vmul.f32 %v2562, %v2634
    %v2636 = vsub.f32 1.0, %v2635
    %v2637 = vmul.f32 %v2634, %v2636
    %v2638 = vadd.f32 %v2634, %v2637
    %vm2639 = vweird.f32 %v2562
    %vm2640 = vweird.f32 %v2634
    %vm2641 = vmor %vm2639, %vm2640
    %v2642 = vsel %vm2641, %v2634, %v2638
    %v2643 = vand.u32 2147483647, %v2562
    %vm2644 = vcmp.eq.f32.partialorder %v2643, 8.507059e+37
    %v2645 = vand.u32 %v2562, 2147483648
    %v2646 = vor.u32 1.1754944e-38, %v2645
    %v2647 = vsel %vm2644, %v2646, %v2642
    %v2648 = vmul.f32 1.0, %v2647
    %v2649 = vrcp.pop %v2563
    %v2650 = vmul.f32 %v2563, %v2649
    %v2651 = vsub.f32 1.0, %v2650
    %v2652 = vmul.f32 %v2649, %v2651
    %v2653 = vadd.f32 %v2649, %v2652
    %vm2654 = vweird.f32 %v2563
    %vm2655 = vweird.f32 %v2649
    %vm2656 = vmor %vm2654, %vm2655
    %v2657 = vsel %vm2656, %v2649, %v2653
    %v2658 = vand.u32 2147483647, %v2563
    %vm2659 = vcmp.eq.f32.partialorder %v2658, 8.507059e+37
    %v2660 = vand.u32 %v2563, 2147483648
    %v2661 = vor.u32 1.1754944e-38, %v2660
    %v2662 = vsel %vm2659, %v2661, %v2657
    %v2663 = vmul.f32 1.0, %v2662
    %v2664 = vrcp.pop %v2564
    %v2665 = vmul.f32 %v2564, %v2664
    %v2666 = vsub.f32 1.0, %v2665
    %v2667 = vmul.f32 %v2664, %v2666
    %v2668 = vadd.f32 %v2664, %v2667
    %vm2669 = vweird.f32 %v2564
    %vm2670 = vweird.f32 %v2664
    %vm2671 = vmor %vm2669, %vm2670
    %v2672 = vsel %vm2671, %v2664, %v2668
    %v2673 = vand.u32 2147483647, %v2564
    %vm2674 = vcmp.eq.f32.partialorder %v2673, 8.507059e+37
    %v2675 = vand.u32 %v2564, 2147483648
    %v2676 = vor.u32 1.1754944e-38, %v2675
    %v2677 = vsel %vm2674, %v2676, %v2672
    %v2678 = vmul.f32 1.0, %v2677
    %v2679 = vrcp.pop %v2565
    %v2680 = vmul.f32 %v2565, %v2679
    %v2681 = vsub.f32 1.0, %v2680
    %v2682 = vmul.f32 %v2679, %v2681
    %v2683 = vadd.f32 %v2679, %v2682
    %vm2684 = vweird.f32 %v2565
    %vm2685 = vweird.f32 %v2679
    %vm2686 = vmor %vm2684, %vm2685
    %v2687 = vsel %vm2686, %v2679, %v2683
    %v2688 = vand.u32 2147483647, %v2565
    %vm2689 = vcmp.eq.f32.partialorder %v2688, 8.507059e+37
    %v2690 = vand.u32 %v2565, 2147483648
    %v2691 = vor.u32 1.1754944e-38, %v2690
    %v2692 = vsel %vm2689, %v2691, %v2687
    %v2693 = vmul.f32 1.0, %v2692
    %v2694 = vrcp.pop %v2566
    %v2695 = vmul.f32 %v2566, %v2694
    %v2696 = vsub.f32 1.0, %v2695
    %v2697 = vmul.f32 %v2694, %v2696
    %v2698 = vadd.f32 %v2694, %v2697
    %vm2699 = vweird.f32 %v2566
    %vm2700 = vweird.f32 %v2694
    %vm2701 = vmor %vm2699, %vm2700
    %v2702 = vsel %vm2701, %v2694, %v2698
    %v2703 = vand.u32 2147483647, %v2566
    %vm2704 = vcmp.eq.f32.partialorder %v2703, 8.507059e+37
    %v2705 = vand.u32 %v2566, 2147483648
    %v2706 = vor.u32 1.1754944e-38, %v2705
    %v2707 = vsel %vm2704, %v2706, %v2702
    %v2708 = vmul.f32 1.0, %v2707
    %v2709 = vrcp.pop %v2567
    %v2710 = vmul.f32 %v2567, %v2709
    %v2711 = vsub.f32 1.0, %v2710
    %v2712 = vmul.f32 %v2709, %v2711
    %v2713 = vadd.f32 %v2709, %v2712
    %vm2714 = vweird.f32 %v2567
    %vm2715 = vweird.f32 %v2709
    %vm2716 = vmor %vm2714, %vm2715
    %v2717 = vsel %vm2716, %v2709, %v2713
    %v2718 = vand.u32 2147483647, %v2567
    %vm2719 = vcmp.eq.f32.partialorder %v2718, 8.507059e+37
    %v2720 = vand.u32 %v2567, 2147483648
    %v2721 = vor.u32 1.1754944e-38, %v2720
    %v2722 = vsel %vm2719, %v2721, %v2717
    %v2723 = vmul.f32 1.0, %v2722
    %v2724 = vrcp.pop %v2568
    %v2725 = vmul.f32 %v2568, %v2724
    %v2726 = vsub.f32 1.0, %v2725
    %v2727 = vmul.f32 %v2724, %v2726
    %v2728 = vadd.f32 %v2724, %v2727
    %vm2729 = vweird.f32 %v2568
    %vm2730 = vweird.f32 %v2724
    %vm2731 = vmor %vm2729, %vm2730
    %v2732 = vsel %vm2731, %v2724, %v2728
    %v2733 = vand.u32 2147483647, %v2568
    %vm2734 = vcmp.eq.f32.partialorder %v2733, 8.507059e+37
    %v2735 = vand.u32 %v2568, 2147483648
    %v2736 = vor.u32 1.1754944e-38, %v2735
    %v2737 = vsel %vm2734, %v2736, %v2732
    %v2738 = vmul.f32 1.0, %v2737
    %v2739 = vrcp.pop %v2569
    %v2740 = vmul.f32 %v2569, %v2739
    %v2741 = vsub.f32 1.0, %v2740
    %v2742 = vmul.f32 %v2739, %v2741
    %v2743 = vadd.f32 %v2739, %v2742
    %vm2744 = vweird.f32 %v2569
    %vm2745 = vweird.f32 %v2739
    %vm2746 = vmor %vm2744, %vm2745
    %v2747 = vsel %vm2746, %v2739, %v2743
    %v2748 = vand.u32 2147483647, %v2569
    %vm2749 = vcmp.eq.f32.partialorder %v2748, 8.507059e+37
    %v2750 = vand.u32 %v2569, 2147483648
    %v2751 = vor.u32 1.1754944e-38, %v2750
    %v2752 = vsel %vm2749, %v2751, %v2747
    %v2753 = vmul.f32 1.0, %v2752
    %v2754 = vrcp.pop %v2570
    %v2755 = vmul.f32 %v2570, %v2754
    %v2756 = vsub.f32 1.0, %v2755
    %v2757 = vmul.f32 %v2754, %v2756
    %v2758 = vadd.f32 %v2754, %v2757
    %vm2759 = vweird.f32 %v2570
    %vm2760 = vweird.f32 %v2754
    %vm2761 = vmor %vm2759, %vm2760
    %v2762 = vsel %vm2761, %v2754, %v2758
    %v2763 = vand.u32 2147483647, %v2570
    %vm2764 = vcmp.eq.f32.partialorder %v2763, 8.507059e+37
    %v2765 = vand.u32 %v2570, 2147483648
    %v2766 = vor.u32 1.1754944e-38, %v2765
    %v2767 = vsel %vm2764, %v2766, %v2762
    %v2768 = vmul.f32 1.0, %v2767
    %v2769 = vrcp.pop %v2571
    %v2770 = vmul.f32 %v2571, %v2769
    %v2771 = vsub.f32 1.0, %v2770
    %v2772 = vmul.f32 %v2769, %v2771
    %v2773 = vadd.f32 %v2769, %v2772
    %vm2774 = vweird.f32 %v2571
    %vm2775 = vweird.f32 %v2769
    %vm2776 = vmor %vm2774, %vm2775
    %v2777 = vsel %vm2776, %v2769, %v2773
    %v2778 = vand.u32 2147483647, %v2571
    %vm2779 = vcmp.eq.f32.partialorder %v2778, 8.507059e+37
    %v2780 = vand.u32 %v2571, 2147483648
    %v2781 = vor.u32 1.1754944e-38, %v2780
    %v2782 = vsel %vm2779, %v2781, %v2777
    %v2783 = vmul.f32 1.0, %v2782
    %v2784 = vrcp.pop %v2572
    %v2785 = vmul.f32 %v2572, %v2784
    %v2786 = vsub.f32 1.0, %v2785
    %v2787 = vmul.f32 %v2784, %v2786
    %v2788 = vadd.f32 %v2784, %v2787
    %vm2789 = vweird.f32 %v2572
    %vm2790 = vweird.f32 %v2784
    %vm2791 = vmor %vm2789, %vm2790
    %v2792 = vsel %vm2791, %v2784, %v2788
    %v2793 = vand.u32 2147483647, %v2572
    %vm2794 = vcmp.eq.f32.partialorder %v2793, 8.507059e+37
    %v2795 = vand.u32 %v2572, 2147483648
    %v2796 = vor.u32 1.1754944e-38, %v2795
    %v2797 = vsel %vm2794, %v2796, %v2792
    %v2798 = vmul.f32 1.0, %v2797
    %v2799 = vrcp.pop %v2573
    %v2800 = vmul.f32 %v2573, %v2799
    %v2801 = vsub.f32 1.0, %v2800
    %v2802 = vmul.f32 %v2799, %v2801
    %v2803 = vadd.f32 %v2799, %v2802
    %vm2804 = vweird.f32 %v2573
    %vm2805 = vweird.f32 %v2799
    %vm2806 = vmor %vm2804, %vm2805
    %v2807 = vsel %vm2806, %v2799, %v2803
    %v2808 = vand.u32 2147483647, %v2573
    %vm2809 = vcmp.eq.f32.partialorder %v2808, 8.507059e+37
    %v2810 = vand.u32 %v2573, 2147483648
    %v2811 = vor.u32 1.1754944e-38, %v2810
    %v2812 = vsel %vm2809, %v2811, %v2807
    %v2813 = vmul.f32 1.0, %v2812
    %vm2814 = vcmp.ge.f32.partialorder %v2478, 0.0
    %vm2815 = vcmp.ge.f32.partialorder %v2479, 0.0
    %vm2816 = vcmp.ge.f32.partialorder %v2480, 0.0
    %vm2817 = vcmp.ge.f32.partialorder %v2481, 0.0
    %vm2818 = vcmp.ge.f32.partialorder %v2482, 0.0
    %vm2819 = vcmp.ge.f32.partialorder %v2483, 0.0
    %vm2820 = vcmp.ge.f32.partialorder %v2484, 0.0
    %vm2821 = vcmp.ge.f32.partialorder %v2485, 0.0
    %vm2822 = vcmp.ge.f32.partialorder %v2486, 0.0
    %vm2823 = vcmp.ge.f32.partialorder %v2487, 0.0
    %vm2824 = vcmp.ge.f32.partialorder %v2488, 0.0
    %vm2825 = vcmp.ge.f32.partialorder %v2489, 0.0
    %vm2826 = vcmp.ge.f32.partialorder %v2490, 0.0
    %vm2827 = vcmp.ge.f32.partialorder %v2491, 0.0
    %vm2828 = vcmp.ge.f32.partialorder %v2492, 0.0
    %vm2829 = vcmp.ge.f32.partialorder %v2493, 0.0
    %v2830 = vmul.f32 %v2527, %v2588
    %v2831 = vmul.f32 %v2529, %v2603
    %v2832 = vmul.f32 %v2531, %v2618
    %v2833 = vmul.f32 %v2533, %v2633
    %v2834 = vmul.f32 %v2535, %v2648
    %v2835 = vmul.f32 %v2537, %v2663
    %v2836 = vmul.f32 %v2539, %v2678
    %v2837 = vmul.f32 %v2541, %v2693
    %v2838 = vmul.f32 %v2543, %v2708
    %v2839 = vmul.f32 %v2545, %v2723
    %v2840 = vmul.f32 %v2547, %v2738
    %v2841 = vmul.f32 %v2549, %v2753
    %v2842 = vmul.f32 %v2551, %v2768
    %v2843 = vmul.f32 %v2553, %v2783
    %v2844 = vmul.f32 %v2555, %v2798
    %v2845 = vmul.f32 %v2557, %v2813
    %v2846 = vsel %vm2814, %v2588, %v2830
    %v2847 = vsel %vm2815, %v2603, %v2831
    %v2848 = vsel %vm2816, %v2618, %v2832
    %v2849 = vsel %vm2817, %v2633, %v2833
    %v2850 = vsel %vm2818, %v2648, %v2834
    %v2851 = vsel %vm2819, %v2663, %v2835
    %v2852 = vsel %vm2820, %v2678, %v2836
    %v2853 = vsel %vm2821, %v2693, %v2837
    %v2854 = vsel %vm2822, %v2708, %v2838
    %v2855 = vsel %vm2823, %v2723, %v2839
    %v2856 = vsel %vm2824, %v2738, %v2840
    %v2857 = vsel %vm2825, %v2753, %v2841
    %v2858 = vsel %vm2826, %v2768, %v2842
    %v2859 = vsel %vm2827, %v2783, %v2843
    %v2860 = vsel %vm2828, %v2798, %v2844
    %v2861 = vsel %vm2829, %v2813, %v2845
    %v2862 = vmul.f32 %v2478, %v2846
    %v2863 = vmul.f32 %v2479, %v2847
    %v2864 = vmul.f32 %v2480, %v2848
    %v2865 = vmul.f32 %v2481, %v2849
    %v2866 = vmul.f32 %v2482, %v2850
    %v2867 = vmul.f32 %v2483, %v2851
    %v2868 = vmul.f32 %v2484, %v2852
    %v2869 = vmul.f32 %v2485, %v2853
    %v2870 = vmul.f32 %v2486, %v2854
    %v2871 = vmul.f32 %v2487, %v2855
    %v2872 = vmul.f32 %v2488, %v2856
    %v2873 = vmul.f32 %v2489, %v2857
    %v2874 = vmul.f32 %v2490, %v2858
    %v2875 = vmul.f32 %v2491, %v2859
    %v2876 = vmul.f32 %v2492, %v2860
    %v2877 = vmul.f32 %v2493, %v2861
    %v2878 = vld [vmem:[%s3 + $0xc0] sm:$0xff]
    %v2879 = vld [vmem:[%s3 + $0xc8] sm:$0xff]
    %v2881 = vsel %vm1364, %v2862, 0
    %v2884 = vsel %vm1364, %v2863, 0
    %v2887 = vsel %vm1364, %v2864, 0
    %v2890 = vsel %vm1364, %v2865, 0
    %v2893 = vsel %vm1364, %v2866, 0
    %v2896 = vsel %vm1364, %v2867, 0
    %v2899 = vsel %vm1364, %v2868, 0
    %v2902 = vsel %vm1364, %v2869, 0
    %v2905 = vsel %vm1364, %v2870, 0
    %v2908 = vsel %vm1364, %v2871, 0
    %v2911 = vsel %vm1364, %v2872, 0
    %v2914 = vsel %vm1364, %v2873, 0
    %v2917 = vsel %vm1364, %v2874, 0
    %v2920 = vsel %vm1364, %v2875, 0
    %v2923 = vsel %vm1364, %v2876, 0
    %v2926 = vsel %vm1364, %v2877, 0
    %2928 = vmatpush.msra.mxu0 0.0
    %2929 = vmatpush.msra.mxu0 0.0
    %2930 = vmatpush.msra.mxu0 0.0
    %2931 = vmatpush.msra.mxu0 0.0
    %2932 = vmatpush.msra.mxu0 0.0
    %2933 = vmatpush.msra.mxu0 0.0
    %2934 = vmatpush.msra.mxu0 0.0
    %2935 = vmatpush.msra.mxu0 0.0
    %2936 = vmatpush.msra.mxu0 0.0
    %2937 = vmatpush.msra.mxu0 0.0
    %2938 = vmatpush.msra.mxu0 0.0
    %2939 = vmatpush.msra.mxu0 0.0
    %2940 = vmatpush.msra.mxu0 0.0
    %2941 = vmatpush.msra.mxu0 0.0
    %2942 = vmatpush.msra.mxu0 %v2879
    %2943 = vmatpush.msra.mxu0 %v2878
    %2944 = vmatmul.f32.gmra.mxu0 %v2881
    %v2945 = vpop.f32.mrf.mxu0
    %v2946 = vadd.f32 %v593, %v2945
    %2947 = vmatmul.f32.gmra.mxu0 %v2884
    %v2948 = vpop.f32.mrf.mxu0
    %v2949 = vadd.f32 %v594, %v2948
    %2950 = vmatmul.f32.gmra.mxu0 %v2887
    %v2951 = vpop.f32.mrf.mxu0
    %v2952 = vadd.f32 %v595, %v2951
    %2953 = vmatmul.f32.gmra.mxu0 %v2890
    %v2954 = vpop.f32.mrf.mxu0
    %v2955 = vadd.f32 %v596, %v2954
    %2956 = vmatmul.f32.gmra.mxu0 %v2893
    %v2957 = vpop.f32.mrf.mxu0
    %v2958 = vadd.f32 %v597, %v2957
    %2959 = vmatmul.f32.gmra.mxu0 %v2896
    %v2960 = vpop.f32.mrf.mxu0
    %v2961 = vadd.f32 %v598, %v2960
    %2962 = vmatmul.f32.gmra.mxu0 %v2899
    %v2963 = vpop.f32.mrf.mxu0
    %v2964 = vadd.f32 %v599, %v2963
    %2965 = vmatmul.f32.gmra.mxu0 %v2902
    %v2966 = vpop.f32.mrf.mxu0
    %v2967 = vadd.f32 %v600, %v2966
    %2968 = vmatmul.f32.gmra.mxu0 %v2905
    %v2969 = vpop.f32.mrf.mxu0
    %v2970 = vadd.f32 %v601, %v2969
    %2971 = vmatmul.f32.gmra.mxu0 %v2908
    %v2972 = vpop.f32.mrf.mxu0
    %v2973 = vadd.f32 %v602, %v2972
    %2974 = vmatmul.f32.gmra.mxu0 %v2911
    %v2975 = vpop.f32.mrf.mxu0
    %v2976 = vadd.f32 %v603, %v2975
    %2977 = vmatmul.f32.gmra.mxu0 %v2914
    %v2978 = vpop.f32.mrf.mxu0
    %v2979 = vadd.f32 %v604, %v2978
    %2980 = vmatmul.f32.gmra.mxu0 %v2917
    %v2981 = vpop.f32.mrf.mxu0
    %v2982 = vadd.f32 %v605, %v2981
    %2983 = vmatmul.f32.gmra.mxu0 %v2920
    %v2984 = vpop.f32.mrf.mxu0
    %v2985 = vadd.f32 %v606, %v2984
    %2986 = vmatmul.f32.gmra.mxu0 %v2923
    %v2987 = vpop.f32.mrf.mxu0
    %v2988 = vadd.f32 %v607, %v2987
    %2989 = vmatmul.f32.gmra.mxu0 %v2926
    %v2990 = vpop.f32.mrf.mxu0
    %v2991 = vadd.f32 %v608, %v2990
    %2992 = vdwg.mxu0
    %v2993 = vld [vmem:[%s4 + $0x240] sm:$0xf]
    %v2994 = vld [vmem:[%s4 + $0x244] sm:$0xf]
    %v2995 = vld [vmem:[%s4 + $0x248] sm:$0xf]
    %v2996 = vld [vmem:[%s4 + $0x24c] sm:$0xf]
    %v2997 = vld [vmem:[%s4 + $0x250] sm:$0xf]
    %v2998 = vld [vmem:[%s4 + $0x254] sm:$0xf]
    %v2999 = vld [vmem:[%s4 + $0x258] sm:$0xf]
    %v3000 = vld [vmem:[%s4 + $0x25c] sm:$0xf]
    %v3001 = vld [vmem:[%s4 + $0x260] sm:$0xf]
    %v3002 = vld [vmem:[%s4 + $0x264] sm:$0xf]
    %v3003 = vld [vmem:[%s4 + $0x268] sm:$0xf]
    %v3004 = vld [vmem:[%s4 + $0x26c] sm:$0xf]
    %v3005 = vld [vmem:[%s4 + $0x270] sm:$0xf]
    %v3006 = vld [vmem:[%s4 + $0x274] sm:$0xf]
    %v3007 = vld [vmem:[%s4 + $0x278] sm:$0xf]
    %v3008 = vld [vmem:[%s4 + $0x27c] sm:$0xf]
    %v3009 = vld [vmem:[%s4 + $0x280] sm:$0xf]
    %v3010 = vld [vmem:[%s4 + $0x284] sm:$0xf]
    %v3011 = vld [vmem:[%s4 + $0x288] sm:$0xf]
    %v3012 = vld [vmem:[%s4 + $0x28c] sm:$0xf]
    %v3013 = vld [vmem:[%s4 + $0x290] sm:$0xf]
    %v3014 = vld [vmem:[%s4 + $0x294] sm:$0xf]
    %v3015 = vld [vmem:[%s4 + $0x298] sm:$0xf]
    %v3016 = vld [vmem:[%s4 + $0x29c] sm:$0xf]
    %v3017 = vld [vmem:[%s4 + $0x2a0] sm:$0xf]
    %v3018 = vld [vmem:[%s4 + $0x2a4] sm:$0xf]
    %v3019 = vld [vmem:[%s4 + $0x2a8] sm:$0xf]
    %v3020 = vld [vmem:[%s4 + $0x2ac] sm:$0xf]
    %v3021 = vld [vmem:[%s4 + $0x2b0] sm:$0xf]
    %v3022 = vld [vmem:[%s4 + $0x2b4] sm:$0xf]
    %v3023 = vld [vmem:[%s4 + $0x2b8] sm:$0xf]
    %v3024 = vld [vmem:[%s4 + $0x2bc] sm:$0xf]
    %v3025 = vld [vmem:[%s4 + $0x2c0] sm:$0xf]
    %v3026 = vld [vmem:[%s4 + $0x2c4] sm:$0xf]
    %v3027 = vld [vmem:[%s4 + $0x2c8] sm:$0xf]
    %v3028 = vld [vmem:[%s4 + $0x2cc] sm:$0xf]
    %v3029 = vunpack.c.l.bf16 %v2993
    %v3030 = vunpack.c.l.bf16 %v2994
    %v3031 = vunpack.c.l.bf16 %v2995
    %v3032 = vunpack.c.l.bf16 %v2996
    %v3033 = vunpack.c.l.bf16 %v2997
    %v3034 = vunpack.c.l.bf16 %v2998
    %v3035 = vunpack.c.l.bf16 %v2999
    %v3036 = vunpack.c.l.bf16 %v3000
    %v3037 = vunpack.c.l.bf16 %v3001
    %v3038 = vunpack.c.l.bf16 %v3002
    %v3039 = vunpack.c.l.bf16 %v3003
    %v3040 = vunpack.c.l.bf16 %v3004
    %v3041 = vunpack.c.l.bf16 %v3005
    %v3042 = vunpack.c.l.bf16 %v3006
    %v3043 = vunpack.c.l.bf16 %v3007
    %v3044 = vunpack.c.l.bf16 %v3008
    %v3045 = vunpack.c.l.bf16 %v3009
    %v3046 = vunpack.c.l.bf16 %v3010
    %v3047 = vunpack.c.l.bf16 %v3011
    %v3048 = vunpack.c.l.bf16 %v3012
    %v3049 = vunpack.c.l.bf16 %v3013
    %v3050 = vunpack.c.l.bf16 %v3014
    %v3051 = vunpack.c.l.bf16 %v3015
    %v3052 = vunpack.c.l.bf16 %v3016
    %v3053 = vunpack.c.l.bf16 %v3017
    %v3054 = vunpack.c.l.bf16 %v3018
    %v3055 = vunpack.c.l.bf16 %v3019
    %v3056 = vunpack.c.l.bf16 %v3020
    %v3057 = vunpack.c.l.bf16 %v3021
    %v3058 = vunpack.c.l.bf16 %v3022
    %v3059 = vunpack.c.l.bf16 %v3023
    %v3060 = vunpack.c.l.bf16 %v3024
    %v3061 = vunpack.c.l.bf16 %v3025
    %v3062 = vunpack.c.l.bf16 %v3026
    %v3063 = vunpack.c.l.bf16 %v3027
    %v3064 = vunpack.c.l.bf16 %v3028
    %v3065 = vld [vmem:[%s3 + $0xd0] sm:$0xff]
    %v3066 = vld [vmem:[%s3 + $0xd8] sm:$0xff]
    %v3067 = vld [vmem:[%s3 + $0xe0] sm:$0xff]
    %v3068 = vld [vmem:[%s3 + $0xe8] sm:$0xff]
    %v3069 = vld [vmem:[%s3 + $0xf0] sm:$0xff]
    %v3070 = vld [vmem:[%s3 + $0xf8] sm:$0xff]
    %v3071 = vld [vmem:[%s3 + $0x100] sm:$0xff]
    %v3072 = vld [vmem:[%s3 + $0x108] sm:$0xff]
    %v3073 = vld [vmem:[%s3 + $0x110] sm:$0xff]
    %v3074 = vld [vmem:[%s3 + $0x118] sm:$0xff]
    %v3075 = vld [vmem:[%s3 + $0x120] sm:$0xff]
    %v3076 = vld [vmem:[%s3 + $0x128] sm:$0xff]
    %v3077 = vld [vmem:[%s3 + $0x130] sm:$0xff]
    %v3078 = vld [vmem:[%s3 + $0x138] sm:$0xff]
    %v3079 = vld [vmem:[%s3 + $0x140] sm:$0xff]
    %v3080 = vld [vmem:[%s3 + $0x148] sm:$0xff]
    %v3081 = vld [vmem:[%s3 + $0x150] sm:$0xff]
    %v3082 = vld [vmem:[%s3 + $0x158] sm:$0xff]
    %3083 = vmatpush.msra.mxu0 %v2991
    %3084 = vmatpush.msra.mxu0 %v2988
    %3085 = vmatpush.msra.mxu0 %v2985
    %3086 = vmatpush.msra.mxu0 %v2982
    %3087 = vmatpush.msra.mxu0 %v2979
    %3088 = vmatpush.msra.mxu0 %v2976
    %3089 = vmatpush.msra.mxu0 %v2973
    %3090 = vmatpush.msra.mxu0 %v2970
    %3091 = vmatpush.msra.mxu0 %v2967
    %3092 = vmatpush.msra.mxu0 %v2964
    %3093 = vmatpush.msra.mxu0 %v2961
    %3094 = vmatpush.msra.mxu0 %v2958
    %3095 = vmatpush.msra.mxu0 %v2955
    %3096 = vmatpush.msra.mxu0 %v2952
    %3097 = vmatpush.msra.mxu0 %v2949
    %3098 = vmatpush.msra.mxu0 %v2946
    %3099 = vmatmul.f32.gmra.mxu0 %v3029
    %v3100 = vpop.f32.mrf.mxu0
    %v3101 = vadd.f32 0.0, %v3100
    %3102 = vmatmul.f32.gmra.mxu0 %v3030
    %v3103 = vpop.f32.mrf.mxu0
    %v3104 = vadd.f32 0.0, %v3103
    %3105 = vmatmul.f32.gmra.mxu0 %v3031
    %v3106 = vpop.f32.mrf.mxu0
    %v3107 = vadd.f32 0.0, %v3106
    %3108 = vmatmul.f32.gmra.mxu0 %v3032
    %v3109 = vpop.f32.mrf.mxu0
    %v3110 = vadd.f32 0.0, %v3109
    %3111 = vmatmul.f32.gmra.mxu0 %v3033
    %v3112 = vpop.f32.mrf.mxu0
    %v3113 = vadd.f32 0.0, %v3112
    %3114 = vmatmul.f32.gmra.mxu0 %v3034
    %v3115 = vpop.f32.mrf.mxu0
    %v3116 = vadd.f32 0.0, %v3115
    %3117 = vmatmul.f32.gmra.mxu0 %v3035
    %v3118 = vpop.f32.mrf.mxu0
    %v3119 = vadd.f32 0.0, %v3118
    %3120 = vmatmul.f32.gmra.mxu0 %v3036
    %v3121 = vpop.f32.mrf.mxu0
    %v3122 = vadd.f32 0.0, %v3121
    %3123 = vmatmul.f32.gmra.mxu0 %v3037
    %v3124 = vpop.f32.mrf.mxu0
    %v3125 = vadd.f32 0.0, %v3124
    %3126 = vmatmul.f32.gmra.mxu0 %v3038
    %v3127 = vpop.f32.mrf.mxu0
    %v3128 = vadd.f32 0.0, %v3127
    %3129 = vmatmul.f32.gmra.mxu0 %v3039
    %v3130 = vpop.f32.mrf.mxu0
    %v3131 = vadd.f32 0.0, %v3130
    %3132 = vmatmul.f32.gmra.mxu0 %v3040
    %v3133 = vpop.f32.mrf.mxu0
    %v3134 = vadd.f32 0.0, %v3133
    %3135 = vmatmul.f32.gmra.mxu0 %v3041
    %v3136 = vpop.f32.mrf.mxu0
    %v3137 = vadd.f32 0.0, %v3136
    %3138 = vmatmul.f32.gmra.mxu0 %v3042
    %v3139 = vpop.f32.mrf.mxu0
    %v3140 = vadd.f32 0.0, %v3139
    %3141 = vmatmul.f32.gmra.mxu0 %v3043
    %v3142 = vpop.f32.mrf.mxu0
    %v3143 = vadd.f32 0.0, %v3142
    %3144 = vmatmul.f32.gmra.mxu0 %v3044
    %v3145 = vpop.f32.mrf.mxu0
    %v3146 = vadd.f32 0.0, %v3145
    %3147 = vmatmul.f32.gmra.mxu0 %v3045
    %v3148 = vpop.f32.mrf.mxu0
    %v3149 = vadd.f32 0.0, %v3148
    %3150 = vmatmul.f32.gmra.mxu0 %v3046
    %v3151 = vpop.f32.mrf.mxu0
    %v3152 = vadd.f32 0.0, %v3151
    %3153 = vmatmul.f32.gmra.mxu0 %v3047
    %v3154 = vpop.f32.mrf.mxu0
    %v3155 = vadd.f32 0.0, %v3154
    %3156 = vmatmul.f32.gmra.mxu0 %v3048
    %v3157 = vpop.f32.mrf.mxu0
    %v3158 = vadd.f32 0.0, %v3157
    %3159 = vmatmul.f32.gmra.mxu0 %v3049
    %v3160 = vpop.f32.mrf.mxu0
    %v3161 = vadd.f32 0.0, %v3160
    %3162 = vmatmul.f32.gmra.mxu0 %v3050
    %v3163 = vpop.f32.mrf.mxu0
    %v3164 = vadd.f32 0.0, %v3163
    %3165 = vmatmul.f32.gmra.mxu0 %v3051
    %v3166 = vpop.f32.mrf.mxu0
    %v3167 = vadd.f32 0.0, %v3166
    %3168 = vmatmul.f32.gmra.mxu0 %v3052
    %v3169 = vpop.f32.mrf.mxu0
    %v3170 = vadd.f32 0.0, %v3169
    %3171 = vmatmul.f32.gmra.mxu0 %v3053
    %v3172 = vpop.f32.mrf.mxu0
    %v3173 = vadd.f32 0.0, %v3172
    %3174 = vmatmul.f32.gmra.mxu0 %v3054
    %v3175 = vpop.f32.mrf.mxu0
    %v3176 = vadd.f32 0.0, %v3175
    %3177 = vmatmul.f32.gmra.mxu0 %v3055
    %v3178 = vpop.f32.mrf.mxu0
    %v3179 = vadd.f32 0.0, %v3178
    %3180 = vmatmul.f32.gmra.mxu0 %v3056
    %v3181 = vpop.f32.mrf.mxu0
    %v3182 = vadd.f32 0.0, %v3181
    %3183 = vmatmul.f32.gmra.mxu0 %v3057
    %v3184 = vpop.f32.mrf.mxu0
    %v3185 = vadd.f32 0.0, %v3184
    %3186 = vmatmul.f32.gmra.mxu0 %v3058
    %v3187 = vpop.f32.mrf.mxu0
    %v3188 = vadd.f32 0.0, %v3187
    %3189 = vmatmul.f32.gmra.mxu0 %v3059
    %v3190 = vpop.f32.mrf.mxu0
    %v3191 = vadd.f32 0.0, %v3190
    %3192 = vmatmul.f32.gmra.mxu0 %v3060
    %v3193 = vpop.f32.mrf.mxu0
    %v3194 = vadd.f32 0.0, %v3193
    %3195 = vmatmul.f32.gmra.mxu0 %v3061
    %v3196 = vpop.f32.mrf.mxu0
    %v3197 = vadd.f32 0.0, %v3196
    %3198 = vmatmul.f32.gmra.mxu0 %v3062
    %v3199 = vpop.f32.mrf.mxu0
    %v3200 = vadd.f32 0.0, %v3199
    %3201 = vmatmul.f32.gmra.mxu0 %v3063
    %v3202 = vpop.f32.mrf.mxu0
    %v3203 = vadd.f32 0.0, %v3202
    %3204 = vmatmul.f32.gmra.mxu0 %v3064
    %v3205 = vpop.f32.mrf.mxu0
    %v3206 = vadd.f32 0.0, %v3205
    %3207 = vdwg.mxu0
    %v3209 = vsel %vm1364, %v3113, 0
    %v3212 = vsel %vm1364, %v3116, 0
    %v3215 = vsel %vm1364, %v3119, 0
    %v3218 = vsel %vm1364, %v3122, 0
    %3220 = vmatpush.msra.mxu0 0.0
    %3221 = vmatpush.msra.mxu0 0.0
    %3222 = vmatpush.msra.mxu0 0.0
    %3223 = vmatpush.msra.mxu0 0.0
    %3224 = vmatpush.msra.mxu0 0.0
    %3225 = vmatpush.msra.mxu0 0.0
    %3226 = vmatpush.msra.mxu0 0.0
    %3227 = vmatpush.msra.mxu0 0.0
    %3228 = vmatpush.msra.mxu0 0.0
    %3229 = vmatpush.msra.mxu0 0.0
    %3230 = vmatpush.msra.mxu0 0.0
    %3231 = vmatpush.msra.mxu0 0.0
    %3232 = vmatpush.msra.mxu0 0.0
    %3233 = vmatpush.msra.mxu0 0.0
    %3234 = vmatpush.msra.mxu0 %v3068
    %3235 = vmatpush.msra.mxu0 %v3067
    %3236 = vmatmul.f32.gmra.mxu0 %v3209
    %v3237 = vpop.f32.mrf.mxu0
    %v3238 = vadd.f32 0.0, %v3237
    %3239 = vmatmul.f32.gmra.mxu0 %v3212
    %v3240 = vpop.f32.mrf.mxu0
    %v3241 = vadd.f32 0.0, %v3240
    %3242 = vmatmul.f32.gmra.mxu0 %v3215
    %v3243 = vpop.f32.mrf.mxu0
    %v3244 = vadd.f32 0.0, %v3243
    %3245 = vmatmul.f32.gmra.mxu0 %v3218
    %v3246 = vpop.f32.mrf.mxu0
    %v3247 = vadd.f32 0.0, %v3246
    %3248 = vdwg.mxu0
    %v3250 = vsel %vm1364, %v3101, 0
    %v3253 = vsel %vm1364, %v3104, 0
    %v3256 = vsel %vm1364, %v3107, 0
    %v3259 = vsel %vm1364, %v3110, 0
    %3261 = vmatpush.msra.mxu0 0.0
    %3262 = vmatpush.msra.mxu0 0.0
    %3263 = vmatpush.msra.mxu0 0.0
    %3264 = vmatpush.msra.mxu0 0.0
    %3265 = vmatpush.msra.mxu0 0.0
    %3266 = vmatpush.msra.mxu0 0.0
    %3267 = vmatpush.msra.mxu0 0.0
    %3268 = vmatpush.msra.mxu0 0.0
    %3269 = vmatpush.msra.mxu0 0.0
    %3270 = vmatpush.msra.mxu0 0.0
    %3271 = vmatpush.msra.mxu0 0.0
    %3272 = vmatpush.msra.mxu0 0.0
    %3273 = vmatpush.msra.mxu0 0.0
    %3274 = vmatpush.msra.mxu0 0.0
    %3275 = vmatpush.msra.mxu0 %v3066
    %3276 = vmatpush.msra.mxu0 %v3065
    %3277 = vmatmul.f32.gmra.mxu0 %v3250
    %v3278 = vpop.f32.mrf.mxu0
    %v3279 = vadd.f32 %v3238, %v3278
    %3280 = vmatmul.f32.gmra.mxu0 %v3253
    %v3281 = vpop.f32.mrf.mxu0
    %v3282 = vadd.f32 %v3241, %v3281
    %3283 = vmatmul.f32.gmra.mxu0 %v3256
    %v3284 = vpop.f32.mrf.mxu0
    %v3285 = vadd.f32 %v3244, %v3284
    %3286 = vmatmul.f32.gmra.mxu0 %v3259
    %v3287 = vpop.f32.mrf.mxu0
    %v3288 = vadd.f32 %v3247, %v3287
    %3289 = vdwg.mxu0
    %v3291 = vsel %vm1364, %v3125, 0
    %v3294 = vsel %vm1364, %v3128, 0
    %v3297 = vsel %vm1364, %v3131, 0
    %v3300 = vsel %vm1364, %v3134, 0
    %3302 = vmatpush.msra.mxu0 0.0
    %3303 = vmatpush.msra.mxu0 0.0
    %3304 = vmatpush.msra.mxu0 0.0
    %3305 = vmatpush.msra.mxu0 0.0
    %3306 = vmatpush.msra.mxu0 0.0
    %3307 = vmatpush.msra.mxu0 0.0
    %3308 = vmatpush.msra.mxu0 0.0
    %3309 = vmatpush.msra.mxu0 0.0
    %3310 = vmatpush.msra.mxu0 0.0
    %3311 = vmatpush.msra.mxu0 0.0
    %3312 = vmatpush.msra.mxu0 0.0
    %3313 = vmatpush.msra.mxu0 0.0
    %3314 = vmatpush.msra.mxu0 0.0
    %3315 = vmatpush.msra.mxu0 0.0
    %3316 = vmatpush.msra.mxu0 %v3070
    %3317 = vmatpush.msra.mxu0 %v3069
    %3318 = vmatmul.f32.gmra.mxu0 %v3291
    %v3319 = vpop.f32.mrf.mxu0
    %v3320 = vadd.f32 0.0, %v3319
    %3321 = vmatmul.f32.gmra.mxu0 %v3294
    %v3322 = vpop.f32.mrf.mxu0
    %v3323 = vadd.f32 0.0, %v3322
    %3324 = vmatmul.f32.gmra.mxu0 %v3297
    %v3325 = vpop.f32.mrf.mxu0
    %v3326 = vadd.f32 0.0, %v3325
    %3327 = vmatmul.f32.gmra.mxu0 %v3300
    %v3328 = vpop.f32.mrf.mxu0
    %v3329 = vadd.f32 0.0, %v3328
    %3330 = vdwg.mxu0
    %v3331 = vadd.f32 %v3279, %v3320
    %v3332 = vadd.f32 %v3282, %v3323
    %v3333 = vadd.f32 %v3285, %v3326
    %v3334 = vadd.f32 %v3288, %v3329
    %v3336 = vsel %vm1364, %v3137, 0
    %v3339 = vsel %vm1364, %v3140, 0
    %v3342 = vsel %vm1364, %v3143, 0
    %v3345 = vsel %vm1364, %v3146, 0
    %3347 = vmatpush.msra.mxu0 0.0
    %3348 = vmatpush.msra.mxu0 0.0
    %3349 = vmatpush.msra.mxu0 0.0
    %3350 = vmatpush.msra.mxu0 0.0
    %3351 = vmatpush.msra.mxu0 0.0
    %3352 = vmatpush.msra.mxu0 0.0
    %3353 = vmatpush.msra.mxu0 0.0
    %3354 = vmatpush.msra.mxu0 0.0
    %3355 = vmatpush.msra.mxu0 0.0
    %3356 = vmatpush.msra.mxu0 0.0
    %3357 = vmatpush.msra.mxu0 0.0
    %3358 = vmatpush.msra.mxu0 0.0
    %3359 = vmatpush.msra.mxu0 0.0
    %3360 = vmatpush.msra.mxu0 0.0
    %3361 = vmatpush.msra.mxu0 %v3072
    %3362 = vmatpush.msra.mxu0 %v3071
    %3363 = vmatmul.f32.gmra.mxu0 %v3336
    %v3364 = vpop.f32.mrf.mxu0
    %v3365 = vadd.f32 0.0, %v3364
    %3366 = vmatmul.f32.gmra.mxu0 %v3339
    %v3367 = vpop.f32.mrf.mxu0
    %v3368 = vadd.f32 0.0, %v3367
    %3369 = vmatmul.f32.gmra.mxu0 %v3342
    %v3370 = vpop.f32.mrf.mxu0
    %v3371 = vadd.f32 0.0, %v3370
    %3372 = vmatmul.f32.gmra.mxu0 %v3345
    %v3373 = vpop.f32.mrf.mxu0
    %v3374 = vadd.f32 0.0, %v3373
    %3375 = vdwg.mxu0
    %v3376 = vadd.f32 %v3331, %v3365
    %v3377 = vadd.f32 %v3332, %v3368
    %v3378 = vadd.f32 %v3333, %v3371
    %v3379 = vadd.f32 %v3334, %v3374
    %v3381 = vsel %vm1364, %v3149, 0
    %v3384 = vsel %vm1364, %v3152, 0
    %v3387 = vsel %vm1364, %v3155, 0
    %v3390 = vsel %vm1364, %v3158, 0
    %3392 = vmatpush.msra.mxu0 0.0
    %3393 = vmatpush.msra.mxu0 0.0
    %3394 = vmatpush.msra.mxu0 0.0
    %3395 = vmatpush.msra.mxu0 0.0
    %3396 = vmatpush.msra.mxu0 0.0
    %3397 = vmatpush.msra.mxu0 0.0
    %3398 = vmatpush.msra.mxu0 0.0
    %3399 = vmatpush.msra.mxu0 0.0
    %3400 = vmatpush.msra.mxu0 0.0
    %3401 = vmatpush.msra.mxu0 0.0
    %3402 = vmatpush.msra.mxu0 0.0
    %3403 = vmatpush.msra.mxu0 0.0
    %3404 = vmatpush.msra.mxu0 0.0
    %3405 = vmatpush.msra.mxu0 0.0
    %3406 = vmatpush.msra.mxu0 %v3074
    %3407 = vmatpush.msra.mxu0 %v3073
    %3408 = vmatmul.f32.gmra.mxu0 %v3381
    %v3409 = vpop.f32.mrf.mxu0
    %v3410 = vadd.f32 0.0, %v3409
    %3411 = vmatmul.f32.gmra.mxu0 %v3384
    %v3412 = vpop.f32.mrf.mxu0
    %v3413 = vadd.f32 0.0, %v3412
    %3414 = vmatmul.f32.gmra.mxu0 %v3387
    %v3415 = vpop.f32.mrf.mxu0
    %v3416 = vadd.f32 0.0, %v3415
    %3417 = vmatmul.f32.gmra.mxu0 %v3390
    %v3418 = vpop.f32.mrf.mxu0
    %v3419 = vadd.f32 0.0, %v3418
    %3420 = vdwg.mxu0
    %v3421 = vadd.f32 %v3376, %v3410
    %v3422 = vadd.f32 %v3377, %v3413
    %v3423 = vadd.f32 %v3378, %v3416
    %v3424 = vadd.f32 %v3379, %v3419
    %v3426 = vsel %vm1364, %v3161, 0
    %v3429 = vsel %vm1364, %v3164, 0
    %v3432 = vsel %vm1364, %v3167, 0
    %v3435 = vsel %vm1364, %v3170, 0
    %3437 = vmatpush.msra.mxu0 0.0
    %3438 = vmatpush.msra.mxu0 0.0
    %3439 = vmatpush.msra.mxu0 0.0
    %3440 = vmatpush.msra.mxu0 0.0
    %3441 = vmatpush.msra.mxu0 0.0
    %3442 = vmatpush.msra.mxu0 0.0
    %3443 = vmatpush.msra.mxu0 0.0
    %3444 = vmatpush.msra.mxu0 0.0
    %3445 = vmatpush.msra.mxu0 0.0
    %3446 = vmatpush.msra.mxu0 0.0
    %3447 = vmatpush.msra.mxu0 0.0
    %3448 = vmatpush.msra.mxu0 0.0
    %3449 = vmatpush.msra.mxu0 0.0
    %3450 = vmatpush.msra.mxu0 0.0
    %3451 = vmatpush.msra.mxu0 %v3076
    %3452 = vmatpush.msra.mxu0 %v3075
    %3453 = vmatmul.f32.gmra.mxu0 %v3426
    %v3454 = vpop.f32.mrf.mxu0
    %v3455 = vadd.f32 0.0, %v3454
    %3456 = vmatmul.f32.gmra.mxu0 %v3429
    %v3457 = vpop.f32.mrf.mxu0
    %v3458 = vadd.f32 0.0, %v3457
    %3459 = vmatmul.f32.gmra.mxu0 %v3432
    %v3460 = vpop.f32.mrf.mxu0
    %v3461 = vadd.f32 0.0, %v3460
    %3462 = vmatmul.f32.gmra.mxu0 %v3435
    %v3463 = vpop.f32.mrf.mxu0
    %v3464 = vadd.f32 0.0, %v3463
    %3465 = vdwg.mxu0
    %v3466 = vadd.f32 %v3421, %v3455
    %v3467 = vadd.f32 %v3422, %v3458
    %v3468 = vadd.f32 %v3423, %v3461
    %v3469 = vadd.f32 %v3424, %v3464
    %v3471 = vsel %vm1364, %v3173, 0
    %v3474 = vsel %vm1364, %v3176, 0
    %v3477 = vsel %vm1364, %v3179, 0
    %v3480 = vsel %vm1364, %v3182, 0
    %3482 = vmatpush.msra.mxu0 0.0
    %3483 = vmatpush.msra.mxu0 0.0
    %3484 = vmatpush.msra.mxu0 0.0
    %3485 = vmatpush.msra.mxu0 0.0
    %3486 = vmatpush.msra.mxu0 0.0
    %3487 = vmatpush.msra.mxu0 0.0
    %3488 = vmatpush.msra.mxu0 0.0
    %3489 = vmatpush.msra.mxu0 0.0
    %3490 = vmatpush.msra.mxu0 0.0
    %3491 = vmatpush.msra.mxu0 0.0
    %3492 = vmatpush.msra.mxu0 0.0
    %3493 = vmatpush.msra.mxu0 0.0
    %3494 = vmatpush.msra.mxu0 0.0
    %3495 = vmatpush.msra.mxu0 0.0
    %3496 = vmatpush.msra.mxu0 %v3078
    %3497 = vmatpush.msra.mxu0 %v3077
    %3498 = vmatmul.f32.gmra.mxu0 %v3471
    %v3499 = vpop.f32.mrf.mxu0
    %v3500 = vadd.f32 0.0, %v3499
    %3501 = vmatmul.f32.gmra.mxu0 %v3474
    %v3502 = vpop.f32.mrf.mxu0
    %v3503 = vadd.f32 0.0, %v3502
    %3504 = vmatmul.f32.gmra.mxu0 %v3477
    %v3505 = vpop.f32.mrf.mxu0
    %v3506 = vadd.f32 0.0, %v3505
    %3507 = vmatmul.f32.gmra.mxu0 %v3480
    %v3508 = vpop.f32.mrf.mxu0
    %v3509 = vadd.f32 0.0, %v3508
    %3510 = vdwg.mxu0
    %v3511 = vadd.f32 %v3466, %v3500
    %v3512 = vadd.f32 %v3467, %v3503
    %v3513 = vadd.f32 %v3468, %v3506
    %v3514 = vadd.f32 %v3469, %v3509
    %v3516 = vsel %vm1364, %v3185, 0
    %v3519 = vsel %vm1364, %v3188, 0
    %v3522 = vsel %vm1364, %v3191, 0
    %v3525 = vsel %vm1364, %v3194, 0
    %3527 = vmatpush.msra.mxu0 0.0
    %3528 = vmatpush.msra.mxu0 0.0
    %3529 = vmatpush.msra.mxu0 0.0
    %3530 = vmatpush.msra.mxu0 0.0
    %3531 = vmatpush.msra.mxu0 0.0
    %3532 = vmatpush.msra.mxu0 0.0
    %3533 = vmatpush.msra.mxu0 0.0
    %3534 = vmatpush.msra.mxu0 0.0
    %3535 = vmatpush.msra.mxu0 0.0
    %3536 = vmatpush.msra.mxu0 0.0
    %3537 = vmatpush.msra.mxu0 0.0
    %3538 = vmatpush.msra.mxu0 0.0
    %3539 = vmatpush.msra.mxu0 0.0
    %3540 = vmatpush.msra.mxu0 0.0
    %3541 = vmatpush.msra.mxu0 %v3080
    %3542 = vmatpush.msra.mxu0 %v3079
    %3543 = vmatmul.f32.gmra.mxu0 %v3516
    %v3544 = vpop.f32.mrf.mxu0
    %v3545 = vadd.f32 0.0, %v3544
    %3546 = vmatmul.f32.gmra.mxu0 %v3519
    %v3547 = vpop.f32.mrf.mxu0
    %v3548 = vadd.f32 0.0, %v3547
    %3549 = vmatmul.f32.gmra.mxu0 %v3522
    %v3550 = vpop.f32.mrf.mxu0
    %v3551 = vadd.f32 0.0, %v3550
    %3552 = vmatmul.f32.gmra.mxu0 %v3525
    %v3553 = vpop.f32.mrf.mxu0
    %v3554 = vadd.f32 0.0, %v3553
    %3555 = vdwg.mxu0
    %v3556 = vadd.f32 %v3511, %v3545
    %v3557 = vadd.f32 %v3512, %v3548
    %v3558 = vadd.f32 %v3513, %v3551
    %v3559 = vadd.f32 %v3514, %v3554
    %v3561 = vsel %vm1364, %v3197, 0
    %v3564 = vsel %vm1364, %v3200, 0
    %v3567 = vsel %vm1364, %v3203, 0
    %v3570 = vsel %vm1364, %v3206, 0
    %3572 = vmatpush.msra.mxu0 0.0
    %3573 = vmatpush.msra.mxu0 0.0
    %3574 = vmatpush.msra.mxu0 0.0
    %3575 = vmatpush.msra.mxu0 0.0
    %3576 = vmatpush.msra.mxu0 0.0
    %3577 = vmatpush.msra.mxu0 0.0
    %3578 = vmatpush.msra.mxu0 0.0
    %3579 = vmatpush.msra.mxu0 0.0
    %3580 = vmatpush.msra.mxu0 0.0
    %3581 = vmatpush.msra.mxu0 0.0
    %3582 = vmatpush.msra.mxu0 0.0
    %3583 = vmatpush.msra.mxu0 0.0
    %3584 = vmatpush.msra.mxu0 0.0
    %3585 = vmatpush.msra.mxu0 0.0
    %3586 = vmatpush.msra.mxu0 %v3082
    %3587 = vmatpush.msra.mxu0 %v3081
    %3588 = vmatmul.f32.gmra.mxu0 %v3561
    %v3589 = vpop.f32.mrf.mxu0
    %v3590 = vadd.f32 0.0, %v3589
    %3591 = vmatmul.f32.gmra.mxu0 %v3564
    %v3592 = vpop.f32.mrf.mxu0
    %v3593 = vadd.f32 0.0, %v3592
    %3594 = vmatmul.f32.gmra.mxu0 %v3567
    %v3595 = vpop.f32.mrf.mxu0
    %v3596 = vadd.f32 0.0, %v3595
    %3597 = vmatmul.f32.gmra.mxu0 %v3570
    %v3598 = vpop.f32.mrf.mxu0
    %v3599 = vadd.f32 0.0, %v3598
    %3600 = vdwg.mxu0
    %v3601 = vadd.f32 %v3556, %v3590
    %v3602 = vadd.f32 %v3557, %v3593
    %v3603 = vadd.f32 %v3558, %v3596
    %v3604 = vadd.f32 %v3559, %v3599
    %v3605 = vand.u32 2147483647, %v3601
    %v3606 = vand.u32 2147483647, %v3602
    %v3607 = vand.u32 2147483647, %v3603
    %v3608 = vand.u32 2147483647, %v3604
    %v3609 = vsub.f32 0.0, %v3605
    %v3610 = vsub.f32 0.0, %v3606
    %v3611 = vsub.f32 0.0, %v3607
    %v3612 = vsub.f32 0.0, %v3608
    %v3613 = vmul.f32 %v3609, 1.442695
    %v3614 = vpow.pop %v3613
    %v3615 = vmul.f32 %v3610, 1.442695
    %v3616 = vpow.pop %v3615
    %v3617 = vmul.f32 %v3611, 1.442695
    %v3618 = vpow.pop %v3617
    %v3619 = vmul.f32 %v3612, 1.442695
    %v3620 = vpow.pop %v3619
    %v3621 = vadd.f32 %v3614, 1.0
    %v3622 = vadd.f32 %v3616, 1.0
    %v3623 = vadd.f32 %v3618, 1.0
    %v3624 = vadd.f32 %v3620, 1.0
    %v3625 = vrcp.pop %v3621
    %v3626 = vmul.f32 %v3621, %v3625
    %v3627 = vsub.f32 1.0, %v3626
    %v3628 = vmul.f32 %v3625, %v3627
    %v3629 = vadd.f32 %v3625, %v3628
    %vm3630 = vweird.f32 %v3621
    %vm3631 = vweird.f32 %v3625
    %vm3632 = vmor %vm3630, %vm3631
    %v3633 = vsel %vm3632, %v3625, %v3629
    %v3634 = vand.u32 2147483647, %v3621
    %vm3635 = vcmp.eq.f32.partialorder %v3634, 8.507059e+37
    %v3636 = vand.u32 %v3621, 2147483648
    %v3637 = vor.u32 1.1754944e-38, %v3636
    %v3638 = vsel %vm3635, %v3637, %v3633
    %v3639 = vmul.f32 1.0, %v3638
    %v3640 = vrcp.pop %v3622
    %v3641 = vmul.f32 %v3622, %v3640
    %v3642 = vsub.f32 1.0, %v3641
    %v3643 = vmul.f32 %v3640, %v3642
    %v3644 = vadd.f32 %v3640, %v3643
    %vm3645 = vweird.f32 %v3622
    %vm3646 = vweird.f32 %v3640
    %vm3647 = vmor %vm3645, %vm3646
    %v3648 = vsel %vm3647, %v3640, %v3644
    %v3649 = vand.u32 2147483647, %v3622
    %vm3650 = vcmp.eq.f32.partialorder %v3649, 8.507059e+37
    %v3651 = vand.u32 %v3622, 2147483648
    %v3652 = vor.u32 1.1754944e-38, %v3651
    %v3653 = vsel %vm3650, %v3652, %v3648
    %v3654 = vmul.f32 1.0, %v3653
    %v3655 = vrcp.pop %v3623
    %v3656 = vmul.f32 %v3623, %v3655
    %v3657 = vsub.f32 1.0, %v3656
    %v3658 = vmul.f32 %v3655, %v3657
    %v3659 = vadd.f32 %v3655, %v3658
    %vm3660 = vweird.f32 %v3623
    %vm3661 = vweird.f32 %v3655
    %vm3662 = vmor %vm3660, %vm3661
    %v3663 = vsel %vm3662, %v3655, %v3659
    %v3664 = vand.u32 2147483647, %v3623
    %vm3665 = vcmp.eq.f32.partialorder %v3664, 8.507059e+37
    %v3666 = vand.u32 %v3623, 2147483648
    %v3667 = vor.u32 1.1754944e-38, %v3666
    %v3668 = vsel %vm3665, %v3667, %v3663
    %v3669 = vmul.f32 1.0, %v3668
    %v3670 = vrcp.pop %v3624
    %v3671 = vmul.f32 %v3624, %v3670
    %v3672 = vsub.f32 1.0, %v3671
    %v3673 = vmul.f32 %v3670, %v3672
    %v3674 = vadd.f32 %v3670, %v3673
    %vm3675 = vweird.f32 %v3624
    %vm3676 = vweird.f32 %v3670
    %vm3677 = vmor %vm3675, %vm3676
    %v3678 = vsel %vm3677, %v3670, %v3674
    %v3679 = vand.u32 2147483647, %v3624
    %vm3680 = vcmp.eq.f32.partialorder %v3679, 8.507059e+37
    %v3681 = vand.u32 %v3624, 2147483648
    %v3682 = vor.u32 1.1754944e-38, %v3681
    %v3683 = vsel %vm3680, %v3682, %v3678
    %v3684 = vmul.f32 1.0, %v3683
    %vm3685 = vcmp.ge.f32.partialorder %v3601, 0.0
    %vm3686 = vcmp.ge.f32.partialorder %v3602, 0.0
    %vm3687 = vcmp.ge.f32.partialorder %v3603, 0.0
    %vm3688 = vcmp.ge.f32.partialorder %v3604, 0.0
    %v3689 = vmul.f32 %v3614, %v3639
    %v3690 = vmul.f32 %v3616, %v3654
    %v3691 = vmul.f32 %v3618, %v3669
    %v3692 = vmul.f32 %v3620, %v3684
    %v3693 = vsel %vm3685, %v3639, %v3689
    %v3694 = vsel %vm3686, %v3654, %v3690
    %v3695 = vsel %vm3687, %v3669, %v3691
    %v3696 = vsel %vm3688, %v3684, %v3692
    %v3697 = vmul.f32 %v3601, %v3693
    %v3698 = vmul.f32 %v3602, %v3694
    %v3699 = vmul.f32 %v3603, %v3695
    %v3700 = vmul.f32 %v3604, %v3696
    %v3701 = vld [vmem:[%s3 + $0x160] sm:$0xff]
    %v3702 = vld [vmem:[%s3 + $0x168] sm:$0xff]
    %v3703 = vld [vmem:[%s3 + $0x170] sm:$0xff]
    %v3704 = vld [vmem:[%s3 + $0x178] sm:$0xff]
    %vm3705 = vcmask 261120
    %v3707 = vsel %vm3705, %v3697, 0
    %v3710 = vsel %vm3705, %v3698, 0
    %v3713 = vsel %vm3705, %v3699, 0
    %v3716 = vsel %vm3705, %v3700, 0
    %3718 = vmatpush.msra.mxu0 0.0
    %3719 = vmatpush.msra.mxu0 0.0
    %3720 = vmatpush.msra.mxu0 0.0
    %3721 = vmatpush.msra.mxu0 0.0
    %3722 = vmatpush.msra.mxu0 0.0
    %3723 = vmatpush.msra.mxu0 0.0
    %3724 = vmatpush.msra.mxu0 0.0
    %3725 = vmatpush.msra.mxu0 0.0
    %3726 = vmatpush.msra.mxu0 0.0
    %3727 = vmatpush.msra.mxu0 0.0
    %3728 = vmatpush.msra.mxu0 0.0
    %3729 = vmatpush.msra.mxu0 0.0
    %3730 = vmatpush.msra.mxu0 %v3704
    %3731 = vmatpush.msra.mxu0 %v3703
    %3732 = vmatpush.msra.mxu0 %v3702
    %3733 = vmatpush.msra.mxu0 %v3701
    %3734 = vmatmul.f32.gmra.mxu0 %v3707
    %v3735 = vpop.f32.mrf.mxu0
    %v3736 = vadd.f32 0.0, %v3735
    %3737 = vmatmul.f32.gmra.mxu0 %v3710
    %v3738 = vpop.f32.mrf.mxu0
    %v3739 = vadd.f32 0.0, %v3738
    %3740 = vmatmul.f32.gmra.mxu0 %v3713
    %v3741 = vpop.f32.mrf.mxu0
    %v3742 = vadd.f32 0.0, %v3741
    %3743 = vmatmul.f32.gmra.mxu0 %v3716
    %v3744 = vpop.f32.mrf.mxu0
    %v3745 = vadd.f32 0.0, %v3744
    %3746 = vdwg.mxu0
    %v3747 = vld [vmem:[%s4 + $0x2d0] sm:$0xf]
    %v3748 = vld [vmem:[%s4 + $0x2d4] sm:$0xf]
    %v3749 = vld [vmem:[%s4 + $0x2d8] sm:$0xf]
    %v3750 = vld [vmem:[%s4 + $0x2dc] sm:$0xf]
    %v3751 = vld [vmem:[%s4 + $0x2e0] sm:$0xf]
    %v3752 = vld [vmem:[%s4 + $0x2e4] sm:$0xf]
    %v3753 = vld [vmem:[%s4 + $0x2e8] sm:$0xf]
    %v3754 = vld [vmem:[%s4 + $0x2ec] sm:$0xf]
    %v3755 = vld [vmem:[%s4 + $0x2f0] sm:$0xf]
    %v3756 = vld [vmem:[%s4 + $0x2f4] sm:$0xf]
    %v3757 = vld [vmem:[%s4 + $0x2f8] sm:$0xf]
    %v3758 = vld [vmem:[%s4 + $0x2fc] sm:$0xf]
    %v3759 = vld [vmem:[%s4 + $0x300] sm:$0xf]
    %v3760 = vld [vmem:[%s4 + $0x304] sm:$0xf]
    %v3761 = vld [vmem:[%s4 + $0x308] sm:$0xf]
    %v3762 = vld [vmem:[%s4 + $0x30c] sm:$0xf]
    %v3763 = vld [vmem:[%s4 + $0x310] sm:$0xf]
    %v3764 = vld [vmem:[%s4 + $0x314] sm:$0xf]
    %v3765 = vld [vmem:[%s4 + $0x318] sm:$0xf]
    %v3766 = vld [vmem:[%s4 + $0x31c] sm:$0xf]
    %v3767 = vld [vmem:[%s4 + $0x320] sm:$0xf]
    %v3768 = vld [vmem:[%s4 + $0x324] sm:$0xf]
    %v3769 = vld [vmem:[%s4 + $0x328] sm:$0xf]
    %v3770 = vld [vmem:[%s4 + $0x32c] sm:$0xf]
    %v3771 = vld [vmem:[%s4 + $0x330] sm:$0xf]
    %v3772 = vld [vmem:[%s4 + $0x334] sm:$0xf]
    %v3773 = vld [vmem:[%s4 + $0x338] sm:$0xf]
    %v3774 = vld [vmem:[%s4 + $0x33c] sm:$0xf]
    %v3775 = vld [vmem:[%s4 + $0x340] sm:$0xf]
    %v3776 = vld [vmem:[%s4 + $0x344] sm:$0xf]
    %v3777 = vld [vmem:[%s4 + $0x348] sm:$0xf]
    %v3778 = vld [vmem:[%s4 + $0x34c] sm:$0xf]
    %v3779 = vld [vmem:[%s4 + $0x350] sm:$0xf]
    %v3780 = vld [vmem:[%s4 + $0x354] sm:$0xf]
    %v3781 = vld [vmem:[%s4 + $0x358] sm:$0xf]
    %v3782 = vld [vmem:[%s4 + $0x35c] sm:$0xf]
    %v3783 = vunpack.c.l.bf16 %v3747
    %v3784 = vunpack.c.l.bf16 %v3748
    %v3785 = vunpack.c.l.bf16 %v3749
    %v3786 = vunpack.c.l.bf16 %v3750
    %v3787 = vunpack.c.l.bf16 %v3751
    %v3788 = vunpack.c.l.bf16 %v3752
    %v3789 = vunpack.c.l.bf16 %v3753
    %v3790 = vunpack.c.l.bf16 %v3754
    %v3791 = vunpack.c.l.bf16 %v3755
    %v3792 = vunpack.c.l.bf16 %v3756
    %v3793 = vunpack.c.l.bf16 %v3757
    %v3794 = vunpack.c.l.bf16 %v3758
    %v3795 = vunpack.c.l.bf16 %v3759
    %v3796 = vunpack.c.l.bf16 %v3760
    %v3797 = vunpack.c.l.bf16 %v3761
    %v3798 = vunpack.c.l.bf16 %v3762
    %v3799 = vunpack.c.l.bf16 %v3763
    %v3800 = vunpack.c.l.bf16 %v3764
    %v3801 = vunpack.c.l.bf16 %v3765
    %v3802 = vunpack.c.l.bf16 %v3766
    %v3803 = vunpack.c.l.bf16 %v3767
    %v3804 = vunpack.c.l.bf16 %v3768
    %v3805 = vunpack.c.l.bf16 %v3769
    %v3806 = vunpack.c.l.bf16 %v3770
    %v3807 = vunpack.c.l.bf16 %v3771
    %v3808 = vunpack.c.l.bf16 %v3772
    %v3809 = vunpack.c.l.bf16 %v3773
    %v3810 = vunpack.c.l.bf16 %v3774
    %v3811 = vunpack.c.l.bf16 %v3775
    %v3812 = vunpack.c.l.bf16 %v3776
    %v3813 = vunpack.c.l.bf16 %v3777
    %v3814 = vunpack.c.l.bf16 %v3778
    %v3815 = vunpack.c.l.bf16 %v3779
    %v3816 = vunpack.c.l.bf16 %v3780
    %v3817 = vunpack.c.l.bf16 %v3781
    %v3818 = vunpack.c.l.bf16 %v3782
    %v3819 = vld [vmem:[%s3 + $0x180] sm:$0xff]
    %v3820 = vld [vmem:[%s3 + $0x188] sm:$0xff]
    %v3821 = vld [vmem:[%s3 + $0x190] sm:$0xff]
    %v3822 = vld [vmem:[%s3 + $0x198] sm:$0xff]
    %v3823 = vld [vmem:[%s3 + $0x1a0] sm:$0xff]
    %v3824 = vld [vmem:[%s3 + $0x1a8] sm:$0xff]
    %v3825 = vld [vmem:[%s3 + $0x1b0] sm:$0xff]
    %v3826 = vld [vmem:[%s3 + $0x1b8] sm:$0xff]
    %v3827 = vld [vmem:[%s3 + $0x1c0] sm:$0xff]
    %v3828 = vld [vmem:[%s3 + $0x1c8] sm:$0xff]
    %v3829 = vld [vmem:[%s3 + $0x1d0] sm:$0xff]
    %v3830 = vld [vmem:[%s3 + $0x1d8] sm:$0xff]
    %v3831 = vld [vmem:[%s3 + $0x1e0] sm:$0xff]
    %v3832 = vld [vmem:[%s3 + $0x1e8] sm:$0xff]
    %v3833 = vld [vmem:[%s3 + $0x1f0] sm:$0xff]
    %v3834 = vld [vmem:[%s3 + $0x1f8] sm:$0xff]
    %v3835 = vld [vmem:[%s3 + $0x200] sm:$0xff]
    %v3836 = vld [vmem:[%s3 + $0x208] sm:$0xff]
    %v3837 = vld [vmem:[%s3 + $0x210] sm:$0xff]
    %v3838 = vld [vmem:[%s3 + $0x218] sm:$0xff]
    %v3839 = vld [vmem:[%s3 + $0x220] sm:$0xff]
    %v3840 = vld [vmem:[%s3 + $0x228] sm:$0xff]
    %v3841 = vld [vmem:[%s3 + $0x230] sm:$0xff]
    %v3842 = vld [vmem:[%s3 + $0x238] sm:$0xff]
    %v3843 = vld [vmem:[%s3 + $0x240] sm:$0xff]
    %v3844 = vld [vmem:[%s3 + $0x248] sm:$0xff]
    %v3845 = vld [vmem:[%s3 + $0x250] sm:$0xff]
    %v3846 = vld [vmem:[%s3 + $0x258] sm:$0xff]
    %v3847 = vld [vmem:[%s3 + $0x260] sm:$0xff]
    %v3848 = vld [vmem:[%s3 + $0x268] sm:$0xff]
    %v3849 = vld [vmem:[%s3 + $0x270] sm:$0xff]
    %v3850 = vld [vmem:[%s3 + $0x278] sm:$0xff]
    %v3851 = vld [vmem:[%s3 + $0x280] sm:$0xff]
    %v3852 = vld [vmem:[%s3 + $0x288] sm:$0xff]
    %v3853 = vld [vmem:[%s3 + $0x290] sm:$0xff]
    %v3854 = vld [vmem:[%s3 + $0x298] sm:$0xff]
    %v3856 = vsel %vm3705, %v3783, 0
    %v3859 = vsel %vm3705, %v3784, 0
    %v3862 = vsel %vm3705, %v3785, 0
    %v3865 = vsel %vm3705, %v3786, 0
    %v3868 = vsel %vm3705, %v3787, 0
    %v3871 = vsel %vm3705, %v3788, 0
    %v3874 = vsel %vm3705, %v3789, 0
    %v3877 = vsel %vm3705, %v3790, 0
    %v3880 = vsel %vm3705, %v3791, 0
    %v3883 = vsel %vm3705, %v3792, 0
    %v3886 = vsel %vm3705, %v3793, 0
    %v3889 = vsel %vm3705, %v3794, 0
    %v3892 = vsel %vm3705, %v3795, 0
    %v3895 = vsel %vm3705, %v3796, 0
    %v3898 = vsel %vm3705, %v3797, 0
    %v3901 = vsel %vm3705, %v3798, 0
    %v3904 = vsel %vm3705, %v3799, 0
    %v3907 = vsel %vm3705, %v3800, 0
    %v3910 = vsel %vm3705, %v3801, 0
    %v3913 = vsel %vm3705, %v3802, 0
    %v3916 = vsel %vm3705, %v3803, 0
    %v3919 = vsel %vm3705, %v3804, 0
    %v3922 = vsel %vm3705, %v3805, 0
    %v3925 = vsel %vm3705, %v3806, 0
    %v3928 = vsel %vm3705, %v3807, 0
    %v3931 = vsel %vm3705, %v3808, 0
    %v3934 = vsel %vm3705, %v3809, 0
    %v3937 = vsel %vm3705, %v3810, 0
    %v3940 = vsel %vm3705, %v3811, 0
    %v3943 = vsel %vm3705, %v3812, 0
    %v3946 = vsel %vm3705, %v3813, 0
    %v3949 = vsel %vm3705, %v3814, 0
    %v3952 = vsel %vm3705, %v3815, 0
    %v3955 = vsel %vm3705, %v3816, 0
    %v3958 = vsel %vm3705, %v3817, 0
    %v3961 = vsel %vm3705, %v3818, 0
    %3963 = vmatpush.msra.mxu0 0.0
    %3964 = vmatpush.msra.mxu0 0.0
    %3965 = vmatpush.msra.mxu0 0.0
    %3966 = vmatpush.msra.mxu0 0.0
    %3967 = vmatpush.msra.mxu0 0.0
    %3968 = vmatpush.msra.mxu0 0.0
    %3969 = vmatpush.msra.mxu0 0.0
    %3970 = vmatpush.msra.mxu0 0.0
    %3971 = vmatpush.msra.mxu0 0.0
    %3972 = vmatpush.msra.mxu0 0.0
    %3973 = vmatpush.msra.mxu0 0.0
    %3974 = vmatpush.msra.mxu0 0.0
    %3975 = vmatpush.msra.mxu0 %v3745
    %3976 = vmatpush.msra.mxu0 %v3742
    %3977 = vmatpush.msra.mxu0 %v3739
    %3978 = vmatpush.msra.mxu0 %v3736
    %3979 = vmatmul.f32.gmra.mxu0 %v3856
    %v3980 = vpop.f32.mrf.mxu0
    %v3981 = vadd.f32 0.0, %v3980
    %3982 = vmatmul.f32.gmra.mxu0 %v3859
    %v3983 = vpop.f32.mrf.mxu0
    %v3984 = vadd.f32 0.0, %v3983
    %3985 = vmatmul.f32.gmra.mxu0 %v3862
    %v3986 = vpop.f32.mrf.mxu0
    %v3987 = vadd.f32 0.0, %v3986
    %3988 = vmatmul.f32.gmra.mxu0 %v3865
    %v3989 = vpop.f32.mrf.mxu0
    %v3990 = vadd.f32 0.0, %v3989
    %3991 = vmatmul.f32.gmra.mxu0 %v3868
    %v3992 = vpop.f32.mrf.mxu0
    %v3993 = vadd.f32 0.0, %v3992
    %3994 = vmatmul.f32.gmra.mxu0 %v3871
    %v3995 = vpop.f32.mrf.mxu0
    %v3996 = vadd.f32 0.0, %v3995
    %3997 = vmatmul.f32.gmra.mxu0 %v3874
    %v3998 = vpop.f32.mrf.mxu0
    %v3999 = vadd.f32 0.0, %v3998
    %4000 = vmatmul.f32.gmra.mxu0 %v3877
    %v4001 = vpop.f32.mrf.mxu0
    %v4002 = vadd.f32 0.0, %v4001
    %4003 = vmatmul.f32.gmra.mxu0 %v3880
    %v4004 = vpop.f32.mrf.mxu0
    %v4005 = vadd.f32 0.0, %v4004
    %4006 = vmatmul.f32.gmra.mxu0 %v3883
    %v4007 = vpop.f32.mrf.mxu0
    %v4008 = vadd.f32 0.0, %v4007
    %4009 = vmatmul.f32.gmra.mxu0 %v3886
    %v4010 = vpop.f32.mrf.mxu0
    %v4011 = vadd.f32 0.0, %v4010
    %4012 = vmatmul.f32.gmra.mxu0 %v3889
    %v4013 = vpop.f32.mrf.mxu0
    %v4014 = vadd.f32 0.0, %v4013
    %4015 = vmatmul.f32.gmra.mxu0 %v3892
    %v4016 = vpop.f32.mrf.mxu0
    %v4017 = vadd.f32 0.0, %v4016
    %4018 = vmatmul.f32.gmra.mxu0 %v3895
    %v4019 = vpop.f32.mrf.mxu0
    %v4020 = vadd.f32 0.0, %v4019
    %4021 = vmatmul.f32.gmra.mxu0 %v3898
    %v4022 = vpop.f32.mrf.mxu0
    %v4023 = vadd.f32 0.0, %v4022
    %4024 = vmatmul.f32.gmra.mxu0 %v3901
    %v4025 = vpop.f32.mrf.mxu0
    %v4026 = vadd.f32 0.0, %v4025
    %4027 = vmatmul.f32.gmra.mxu0 %v3904
    %v4028 = vpop.f32.mrf.mxu0
    %v4029 = vadd.f32 0.0, %v4028
    %4030 = vmatmul.f32.gmra.mxu0 %v3907
    %v4031 = vpop.f32.mrf.mxu0
    %v4032 = vadd.f32 0.0, %v4031
    %4033 = vmatmul.f32.gmra.mxu0 %v3910
    %v4034 = vpop.f32.mrf.mxu0
    %v4035 = vadd.f32 0.0, %v4034
    %4036 = vmatmul.f32.gmra.mxu0 %v3913
    %v4037 = vpop.f32.mrf.mxu0
    %v4038 = vadd.f32 0.0, %v4037
    %4039 = vmatmul.f32.gmra.mxu0 %v3916
    %v4040 = vpop.f32.mrf.mxu0
    %v4041 = vadd.f32 0.0, %v4040
    %4042 = vmatmul.f32.gmra.mxu0 %v3919
    %v4043 = vpop.f32.mrf.mxu0
    %v4044 = vadd.f32 0.0, %v4043
    %4045 = vmatmul.f32.gmra.mxu0 %v3922
    %v4046 = vpop.f32.mrf.mxu0
    %v4047 = vadd.f32 0.0, %v4046
    %4048 = vmatmul.f32.gmra.mxu0 %v3925
    %v4049 = vpop.f32.mrf.mxu0
    %v4050 = vadd.f32 0.0, %v4049
    %4051 = vmatmul.f32.gmra.mxu0 %v3928
    %v4052 = vpop.f32.mrf.mxu0
    %v4053 = vadd.f32 0.0, %v4052
    %4054 = vmatmul.f32.gmra.mxu0 %v3931
    %v4055 = vpop.f32.mrf.mxu0
    %v4056 = vadd.f32 0.0, %v4055
    %4057 = vmatmul.f32.gmra.mxu0 %v3934
    %v4058 = vpop.f32.mrf.mxu0
    %v4059 = vadd.f32 0.0, %v4058
    %4060 = vmatmul.f32.gmra.mxu0 %v3937
    %v4061 = vpop.f32.mrf.mxu0
    %v4062 = vadd.f32 0.0, %v4061
    %4063 = vmatmul.f32.gmra.mxu0 %v3940
    %v4064 = vpop.f32.mrf.mxu0
    %v4065 = vadd.f32 0.0, %v4064
    %4066 = vmatmul.f32.gmra.mxu0 %v3943
    %v4067 = vpop.f32.mrf.mxu0
    %v4068 = vadd.f32 0.0, %v4067
    %4069 = vmatmul.f32.gmra.mxu0 %v3946
    %v4070 = vpop.f32.mrf.mxu0
    %v4071 = vadd.f32 0.0, %v4070
    %4072 = vmatmul.f32.gmra.mxu0 %v3949
    %v4073 = vpop.f32.mrf.mxu0
    %v4074 = vadd.f32 0.0, %v4073
    %4075 = vmatmul.f32.gmra.mxu0 %v3952
    %v4076 = vpop.f32.mrf.mxu0
    %v4077 = vadd.f32 0.0, %v4076
    %4078 = vmatmul.f32.gmra.mxu0 %v3955
    %v4079 = vpop.f32.mrf.mxu0
    %v4080 = vadd.f32 0.0, %v4079
    %4081 = vmatmul.f32.gmra.mxu0 %v3958
    %v4082 = vpop.f32.mrf.mxu0
    %v4083 = vadd.f32 0.0, %v4082
    %4084 = vmatmul.f32.gmra.mxu0 %v3961
    %v4085 = vpop.f32.mrf.mxu0
    %v4086 = vadd.f32 0.0, %v4085
    %4087 = vdwg.mxu0
    %v4089 = vsel %vm3705, %v3993, 0
    %v4092 = vsel %vm3705, %v3996, 0
    %v4095 = vsel %vm3705, %v3999, 0
    %v4098 = vsel %vm3705, %v4002, 0
    %4100 = vmatpush.msra.mxu0 0.0
    %4101 = vmatpush.msra.mxu0 0.0
    %4102 = vmatpush.msra.mxu0 0.0
    %4103 = vmatpush.msra.mxu0 0.0
    %4104 = vmatpush.msra.mxu0 0.0
    %4105 = vmatpush.msra.mxu0 0.0
    %4106 = vmatpush.msra.mxu0 0.0
    %4107 = vmatpush.msra.mxu0 0.0
    %4108 = vmatpush.msra.mxu0 0.0
    %4109 = vmatpush.msra.mxu0 0.0
    %4110 = vmatpush.msra.mxu0 0.0
    %4111 = vmatpush.msra.mxu0 0.0
    %4112 = vmatpush.msra.mxu0 %v3826
    %4113 = vmatpush.msra.mxu0 %v3825
    %4114 = vmatpush.msra.mxu0 %v3824
    %4115 = vmatpush.msra.mxu0 %v3823
    %4116 = vmatmul.f32.gmra.mxu0 %v4089
    %v4117 = vpop.f32.mrf.mxu0
    %v4118 = vadd.f32 0.0, %v4117
    %4119 = vmatmul.f32.gmra.mxu0 %v4092
    %v4120 = vpop.f32.mrf.mxu0
    %v4121 = vadd.f32 0.0, %v4120
    %4122 = vmatmul.f32.gmra.mxu0 %v4095
    %v4123 = vpop.f32.mrf.mxu0
    %v4124 = vadd.f32 0.0, %v4123
    %4125 = vmatmul.f32.gmra.mxu0 %v4098
    %v4126 = vpop.f32.mrf.mxu0
    %v4127 = vadd.f32 0.0, %v4126
    %4128 = vdwg.mxu0
    %v4130 = vsel %vm3705, %v3981, 0
    %v4133 = vsel %vm3705, %v3984, 0
    %v4136 = vsel %vm3705, %v3987, 0
    %v4139 = vsel %vm3705, %v3990, 0
    %4141 = vmatpush.msra.mxu0 0.0
    %4142 = vmatpush.msra.mxu0 0.0
    %4143 = vmatpush.msra.mxu0 0.0
    %4144 = vmatpush.msra.mxu0 0.0
    %4145 = vmatpush.msra.mxu0 0.0
    %4146 = vmatpush.msra.mxu0 0.0
    %4147 = vmatpush.msra.mxu0 0.0
    %4148 = vmatpush.msra.mxu0 0.0
    %4149 = vmatpush.msra.mxu0 0.0
    %4150 = vmatpush.msra.mxu0 0.0
    %4151 = vmatpush.msra.mxu0 0.0
    %4152 = vmatpush.msra.mxu0 0.0
    %4153 = vmatpush.msra.mxu0 %v3822
    %4154 = vmatpush.msra.mxu0 %v3821
    %4155 = vmatpush.msra.mxu0 %v3820
    %4156 = vmatpush.msra.mxu0 %v3819
    %4157 = vmatmul.f32.gmra.mxu0 %v4130
    %v4158 = vpop.f32.mrf.mxu0
    %v4159 = vadd.f32 %v4118, %v4158
    %4160 = vmatmul.f32.gmra.mxu0 %v4133
    %v4161 = vpop.f32.mrf.mxu0
    %v4162 = vadd.f32 %v4121, %v4161
    %4163 = vmatmul.f32.gmra.mxu0 %v4136
    %v4164 = vpop.f32.mrf.mxu0
    %v4165 = vadd.f32 %v4124, %v4164
    %4166 = vmatmul.f32.gmra.mxu0 %v4139
    %v4167 = vpop.f32.mrf.mxu0
    %v4168 = vadd.f32 %v4127, %v4167
    %4169 = vdwg.mxu0
    %v4171 = vsel %vm3705, %v4005, 0
    %v4174 = vsel %vm3705, %v4008, 0
    %v4177 = vsel %vm3705, %v4011, 0
    %v4180 = vsel %vm3705, %v4014, 0
    %4182 = vmatpush.msra.mxu0 0.0
    %4183 = vmatpush.msra.mxu0 0.0
    %4184 = vmatpush.msra.mxu0 0.0
    %4185 = vmatpush.msra.mxu0 0.0
    %4186 = vmatpush.msra.mxu0 0.0
    %4187 = vmatpush.msra.mxu0 0.0
    %4188 = vmatpush.msra.mxu0 0.0
    %4189 = vmatpush.msra.mxu0 0.0
    %4190 = vmatpush.msra.mxu0 0.0
    %4191 = vmatpush.msra.mxu0 0.0
    %4192 = vmatpush.msra.mxu0 0.0
    %4193 = vmatpush.msra.mxu0 0.0
    %4194 = vmatpush.msra.mxu0 %v3830
    %4195 = vmatpush.msra.mxu0 %v3829
    %4196 = vmatpush.msra.mxu0 %v3828
    %4197 = vmatpush.msra.mxu0 %v3827
    %4198 = vmatmul.f32.gmra.mxu0 %v4171
    %v4199 = vpop.f32.mrf.mxu0
    %v4200 = vadd.f32 0.0, %v4199
    %4201 = vmatmul.f32.gmra.mxu0 %v4174
    %v4202 = vpop.f32.mrf.mxu0
    %v4203 = vadd.f32 0.0, %v4202
    %4204 = vmatmul.f32.gmra.mxu0 %v4177
    %v4205 = vpop.f32.mrf.mxu0
    %v4206 = vadd.f32 0.0, %v4205
    %4207 = vmatmul.f32.gmra.mxu0 %v4180
    %v4208 = vpop.f32.mrf.mxu0
    %v4209 = vadd.f32 0.0, %v4208
    %4210 = vdwg.mxu0
    %v4211 = vadd.f32 %v4159, %v4200
    %v4212 = vadd.f32 %v4162, %v4203
    %v4213 = vadd.f32 %v4165, %v4206
    %v4214 = vadd.f32 %v4168, %v4209
    %v4216 = vsel %vm3705, %v4017, 0
    %v4219 = vsel %vm3705, %v4020, 0
    %v4222 = vsel %vm3705, %v4023, 0
    %v4225 = vsel %vm3705, %v4026, 0
    %4227 = vmatpush.msra.mxu0 0.0
    %4228 = vmatpush.msra.mxu0 0.0
    %4229 = vmatpush.msra.mxu0 0.0
    %4230 = vmatpush.msra.mxu0 0.0
    %4231 = vmatpush.msra.mxu0 0.0
    %4232 = vmatpush.msra.mxu0 0.0
    %4233 = vmatpush.msra.mxu0 0.0
    %4234 = vmatpush.msra.mxu0 0.0
    %4235 = vmatpush.msra.mxu0 0.0
    %4236 = vmatpush.msra.mxu0 0.0
    %4237 = vmatpush.msra.mxu0 0.0
    %4238 = vmatpush.msra.mxu0 0.0
    %4239 = vmatpush.msra.mxu0 %v3834
    %4240 = vmatpush.msra.mxu0 %v3833
    %4241 = vmatpush.msra.mxu0 %v3832
    %4242 = vmatpush.msra.mxu0 %v3831
    %4243 = vmatmul.f32.gmra.mxu0 %v4216
    %v4244 = vpop.f32.mrf.mxu0
    %v4245 = vadd.f32 0.0, %v4244
    %4246 = vmatmul.f32.gmra.mxu0 %v4219
    %v4247 = vpop.f32.mrf.mxu0
    %v4248 = vadd.f32 0.0, %v4247
    %4249 = vmatmul.f32.gmra.mxu0 %v4222
    %v4250 = vpop.f32.mrf.mxu0
    %v4251 = vadd.f32 0.0, %v4250
    %4252 = vmatmul.f32.gmra.mxu0 %v4225
    %v4253 = vpop.f32.mrf.mxu0
    %v4254 = vadd.f32 0.0, %v4253
    %4255 = vdwg.mxu0
    %v4256 = vadd.f32 %v4211, %v4245
    %v4257 = vadd.f32 %v4212, %v4248
    %v4258 = vadd.f32 %v4213, %v4251
    %v4259 = vadd.f32 %v4214, %v4254
    %v4261 = vsel %vm3705, %v4029, 0
    %v4264 = vsel %vm3705, %v4032, 0
    %v4267 = vsel %vm3705, %v4035, 0
    %v4270 = vsel %vm3705, %v4038, 0
    %4272 = vmatpush.msra.mxu0 0.0
    %4273 = vmatpush.msra.mxu0 0.0
    %4274 = vmatpush.msra.mxu0 0.0
    %4275 = vmatpush.msra.mxu0 0.0
    %4276 = vmatpush.msra.mxu0 0.0
    %4277 = vmatpush.msra.mxu0 0.0
    %4278 = vmatpush.msra.mxu0 0.0
    %4279 = vmatpush.msra.mxu0 0.0
    %4280 = vmatpush.msra.mxu0 0.0
    %4281 = vmatpush.msra.mxu0 0.0
    %4282 = vmatpush.msra.mxu0 0.0
    %4283 = vmatpush.msra.mxu0 0.0
    %4284 = vmatpush.msra.mxu0 %v3838
    %4285 = vmatpush.msra.mxu0 %v3837
    %4286 = vmatpush.msra.mxu0 %v3836
    %4287 = vmatpush.msra.mxu0 %v3835
    %4288 = vmatmul.f32.gmra.mxu0 %v4261
    %v4289 = vpop.f32.mrf.mxu0
    %v4290 = vadd.f32 0.0, %v4289
    %4291 = vmatmul.f32.gmra.mxu0 %v4264
    %v4292 = vpop.f32.mrf.mxu0
    %v4293 = vadd.f32 0.0, %v4292
    %4294 = vmatmul.f32.gmra.mxu0 %v4267
    %v4295 = vpop.f32.mrf.mxu0
    %v4296 = vadd.f32 0.0, %v4295
    %4297 = vmatmul.f32.gmra.mxu0 %v4270
    %v4298 = vpop.f32.mrf.mxu0
    %v4299 = vadd.f32 0.0, %v4298
    %4300 = vdwg.mxu0
    %v4301 = vadd.f32 %v4256, %v4290
    %v4302 = vadd.f32 %v4257, %v4293
    %v4303 = vadd.f32 %v4258, %v4296
    %v4304 = vadd.f32 %v4259, %v4299
    %v4306 = vsel %vm3705, %v4041, 0
    %v4309 = vsel %vm3705, %v4044, 0
    %v4312 = vsel %vm3705, %v4047, 0
    %v4315 = vsel %vm3705, %v4050, 0
    %4317 = vmatpush.msra.mxu0 0.0
    %4318 = vmatpush.msra.mxu0 0.0
    %4319 = vmatpush.msra.mxu0 0.0
    %4320 = vmatpush.msra.mxu0 0.0
    %4321 = vmatpush.msra.mxu0 0.0
    %4322 = vmatpush.msra.mxu0 0.0
    %4323 = vmatpush.msra.mxu0 0.0
    %4324 = vmatpush.msra.mxu0 0.0
    %4325 = vmatpush.msra.mxu0 0.0
    %4326 = vmatpush.msra.mxu0 0.0
    %4327 = vmatpush.msra.mxu0 0.0
    %4328 = vmatpush.msra.mxu0 0.0
    %4329 = vmatpush.msra.mxu0 %v3842
    %4330 = vmatpush.msra.mxu0 %v3841
    %4331 = vmatpush.msra.mxu0 %v3840
    %4332 = vmatpush.msra.mxu0 %v3839
    %4333 = vmatmul.f32.gmra.mxu0 %v4306
    %v4334 = vpop.f32.mrf.mxu0
    %v4335 = vadd.f32 0.0, %v4334
    %4336 = vmatmul.f32.gmra.mxu0 %v4309
    %v4337 = vpop.f32.mrf.mxu0
    %v4338 = vadd.f32 0.0, %v4337
    %4339 = vmatmul.f32.gmra.mxu0 %v4312
    %v4340 = vpop.f32.mrf.mxu0
    %v4341 = vadd.f32 0.0, %v4340
    %4342 = vmatmul.f32.gmra.mxu0 %v4315
    %v4343 = vpop.f32.mrf.mxu0
    %v4344 = vadd.f32 0.0, %v4343
    %4345 = vdwg.mxu0
    %v4346 = vadd.f32 %v4301, %v4335
    %v4347 = vadd.f32 %v4302, %v4338
    %v4348 = vadd.f32 %v4303, %v4341
    %v4349 = vadd.f32 %v4304, %v4344
    %v4351 = vsel %vm3705, %v4053, 0
    %v4354 = vsel %vm3705, %v4056, 0
    %v4357 = vsel %vm3705, %v4059, 0
    %v4360 = vsel %vm3705, %v4062, 0
    %4362 = vmatpush.msra.mxu0 0.0
    %4363 = vmatpush.msra.mxu0 0.0
    %4364 = vmatpush.msra.mxu0 0.0
    %4365 = vmatpush.msra.mxu0 0.0
    %4366 = vmatpush.msra.mxu0 0.0
    %4367 = vmatpush.msra.mxu0 0.0
    %4368 = vmatpush.msra.mxu0 0.0
    %4369 = vmatpush.msra.mxu0 0.0
    %4370 = vmatpush.msra.mxu0 0.0
    %4371 = vmatpush.msra.mxu0 0.0
    %4372 = vmatpush.msra.mxu0 0.0
    %4373 = vmatpush.msra.mxu0 0.0
    %4374 = vmatpush.msra.mxu0 %v3846
    %4375 = vmatpush.msra.mxu0 %v3845
    %4376 = vmatpush.msra.mxu0 %v3844
    %4377 = vmatpush.msra.mxu0 %v3843
    %4378 = vmatmul.f32.gmra.mxu0 %v4351
    %v4379 = vpop.f32.mrf.mxu0
    %v4380 = vadd.f32 0.0, %v4379
    %4381 = vmatmul.f32.gmra.mxu0 %v4354
    %v4382 = vpop.f32.mrf.mxu0
    %v4383 = vadd.f32 0.0, %v4382
    %4384 = vmatmul.f32.gmra.mxu0 %v4357
    %v4385 = vpop.f32.mrf.mxu0
    %v4386 = vadd.f32 0.0, %v4385
    %4387 = vmatmul.f32.gmra.mxu0 %v4360
    %v4388 = vpop.f32.mrf.mxu0
    %v4389 = vadd.f32 0.0, %v4388
    %4390 = vdwg.mxu0
    %v4391 = vadd.f32 %v4346, %v4380
    %v4392 = vadd.f32 %v4347, %v4383
    %v4393 = vadd.f32 %v4348, %v4386
    %v4394 = vadd.f32 %v4349, %v4389
    %v4396 = vsel %vm3705, %v4065, 0
    %v4399 = vsel %vm3705, %v4068, 0
    %v4402 = vsel %vm3705, %v4071, 0
    %v4405 = vsel %vm3705, %v4074, 0
    %4407 = vmatpush.msra.mxu0 0.0
    %4408 = vmatpush.msra.mxu0 0.0
    %4409 = vmatpush.msra.mxu0 0.0
    %4410 = vmatpush.msra.mxu0 0.0
    %4411 = vmatpush.msra.mxu0 0.0
    %4412 = vmatpush.msra.mxu0 0.0
    %4413 = vmatpush.msra.mxu0 0.0
    %4414 = vmatpush.msra.mxu0 0.0
    %4415 = vmatpush.msra.mxu0 0.0
    %4416 = vmatpush.msra.mxu0 0.0
    %4417 = vmatpush.msra.mxu0 0.0
    %4418 = vmatpush.msra.mxu0 0.0
    %4419 = vmatpush.msra.mxu0 %v3850
    %4420 = vmatpush.msra.mxu0 %v3849
    %4421 = vmatpush.msra.mxu0 %v3848
    %4422 = vmatpush.msra.mxu0 %v3847
    %4423 = vmatmul.f32.gmra.mxu0 %v4396
    %v4424 = vpop.f32.mrf.mxu0
    %v4425 = vadd.f32 0.0, %v4424
    %4426 = vmatmul.f32.gmra.mxu0 %v4399
    %v4427 = vpop.f32.mrf.mxu0
    %v4428 = vadd.f32 0.0, %v4427
    %4429 = vmatmul.f32.gmra.mxu0 %v4402
    %v4430 = vpop.f32.mrf.mxu0
    %v4431 = vadd.f32 0.0, %v4430
    %4432 = vmatmul.f32.gmra.mxu0 %v4405
    %v4433 = vpop.f32.mrf.mxu0
    %v4434 = vadd.f32 0.0, %v4433
    %4435 = vdwg.mxu0
    %v4436 = vadd.f32 %v4391, %v4425
    %v4437 = vadd.f32 %v4392, %v4428
    %v4438 = vadd.f32 %v4393, %v4431
    %v4439 = vadd.f32 %v4394, %v4434
    %v4441 = vsel %vm3705, %v4077, 0
    %v4444 = vsel %vm3705, %v4080, 0
    %v4447 = vsel %vm3705, %v4083, 0
    %v4450 = vsel %vm3705, %v4086, 0
    %4452 = vmatpush.msra.mxu0 0.0
    %4453 = vmatpush.msra.mxu0 0.0
    %4454 = vmatpush.msra.mxu0 0.0
    %4455 = vmatpush.msra.mxu0 0.0
    %4456 = vmatpush.msra.mxu0 0.0
    %4457 = vmatpush.msra.mxu0 0.0
    %4458 = vmatpush.msra.mxu0 0.0
    %4459 = vmatpush.msra.mxu0 0.0
    %4460 = vmatpush.msra.mxu0 0.0
    %4461 = vmatpush.msra.mxu0 0.0
    %4462 = vmatpush.msra.mxu0 0.0
    %4463 = vmatpush.msra.mxu0 0.0
    %4464 = vmatpush.msra.mxu0 %v3854
    %4465 = vmatpush.msra.mxu0 %v3853
    %4466 = vmatpush.msra.mxu0 %v3852
    %4467 = vmatpush.msra.mxu0 %v3851
    %4468 = vmatmul.f32.gmra.mxu0 %v4441
    %v4469 = vpop.f32.mrf.mxu0
    %v4470 = vadd.f32 0.0, %v4469
    %4471 = vmatmul.f32.gmra.mxu0 %v4444
    %v4472 = vpop.f32.mrf.mxu0
    %v4473 = vadd.f32 0.0, %v4472
    %4474 = vmatmul.f32.gmra.mxu0 %v4447
    %v4475 = vpop.f32.mrf.mxu0
    %v4476 = vadd.f32 0.0, %v4475
    %4477 = vmatmul.f32.gmra.mxu0 %v4450
    %v4478 = vpop.f32.mrf.mxu0
    %v4479 = vadd.f32 0.0, %v4478
    %4480 = vdwg.mxu0
    %v4481 = vadd.f32 %v4436, %v4470
    %v4482 = vadd.f32 %v4437, %v4473
    %v4483 = vadd.f32 %v4438, %v4476
    %v4484 = vadd.f32 %v4439, %v4479
    %v4485 = vand.u32 2147483647, %v4481
    %v4486 = vand.u32 2147483647, %v4482
    %v4487 = vand.u32 2147483647, %v4483
    %v4488 = vand.u32 2147483647, %v4484
    %v4489 = vsub.f32 0.0, %v4485
    %v4490 = vsub.f32 0.0, %v4486
    %v4491 = vsub.f32 0.0, %v4487
    %v4492 = vsub.f32 0.0, %v4488
    %v4493 = vmul.f32 %v4489, 1.442695
    %v4494 = vpow.pop %v4493
    %v4495 = vmul.f32 %v4490, 1.442695
    %v4496 = vpow.pop %v4495
    %v4497 = vmul.f32 %v4491, 1.442695
    %v4498 = vpow.pop %v4497
    %v4499 = vmul.f32 %v4492, 1.442695
    %v4500 = vpow.pop %v4499
    %v4501 = vadd.f32 %v4494, 1.0
    %v4502 = vadd.f32 %v4496, 1.0
    %v4503 = vadd.f32 %v4498, 1.0
    %v4504 = vadd.f32 %v4500, 1.0
    %v4505 = vrcp.pop %v4501
    %v4506 = vmul.f32 %v4501, %v4505
    %v4507 = vsub.f32 1.0, %v4506
    %v4508 = vmul.f32 %v4505, %v4507
    %v4509 = vadd.f32 %v4505, %v4508
    %vm4510 = vweird.f32 %v4501
    %vm4511 = vweird.f32 %v4505
    %vm4512 = vmor %vm4510, %vm4511
    %v4513 = vsel %vm4512, %v4505, %v4509
    %v4514 = vand.u32 2147483647, %v4501
    %vm4515 = vcmp.eq.f32.partialorder %v4514, 8.507059e+37
    %v4516 = vand.u32 %v4501, 2147483648
    %v4517 = vor.u32 1.1754944e-38, %v4516
    %v4518 = vsel %vm4515, %v4517, %v4513
    %v4519 = vmul.f32 1.0, %v4518
    %v4520 = vrcp.pop %v4502
    %v4521 = vmul.f32 %v4502, %v4520
    %v4522 = vsub.f32 1.0, %v4521
    %v4523 = vmul.f32 %v4520, %v4522
    %v4524 = vadd.f32 %v4520, %v4523
    %vm4525 = vweird.f32 %v4502
    %vm4526 = vweird.f32 %v4520
    %vm4527 = vmor %vm4525, %vm4526
    %v4528 = vsel %vm4527, %v4520, %v4524
    %v4529 = vand.u32 2147483647, %v4502
    %vm4530 = vcmp.eq.f32.partialorder %v4529, 8.507059e+37
    %v4531 = vand.u32 %v4502, 2147483648
    %v4532 = vor.u32 1.1754944e-38, %v4531
    %v4533 = vsel %vm4530, %v4532, %v4528
    %v4534 = vmul.f32 1.0, %v4533
    %v4535 = vrcp.pop %v4503
    %v4536 = vmul.f32 %v4503, %v4535
    %v4537 = vsub.f32 1.0, %v4536
    %v4538 = vmul.f32 %v4535, %v4537
    %v4539 = vadd.f32 %v4535, %v4538
    %vm4540 = vweird.f32 %v4503
    %vm4541 = vweird.f32 %v4535
    %vm4542 = vmor %vm4540, %vm4541
    %v4543 = vsel %vm4542, %v4535, %v4539
    %v4544 = vand.u32 2147483647, %v4503
    %vm4545 = vcmp.eq.f32.partialorder %v4544, 8.507059e+37
    %v4546 = vand.u32 %v4503, 2147483648
    %v4547 = vor.u32 1.1754944e-38, %v4546
    %v4548 = vsel %vm4545, %v4547, %v4543
    %v4549 = vmul.f32 1.0, %v4548
    %v4550 = vrcp.pop %v4504
    %v4551 = vmul.f32 %v4504, %v4550
    %v4552 = vsub.f32 1.0, %v4551
    %v4553 = vmul.f32 %v4550, %v4552
    %v4554 = vadd.f32 %v4550, %v4553
    %vm4555 = vweird.f32 %v4504
    %vm4556 = vweird.f32 %v4550
    %vm4557 = vmor %vm4555, %vm4556
    %v4558 = vsel %vm4557, %v4550, %v4554
    %v4559 = vand.u32 2147483647, %v4504
    %vm4560 = vcmp.eq.f32.partialorder %v4559, 8.507059e+37
    %v4561 = vand.u32 %v4504, 2147483648
    %v4562 = vor.u32 1.1754944e-38, %v4561
    %v4563 = vsel %vm4560, %v4562, %v4558
    %v4564 = vmul.f32 1.0, %v4563
    %vm4565 = vcmp.ge.f32.partialorder %v4481, 0.0
    %vm4566 = vcmp.ge.f32.partialorder %v4482, 0.0
    %vm4567 = vcmp.ge.f32.partialorder %v4483, 0.0
    %vm4568 = vcmp.ge.f32.partialorder %v4484, 0.0
    %v4569 = vmul.f32 %v4494, %v4519
    %v4570 = vmul.f32 %v4496, %v4534
    %v4571 = vmul.f32 %v4498, %v4549
    %v4572 = vmul.f32 %v4500, %v4564
    %v4573 = vsel %vm4565, %v4519, %v4569
    %v4574 = vsel %vm4566, %v4534, %v4570
    %v4575 = vsel %vm4567, %v4549, %v4571
    %v4576 = vsel %vm4568, %v4564, %v4572
    %v4577 = vmul.f32 %v4481, %v4573
    %v4578 = vmul.f32 %v4482, %v4574
    %v4579 = vmul.f32 %v4483, %v4575
    %v4580 = vmul.f32 %v4484, %v4576
    %v4581 = vld [vmem:[%s3 + $0x2a0] sm:$0xff]
    %v4582 = vld [vmem:[%s3 + $0x2a8] sm:$0xff]
    %v4583 = vld [vmem:[%s3 + $0x2b0] sm:$0xff]
    %v4584 = vld [vmem:[%s3 + $0x2b8] sm:$0xff]
    %v4585 = vld [vmem:[%s3 + $0x2c0] sm:$0xff]
    %v4586 = vld [vmem:[%s3 + $0x2c8] sm:$0xff]
    %v4587 = vld [vmem:[%s3 + $0x2d0] sm:$0xff]
    %v4588 = vld [vmem:[%s3 + $0x2d8] sm:$0xff]
    %vm4589 = vcmask 523264
    %v4591 = vsel %vm4589, %v4577, 0
    %v4594 = vsel %vm4589, %v4578, 0
    %v4597 = vsel %vm4589, %v4579, 0
    %v4600 = vsel %vm4589, %v4580, 0
    %4602 = vmatpush.msra.mxu0 0.0
    %4603 = vmatpush.msra.mxu0 0.0
    %4604 = vmatpush.msra.mxu0 0.0
    %4605 = vmatpush.msra.mxu0 0.0
    %4606 = vmatpush.msra.mxu0 0.0
    %4607 = vmatpush.msra.mxu0 0.0
    %4608 = vmatpush.msra.mxu0 0.0
    %4609 = vmatpush.msra.mxu0 0.0
    %4610 = vmatpush.msra.mxu0 %v4588
    %4611 = vmatpush.msra.mxu0 %v4587
    %4612 = vmatpush.msra.mxu0 %v4586
    %4613 = vmatpush.msra.mxu0 %v4585
    %4614 = vmatpush.msra.mxu0 %v4584
    %4615 = vmatpush.msra.mxu0 %v4583
    %4616 = vmatpush.msra.mxu0 %v4582
    %4617 = vmatpush.msra.mxu0 %v4581
    %4618 = vmatmul.f32.gmra.mxu0 %v4591
    %v4619 = vpop.f32.mrf.mxu0
    %v4620 = vadd.f32 %v3736, %v4619
    %4621 = vmatmul.f32.gmra.mxu0 %v4594
    %v4622 = vpop.f32.mrf.mxu0
    %v4623 = vadd.f32 %v3739, %v4622
    %4624 = vmatmul.f32.gmra.mxu0 %v4597
    %v4625 = vpop.f32.mrf.mxu0
    %v4626 = vadd.f32 %v3742, %v4625
    %4627 = vmatmul.f32.gmra.mxu0 %v4600
    %v4628 = vpop.f32.mrf.mxu0
    %v4629 = vadd.f32 %v3745, %v4628
    %4630 = vdwg.mxu0
    %v4631 = vld [vmem:[%s3 + $0x2e0] sm:$0xff]
    %v4632 = vld [vmem:[%s3 + $0x2e8] sm:$0xff]
    %v4633 = vld [vmem:[%s3 + $0x2f0] sm:$0xff]
    %v4634 = vld [vmem:[%s3 + $0x2f8] sm:$0xff]
    %v4636 = vsel %vm3705, %v4620, 0
    %v4639 = vsel %vm3705, %v4623, 0
    %v4642 = vsel %vm3705, %v4626, 0
    %v4645 = vsel %vm3705, %v4629, 0
    %4647 = vmatpush.msra.mxu0 0.0
    %4648 = vmatpush.msra.mxu0 0.0
    %4649 = vmatpush.msra.mxu0 0.0
    %4650 = vmatpush.msra.mxu0 0.0
    %4651 = vmatpush.msra.mxu0 0.0
    %4652 = vmatpush.msra.mxu0 0.0
    %4653 = vmatpush.msra.mxu0 0.0
    %4654 = vmatpush.msra.mxu0 0.0
    %4655 = vmatpush.msra.mxu0 0.0
    %4656 = vmatpush.msra.mxu0 0.0
    %4657 = vmatpush.msra.mxu0 0.0
    %4658 = vmatpush.msra.mxu0 0.0
    %4659 = vmatpush.msra.mxu0 %v4634
    %4660 = vmatpush.msra.mxu0 %v4633
    %4661 = vmatpush.msra.mxu0 %v4632
    %4662 = vmatpush.msra.mxu0 %v4631
    %4663 = vmatmul.f32.gmra.mxu0 %v4636
    %v4664 = vpop.f32.mrf.mxu0
    %v4665 = vadd.f32 0.0, %v4664
    %4666 = vmatmul.f32.gmra.mxu0 %v4639
    %v4667 = vpop.f32.mrf.mxu0
    %v4668 = vadd.f32 0.0, %v4667
    %4669 = vmatmul.f32.gmra.mxu0 %v4642
    %v4670 = vpop.f32.mrf.mxu0
    %v4671 = vadd.f32 0.0, %v4670
    %4672 = vmatmul.f32.gmra.mxu0 %v4645
    %v4673 = vpop.f32.mrf.mxu0
    %v4674 = vadd.f32 0.0, %v4673
    %4675 = vdwg.mxu0
    %v4676 = vand.u32 2147483647, %v4665
    %v4677 = vand.u32 2147483647, %v4668
    %v4678 = vand.u32 2147483647, %v4671
    %v4679 = vand.u32 2147483647, %v4674
    %v4680 = vsub.f32 0.0, %v4676
    %v4681 = vsub.f32 0.0, %v4677
    %v4682 = vsub.f32 0.0, %v4678
    %v4683 = vsub.f32 0.0, %v4679
    %v4684 = vmul.f32 %v4680, 1.442695
    %v4685 = vpow.pop %v4684
    %v4686 = vmul.f32 %v4681, 1.442695
    %v4687 = vpow.pop %v4686
    %v4688 = vmul.f32 %v4682, 1.442695
    %v4689 = vpow.pop %v4688
    %v4690 = vmul.f32 %v4683, 1.442695
    %v4691 = vpow.pop %v4690
    %v4692 = vadd.f32 %v4685, 1.0
    %v4693 = vadd.f32 %v4687, 1.0
    %v4694 = vadd.f32 %v4689, 1.0
    %v4695 = vadd.f32 %v4691, 1.0
    %v4696 = vrcp.pop %v4692
    %v4697 = vmul.f32 %v4692, %v4696
    %v4698 = vsub.f32 1.0, %v4697
    %v4699 = vmul.f32 %v4696, %v4698
    %v4700 = vadd.f32 %v4696, %v4699
    %vm4701 = vweird.f32 %v4692
    %vm4702 = vweird.f32 %v4696
    %vm4703 = vmor %vm4701, %vm4702
    %v4704 = vsel %vm4703, %v4696, %v4700
    %v4705 = vand.u32 2147483647, %v4692
    %vm4706 = vcmp.eq.f32.partialorder %v4705, 8.507059e+37
    %v4707 = vand.u32 %v4692, 2147483648
    %v4708 = vor.u32 1.1754944e-38, %v4707
    %v4709 = vsel %vm4706, %v4708, %v4704
    %v4710 = vmul.f32 1.0, %v4709
    %v4711 = vrcp.pop %v4693
    %v4712 = vmul.f32 %v4693, %v4711
    %v4713 = vsub.f32 1.0, %v4712
    %v4714 = vmul.f32 %v4711, %v4713
    %v4715 = vadd.f32 %v4711, %v4714
    %vm4716 = vweird.f32 %v4693
    %vm4717 = vweird.f32 %v4711
    %vm4718 = vmor %vm4716, %vm4717
    %v4719 = vsel %vm4718, %v4711, %v4715
    %v4720 = vand.u32 2147483647, %v4693
    %vm4721 = vcmp.eq.f32.partialorder %v4720, 8.507059e+37
    %v4722 = vand.u32 %v4693, 2147483648
    %v4723 = vor.u32 1.1754944e-38, %v4722
    %v4724 = vsel %vm4721, %v4723, %v4719
    %v4725 = vmul.f32 1.0, %v4724
    %v4726 = vrcp.pop %v4694
    %v4727 = vmul.f32 %v4694, %v4726
    %v4728 = vsub.f32 1.0, %v4727
    %v4729 = vmul.f32 %v4726, %v4728
    %v4730 = vadd.f32 %v4726, %v4729
    %vm4731 = vweird.f32 %v4694
    %vm4732 = vweird.f32 %v4726
    %vm4733 = vmor %vm4731, %vm4732
    %v4734 = vsel %vm4733, %v4726, %v4730
    %v4735 = vand.u32 2147483647, %v4694
    %vm4736 = vcmp.eq.f32.partialorder %v4735, 8.507059e+37
    %v4737 = vand.u32 %v4694, 2147483648
    %v4738 = vor.u32 1.1754944e-38, %v4737
    %v4739 = vsel %vm4736, %v4738, %v4734
    %v4740 = vmul.f32 1.0, %v4739
    %v4741 = vrcp.pop %v4695
    %v4742 = vmul.f32 %v4695, %v4741
    %v4743 = vsub.f32 1.0, %v4742
    %v4744 = vmul.f32 %v4741, %v4743
    %v4745 = vadd.f32 %v4741, %v4744
    %vm4746 = vweird.f32 %v4695
    %vm4747 = vweird.f32 %v4741
    %vm4748 = vmor %vm4746, %vm4747
    %v4749 = vsel %vm4748, %v4741, %v4745
    %v4750 = vand.u32 2147483647, %v4695
    %vm4751 = vcmp.eq.f32.partialorder %v4750, 8.507059e+37
    %v4752 = vand.u32 %v4695, 2147483648
    %v4753 = vor.u32 1.1754944e-38, %v4752
    %v4754 = vsel %vm4751, %v4753, %v4749
    %v4755 = vmul.f32 1.0, %v4754
    %vm4756 = vcmp.ge.f32.partialorder %v4665, 0.0
    %vm4757 = vcmp.ge.f32.partialorder %v4668, 0.0
    %vm4758 = vcmp.ge.f32.partialorder %v4671, 0.0
    %vm4759 = vcmp.ge.f32.partialorder %v4674, 0.0
    %v4760 = vmul.f32 %v4685, %v4710
    %v4761 = vmul.f32 %v4687, %v4725
    %v4762 = vmul.f32 %v4689, %v4740
    %v4763 = vmul.f32 %v4691, %v4755
    %v4764 = vsel %vm4756, %v4710, %v4760
    %v4765 = vsel %vm4757, %v4725, %v4761
    %v4766 = vsel %vm4758, %v4740, %v4762
    %v4767 = vsel %vm4759, %v4755, %v4763
    %v4768 = vmul.f32 %v4665, %v4764
    %v4769 = vmul.f32 %v4668, %v4765
    %v4770 = vmul.f32 %v4671, %v4766
    %v4771 = vmul.f32 %v4674, %v4767
    %v4772 = vld [vmem:[%s4 + $0x360] sm:$0xf]
    %v4773 = vld [vmem:[%s4 + $0x364] sm:$0xf]
    %v4774 = vld [vmem:[%s4 + $0x368] sm:$0xf]
    %v4775 = vld [vmem:[%s4 + $0x36c] sm:$0xf]
    %v4776 = vld [vmem:[%s4 + $0x370] sm:$0xf]
    %v4777 = vld [vmem:[%s4 + $0x374] sm:$0xf]
    %v4778 = vld [vmem:[%s4 + $0x378] sm:$0xf]
    %v4779 = vld [vmem:[%s4 + $0x37c] sm:$0xf]
    %v4780 = vld [vmem:[%s4 + $0x380] sm:$0xf]
    %v4781 = vunpack.c.l.bf16 %v4772
    %v4782 = vunpack.c.l.bf16 %v4773
    %v4783 = vunpack.c.l.bf16 %v4774
    %v4784 = vunpack.c.l.bf16 %v4775
    %v4785 = vunpack.c.l.bf16 %v4776
    %v4786 = vunpack.c.l.bf16 %v4777
    %v4787 = vunpack.c.l.bf16 %v4778
    %v4788 = vunpack.c.l.bf16 %v4779
    %v4789 = vunpack.c.l.bf16 %v4780
    %v4790 = vld [vmem:[%s3 + $0x300] sm:$0xff]
    %v4791 = vld [vmem:[%s3 + $0x308] sm:$0x1]
    %v4793 = vsel %vm3705, %v4781, 0
    %v4796 = vsel %vm3705, %v4782, 0
    %v4799 = vsel %vm3705, %v4783, 0
    %v4802 = vsel %vm3705, %v4784, 0
    %v4805 = vsel %vm3705, %v4785, 0
    %v4808 = vsel %vm3705, %v4786, 0
    %v4811 = vsel %vm3705, %v4787, 0
    %v4814 = vsel %vm3705, %v4788, 0
    %v4817 = vsel %vm3705, %v4789, 0
    %4819 = vmatpush.msra.mxu0 0.0
    %4820 = vmatpush.msra.mxu0 0.0
    %4821 = vmatpush.msra.mxu0 0.0
    %4822 = vmatpush.msra.mxu0 0.0
    %4823 = vmatpush.msra.mxu0 0.0
    %4824 = vmatpush.msra.mxu0 0.0
    %4825 = vmatpush.msra.mxu0 0.0
    %4826 = vmatpush.msra.mxu0 0.0
    %4827 = vmatpush.msra.mxu0 0.0
    %4828 = vmatpush.msra.mxu0 0.0
    %4829 = vmatpush.msra.mxu0 0.0
    %4830 = vmatpush.msra.mxu0 0.0
    %4831 = vmatpush.msra.mxu0 %v4771
    %4832 = vmatpush.msra.mxu0 %v4770
    %4833 = vmatpush.msra.mxu0 %v4769
    %4834 = vmatpush.msra.mxu0 %v4768
    %4835 = vmatmul.f32.gmra.mxu0 %v4793
    %v4836 = vpop.f32.mrf.mxu0
    %v4837 = vadd.f32 0.0, %v4836
    %4838 = vmatmul.f32.gmra.mxu0 %v4796
    %v4839 = vpop.f32.mrf.mxu0
    %v4840 = vadd.f32 0.0, %v4839
    %4841 = vmatmul.f32.gmra.mxu0 %v4799
    %v4842 = vpop.f32.mrf.mxu0
    %v4843 = vadd.f32 0.0, %v4842
    %4844 = vmatmul.f32.gmra.mxu0 %v4802
    %v4845 = vpop.f32.mrf.mxu0
    %v4846 = vadd.f32 0.0, %v4845
    %4847 = vmatmul.f32.gmra.mxu0 %v4805
    %v4848 = vpop.f32.mrf.mxu0
    %v4849 = vadd.f32 0.0, %v4848
    %4850 = vmatmul.f32.gmra.mxu0 %v4808
    %v4851 = vpop.f32.mrf.mxu0
    %v4852 = vadd.f32 0.0, %v4851
    %4853 = vmatmul.f32.gmra.mxu0 %v4811
    %v4854 = vpop.f32.mrf.mxu0
    %v4855 = vadd.f32 0.0, %v4854
    %4856 = vmatmul.f32.gmra.mxu0 %v4814
    %v4857 = vpop.f32.mrf.mxu0
    %v4858 = vadd.f32 0.0, %v4857
    %4859 = vmatmul.f32.gmra.mxu0 %v4817
    %v4860 = vpop.f32.mrf.mxu0
    %v4861 = vadd.f32 0.0, %v4860
    %4862 = vdwg.mxu0
    %v4863 = vperm.slane %v4790, 0
    %v4864 = vmul.f32 %v4837, %v4863
    %v4865 = vperm.slane %v4790, 1
    %v4866 = vmul.f32 %v4840, %v4865
    %v4867 = vadd.f32 %v4864, %v4866
    %v4868 = vperm.slane %v4790, 2
    %v4869 = vmul.f32 %v4843, %v4868
    %v4870 = vadd.f32 %v4867, %v4869
    %v4871 = vperm.slane %v4790, 3
    %v4872 = vmul.f32 %v4846, %v4871
    %v4873 = vadd.f32 %v4870, %v4872
    %v4874 = vperm.slane %v4790, 4
    %v4875 = vmul.f32 %v4849, %v4874
    %v4876 = vadd.f32 %v4873, %v4875
    %v4877 = vperm.slane %v4790, 5
    %v4878 = vmul.f32 %v4852, %v4877
    %v4879 = vadd.f32 %v4876, %v4878
    %v4880 = vperm.slane %v4790, 6
    %v4881 = vmul.f32 %v4855, %v4880
    %v4882 = vadd.f32 %v4879, %v4881
    %v4883 = vperm.slane %v4790, 7
    %v4884 = vmul.f32 %v4858, %v4883
    %v4885 = vadd.f32 %v4882, %v4884
    %v4886 = vperm.slane %v4791, 0
    %v4887 = vmul.f32 %v4861, %v4886
    %v4888 = vadd.f32 %v4885, %v4887
    %v4889 = vand.u32 2147483647, %v4888
    %v4890 = vsub.f32 0.0, %v4889
    %v4891 = vmul.f32 %v4890, 1.442695
    %v4892 = vpow.pop %v4891
    %v4893 = vadd.f32 %v4892, 1.0
    %v4894 = vrcp.pop %v4893
    %v4895 = vmul.f32 %v4893, %v4894
    %v4896 = vsub.f32 1.0, %v4895
    %v4897 = vmul.f32 %v4894, %v4896
    %v4898 = vadd.f32 %v4894, %v4897
    %vm4899 = vweird.f32 %v4893
    %vm4900 = vweird.f32 %v4894
    %vm4901 = vmor %vm4899, %vm4900
    %v4902 = vsel %vm4901, %v4894, %v4898
    %v4903 = vand.u32 2147483647, %v4893
    %vm4904 = vcmp.eq.f32.partialorder %v4903, 8.507059e+37
    %v4905 = vand.u32 %v4893, 2147483648
    %v4906 = vor.u32 1.1754944e-38, %v4905
    %v4907 = vsel %vm4904, %v4906, %v4902
    %v4908 = vmul.f32 1.0, %v4907
    %vm4909 = vcmp.ge.f32.partialorder %v4888, 0.0
    %v4910 = vmul.f32 %v4892, %v4908
    %v4911 = vsel %vm4909, %v4908, %v4910
    %v4912 = vmul.f32 %v4888, %v4911
    %v4913 = vld [vmem:[%s3 + $0x310] sm:$0xff]
    %v4914 = vld [vmem:[%s3 + $0x318] sm:$0xff]
    %v4915 = vld [vmem:[%s3 + $0x320] sm:$0xff]
    %v4916 = vld [vmem:[%s3 + $0x328] sm:$0xff]
    %v4917 = vld [vmem:[%s3 + $0x330] sm:$0xff]
    %v4918 = vld [vmem:[%s3 + $0x338] sm:$0xff]
    %v4919 = vld [vmem:[%s3 + $0x340] sm:$0xff]
    %v4920 = vld [vmem:[%s3 + $0x348] sm:$0xff]
    %v4922 = vsel %vm4589, %v4912, 0
    %4924 = vmatpush.msra.mxu0 0.0
    %4925 = vmatpush.msra.mxu0 0.0
    %4926 = vmatpush.msra.mxu0 0.0
    %4927 = vmatpush.msra.mxu0 0.0
    %4928 = vmatpush.msra.mxu0 0.0
    %4929 = vmatpush.msra.mxu0 0.0
    %4930 = vmatpush.msra.mxu0 0.0
    %4931 = vmatpush.msra.mxu0 0.0
    %4932 = vmatpush.msra.mxu0 %v4920
    %4933 = vmatpush.msra.mxu0 %v4919
    %4934 = vmatpush.msra.mxu0 %v4918
    %4935 = vmatpush.msra.mxu0 %v4917
    %4936 = vmatpush.msra.mxu0 %v4916
    %4937 = vmatpush.msra.mxu0 %v4915
    %4938 = vmatpush.msra.mxu0 %v4914
    %4939 = vmatpush.msra.mxu0 %v4913
    %4940 = vmatmul.f32.gmra.mxu0 %v4922
    %v4941 = vpop.f32.mrf.mxu0
    %v4942 = vadd.f32 0.0, %v4941
    %4943 = vdwg.mxu0
    %v4944 = vld [vmem:[%s3 + $0x350] sm:$0xff]
    %v4945 = vld [vmem:[%s3 + $0x358] sm:$0xff]
    %v4946 = vld [vmem:[%s3 + $0x360] sm:$0xff]
    %v4947 = vld [vmem:[%s3 + $0x368] sm:$0xff]
    %v4948 = vld [vmem:[%s3 + $0x370] sm:$0xff]
    %v4949 = vld [vmem:[%s3 + $0x378] sm:$0xff]
    %v4950 = vld [vmem:[%s3 + $0x380] sm:$0xff]
    %v4951 = vld [vmem:[%s3 + $0x388] sm:$0xff]
    %v4953 = vsel %vm4589, %v4942, 0
    %4955 = vmatpush.msra.mxu0 0.0
    %4956 = vmatpush.msra.mxu0 0.0
    %4957 = vmatpush.msra.mxu0 0.0
    %4958 = vmatpush.msra.mxu0 0.0
    %4959 = vmatpush.msra.mxu0 0.0
    %4960 = vmatpush.msra.mxu0 0.0
    %4961 = vmatpush.msra.mxu0 0.0
    %4962 = vmatpush.msra.mxu0 0.0
    %4963 = vmatpush.msra.mxu0 %v4951
    %4964 = vmatpush.msra.mxu0 %v4950
    %4965 = vmatpush.msra.mxu0 %v4949
    %4966 = vmatpush.msra.mxu0 %v4948
    %4967 = vmatpush.msra.mxu0 %v4947
    %4968 = vmatpush.msra.mxu0 %v4946
    %4969 = vmatpush.msra.mxu0 %v4945
    %4970 = vmatpush.msra.mxu0 %v4944
    %4971 = vmatmul.f32.gmra.mxu0 %v4953
    %v4972 = vpop.f32.mrf.mxu0
    %v4973 = vadd.f32 0.0, %v4972
    %4974 = vdwg.mxu0
    %v4975 = vand.u32 2147483647, %v4973
    %v4976 = vsub.f32 0.0, %v4975
    %v4977 = vmul.f32 %v4976, 1.442695
    %v4978 = vpow.pop %v4977
    %v4979 = vadd.f32 %v4978, 1.0
    %v4980 = vrcp.pop %v4979
    %v4981 = vmul.f32 %v4979, %v4980
    %v4982 = vsub.f32 1.0, %v4981
    %v4983 = vmul.f32 %v4980, %v4982
    %v4984 = vadd.f32 %v4980, %v4983
    %vm4985 = vweird.f32 %v4979
    %vm4986 = vweird.f32 %v4980
    %vm4987 = vmor %vm4985, %vm4986
    %v4988 = vsel %vm4987, %v4980, %v4984
    %v4989 = vand.u32 2147483647, %v4979
    %vm4990 = vcmp.eq.f32.partialorder %v4989, 8.507059e+37
    %v4991 = vand.u32 %v4979, 2147483648
    %v4992 = vor.u32 1.1754944e-38, %v4991
    %v4993 = vsel %vm4990, %v4992, %v4988
    %v4994 = vmul.f32 1.0, %v4993
    %vm4995 = vcmp.ge.f32.partialorder %v4973, 0.0
    %v4996 = vmul.f32 %v4978, %v4994
    %v4997 = vsel %vm4995, %v4994, %v4996
    %v4998 = vmul.f32 %v4973, %v4997
    %v4999 = vld [vmem:[%s4 + $0x388] sm:$0xf]
    %v5000 = vld [vmem:[%s4 + $0x38c] sm:$0xf]
    %v5001 = vld [vmem:[%s4 + $0x390] sm:$0xf]
    %v5002 = vld [vmem:[%s4 + $0x394] sm:$0xf]
    %v5003 = vld [vmem:[%s4 + $0x398] sm:$0xf]
    %v5004 = vld [vmem:[%s4 + $0x39c] sm:$0xf]
    %v5005 = vld [vmem:[%s4 + $0x3a0] sm:$0xf]
    %v5006 = vld [vmem:[%s4 + $0x3a4] sm:$0xf]
    %v5007 = vld [vmem:[%s4 + $0x3a8] sm:$0xf]
    %v5008 = vunpack.c.l.bf16 %v4999
    %v5009 = vunpack.c.l.bf16 %v5000
    %v5010 = vunpack.c.l.bf16 %v5001
    %v5011 = vunpack.c.l.bf16 %v5002
    %v5012 = vunpack.c.l.bf16 %v5003
    %v5013 = vunpack.c.l.bf16 %v5004
    %v5014 = vunpack.c.l.bf16 %v5005
    %v5015 = vunpack.c.l.bf16 %v5006
    %v5016 = vunpack.c.l.bf16 %v5007
    %v5017 = vld [vmem:[%s3 + $0x390] sm:$0xff]
    %v5018 = vld [vmem:[%s3 + $0x398] sm:$0x1]
    %vm5019 = vcmask 64512
    %v5021 = vsel %vm5019, %v5008, 0
    %v5024 = vsel %vm5019, %v5009, 0
    %v5027 = vsel %vm5019, %v5010, 0
    %v5030 = vsel %vm5019, %v5011, 0
    %v5033 = vsel %vm5019, %v5012, 0
    %v5036 = vsel %vm5019, %v5013, 0
    %v5039 = vsel %vm5019, %v5014, 0
    %v5042 = vsel %vm5019, %v5015, 0
    %v5045 = vsel %vm5019, %v5016, 0
    %5047 = vmatpush.msra.mxu0 0.0
    %5048 = vmatpush.msra.mxu0 0.0
    %5049 = vmatpush.msra.mxu0 0.0
    %5050 = vmatpush.msra.mxu0 0.0
    %5051 = vmatpush.msra.mxu0 0.0
    %5052 = vmatpush.msra.mxu0 0.0
    %5053 = vmatpush.msra.mxu0 0.0
    %5054 = vmatpush.msra.mxu0 0.0
    %5055 = vmatpush.msra.mxu0 0.0
    %5056 = vmatpush.msra.mxu0 0.0
    %5057 = vmatpush.msra.mxu0 0.0
    %5058 = vmatpush.msra.mxu0 0.0
    %5059 = vmatpush.msra.mxu0 0.0
    %5060 = vmatpush.msra.mxu0 0.0
    %5061 = vmatpush.msra.mxu0 0.0
    %5062 = vmatpush.msra.mxu0 %v4998
    %5063 = vmatmul.f32.gmra.mxu0 %v5021
    %v5064 = vpop.f32.mrf.mxu0
    %v5065 = vadd.f32 0.0, %v5064
    %5066 = vmatmul.f32.gmra.mxu0 %v5024
    %v5067 = vpop.f32.mrf.mxu0
    %v5068 = vadd.f32 0.0, %v5067
    %5069 = vmatmul.f32.gmra.mxu0 %v5027
    %v5070 = vpop.f32.mrf.mxu0
    %v5071 = vadd.f32 0.0, %v5070
    %5072 = vmatmul.f32.gmra.mxu0 %v5030
    %v5073 = vpop.f32.mrf.mxu0
    %v5074 = vadd.f32 0.0, %v5073
    %5075 = vmatmul.f32.gmra.mxu0 %v5033
    %v5076 = vpop.f32.mrf.mxu0
    %v5077 = vadd.f32 0.0, %v5076
    %5078 = vmatmul.f32.gmra.mxu0 %v5036
    %v5079 = vpop.f32.mrf.mxu0
    %v5080 = vadd.f32 0.0, %v5079
    %5081 = vmatmul.f32.gmra.mxu0 %v5039
    %v5082 = vpop.f32.mrf.mxu0
    %v5083 = vadd.f32 0.0, %v5082
    %5084 = vmatmul.f32.gmra.mxu0 %v5042
    %v5085 = vpop.f32.mrf.mxu0
    %v5086 = vadd.f32 0.0, %v5085
    %5087 = vmatmul.f32.gmra.mxu0 %v5045
    %v5088 = vpop.f32.mrf.mxu0
    %v5089 = vadd.f32 0.0, %v5088
    %5090 = vdwg.mxu0
    %v5091 = vperm.slane %v5017, 0
    %v5092 = vmul.f32 %v5065, %v5091
    %v5093 = vperm.slane %v5017, 1
    %v5094 = vmul.f32 %v5068, %v5093
    %v5095 = vadd.f32 %v5092, %v5094
    %v5096 = vperm.slane %v5017, 2
    %v5097 = vmul.f32 %v5071, %v5096
    %v5098 = vadd.f32 %v5095, %v5097
    %v5099 = vperm.slane %v5017, 3
    %v5100 = vmul.f32 %v5074, %v5099
    %v5101 = vadd.f32 %v5098, %v5100
    %v5102 = vperm.slane %v5017, 4
    %v5103 = vmul.f32 %v5077, %v5102
    %v5104 = vadd.f32 %v5101, %v5103
    %v5105 = vperm.slane %v5017, 5
    %v5106 = vmul.f32 %v5080, %v5105
    %v5107 = vadd.f32 %v5104, %v5106
    %v5108 = vperm.slane %v5017, 6
    %v5109 = vmul.f32 %v5083, %v5108
    %v5110 = vadd.f32 %v5107, %v5109
    %v5111 = vperm.slane %v5017, 7
    %v5112 = vmul.f32 %v5086, %v5111
    %v5113 = vadd.f32 %v5110, %v5112
    %v5114 = vperm.slane %v5018, 0
    %v5115 = vmul.f32 %v5089, %v5114
    %v5116 = vadd.f32 %v5113, %v5115
    %v5117 = vand.u32 2147483647, %v5116
    %v5118 = vsub.f32 0.0, %v5117
    %v5119 = vmul.f32 %v5118, 1.442695
    %v5120 = vpow.pop %v5119
    %v5121 = vadd.f32 %v5120, 1.0
    %v5122 = vrcp.pop %v5121
    %v5123 = vmul.f32 %v5121, %v5122
    %v5124 = vsub.f32 1.0, %v5123
    %v5125 = vmul.f32 %v5122, %v5124
    %v5126 = vadd.f32 %v5122, %v5125
    %vm5127 = vweird.f32 %v5121
    %vm5128 = vweird.f32 %v5122
    %vm5129 = vmor %vm5127, %vm5128
    %v5130 = vsel %vm5129, %v5122, %v5126
    %v5131 = vand.u32 2147483647, %v5121
    %vm5132 = vcmp.eq.f32.partialorder %v5131, 8.507059e+37
    %v5133 = vand.u32 %v5121, 2147483648
    %v5134 = vor.u32 1.1754944e-38, %v5133
    %v5135 = vsel %vm5132, %v5134, %v5130
    %v5136 = vmul.f32 1.0, %v5135
    %vm5137 = vcmp.ge.f32.partialorder %v5116, 0.0
    %v5138 = vmul.f32 %v5120, %v5136
    %v5139 = vsel %vm5137, %v5136, %v5138
    %v5140 = vmul.f32 %v5116, %v5139
    %v5141 = vld [vmem:[%s3 + $0x3a0] sm:$0xff]
    %v5142 = vld [vmem:[%s3 + $0x3a8] sm:$0xff]
    %v5143 = vld [vmem:[%s3 + $0x3b0] sm:$0xff]
    %v5144 = vld [vmem:[%s3 + $0x3b8] sm:$0xff]
    %v5145 = vld [vmem:[%s3 + $0x3c0] sm:$0xff]
    %v5146 = vld [vmem:[%s3 + $0x3c8] sm:$0xff]
    %v5147 = vld [vmem:[%s3 + $0x3d0] sm:$0xff]
    %v5148 = vld [vmem:[%s3 + $0x3d8] sm:$0xff]
    %v5149 = vld [vmem:[%s3 + $0x3e0] sm:$0xff]
    %v5150 = vld [vmem:[%s3 + $0x3e8] sm:$0xff]
    %v5151 = vld [vmem:[%s3 + $0x3f0] sm:$0xff]
    %v5152 = vld [vmem:[%s3 + $0x3f8] sm:$0xff]
    %v5153 = vld [vmem:[%s3 + $0x400] sm:$0xff]
    %v5154 = vld [vmem:[%s3 + $0x408] sm:$0xff]
    %v5155 = vld [vmem:[%s3 + $0x410] sm:$0xff]
    %v5156 = vld [vmem:[%s3 + $0x418] sm:$0xff]
    %5157 = vmatpush.msra.mxu0 %v5156
    %5158 = vmatpush.msra.mxu0 %v5155
    %5159 = vmatpush.msra.mxu0 %v5154
    %5160 = vmatpush.msra.mxu0 %v5153
    %5161 = vmatpush.msra.mxu0 %v5152
    %5162 = vmatpush.msra.mxu0 %v5151
    %5163 = vmatpush.msra.mxu0 %v5150
    %5164 = vmatpush.msra.mxu0 %v5149
    %5165 = vmatpush.msra.mxu0 %v5148
    %5166 = vmatpush.msra.mxu0 %v5147
    %5167 = vmatpush.msra.mxu0 %v5146
    %5168 = vmatpush.msra.mxu0 %v5145
    %5169 = vmatpush.msra.mxu0 %v5144
    %5170 = vmatpush.msra.mxu0 %v5143
    %5171 = vmatpush.msra.mxu0 %v5142
    %5172 = vmatpush.msra.mxu0 %v5141
    %5173 = vmatmul.f32.gmra.mxu0 %v5140
    %v5174 = vpop.f32.mrf.mxu0
    %v5175 = vadd.f32 %v4942, %v5174
    %5176 = vdwg.mxu0
    %v5177 = vld [vmem:[%s3 + $0x420] sm:$0xff]
    %v5178 = vld [vmem:[%s3 + $0x428] sm:$0xff]
    %v5179 = vld [vmem:[%s3 + $0x430] sm:$0xff]
    %v5180 = vld [vmem:[%s3 + $0x438] sm:$0xff]
    %v5181 = vld [vmem:[%s3 + $0x440] sm:$0xff]
    %v5182 = vld [vmem:[%s3 + $0x448] sm:$0xff]
    %v5183 = vld [vmem:[%s3 + $0x450] sm:$0xff]
    %v5184 = vld [vmem:[%s3 + $0x458] sm:$0xff]
    %v5186 = vsel %vm4589, %v5175, 0
    %5188 = vmatpush.msra.mxu0 0.0
    %5189 = vmatpush.msra.mxu0 0.0
    %5190 = vmatpush.msra.mxu0 0.0
    %5191 = vmatpush.msra.mxu0 0.0
    %5192 = vmatpush.msra.mxu0 0.0
    %5193 = vmatpush.msra.mxu0 0.0
    %5194 = vmatpush.msra.mxu0 0.0
    %5195 = vmatpush.msra.mxu0 0.0
    %5196 = vmatpush.msra.mxu0 %v5184
    %5197 = vmatpush.msra.mxu0 %v5183
    %5198 = vmatpush.msra.mxu0 %v5182
    %5199 = vmatpush.msra.mxu0 %v5181
    %5200 = vmatpush.msra.mxu0 %v5180
    %5201 = vmatpush.msra.mxu0 %v5179
    %5202 = vmatpush.msra.mxu0 %v5178
    %5203 = vmatpush.msra.mxu0 %v5177
    %5204 = vmatmul.f32.gmra.mxu0 %v5186
    %v5205 = vpop.f32.mrf.mxu0
    %v5206 = vadd.f32 0.0, %v5205
    %5207 = vdwg.mxu0
    %v5208 = vand.u32 2147483647, %v5206
    %v5209 = vsub.f32 0.0, %v5208
    %v5210 = vmul.f32 %v5209, 1.442695
    %v5211 = vpow.pop %v5210
    %v5212 = vadd.f32 %v5211, 1.0
    %v5213 = vrcp.pop %v5212
    %v5214 = vmul.f32 %v5212, %v5213
    %v5215 = vsub.f32 1.0, %v5214
    %v5216 = vmul.f32 %v5213, %v5215
    %v5217 = vadd.f32 %v5213, %v5216
    %vm5218 = vweird.f32 %v5212
    %vm5219 = vweird.f32 %v5213
    %vm5220 = vmor %vm5218, %vm5219
    %v5221 = vsel %vm5220, %v5213, %v5217
    %v5222 = vand.u32 2147483647, %v5212
    %vm5223 = vcmp.eq.f32.partialorder %v5222, 8.507059e+37
    %v5224 = vand.u32 %v5212, 2147483648
    %v5225 = vor.u32 1.1754944e-38, %v5224
    %v5226 = vsel %vm5223, %v5225, %v5221
    %v5227 = vmul.f32 1.0, %v5226
    %vm5228 = vcmp.ge.f32.partialorder %v5206, 0.0
    %v5229 = vmul.f32 %v5211, %v5227
    %v5230 = vsel %vm5228, %v5227, %v5229
    %v5231 = vmul.f32 %v5206, %v5230
    %v5232 = vld [vmem:[%s4 + $0x3b0] sm:$0x1]
    %v5233 = vunpack.c.l.bf16 %v5232
    %v5235 = vsel %vm5019, %v5233, 0
    %5237 = vmatpush.msra.mxu0 0.0
    %5238 = vmatpush.msra.mxu0 0.0
    %5239 = vmatpush.msra.mxu0 0.0
    %5240 = vmatpush.msra.mxu0 0.0
    %5241 = vmatpush.msra.mxu0 0.0
    %5242 = vmatpush.msra.mxu0 0.0
    %5243 = vmatpush.msra.mxu0 0.0
    %5244 = vmatpush.msra.mxu0 0.0
    %5245 = vmatpush.msra.mxu0 0.0
    %5246 = vmatpush.msra.mxu0 0.0
    %5247 = vmatpush.msra.mxu0 0.0
    %5248 = vmatpush.msra.mxu0 0.0
    %5249 = vmatpush.msra.mxu0 0.0
    %5250 = vmatpush.msra.mxu0 0.0
    %5251 = vmatpush.msra.mxu0 0.0
    %5252 = vmatpush.msra.mxu0 %v5231
    %5253 = vmatmul.f32.gmra.mxu0 %v5235
    %v5254 = vpop.f32.mrf.mxu0
    %v5255 = vadd.f32 0.0, %v5254
    %5256 = vdwg.mxu0
    %v5257 = vld [vmem:[%s1] sm:$0x3]
    %vm5258 = vcmp.ne.f32.partialorder %v5257, %v5257
    %v5259 = vsel %vm5258, 0.0, %v5257
    %v5260 = vmax.f32 %v5259, -3.4028235e+38
    %v5261 = vmin.f32 %v5260, 3.4028235e+38
    %v5262 = vld [vmem:[%s3 + $0x460] sm:$0x3f]
    %v5263 = vld [vmem:[%s3 + $0x468] sm:$0x1]
    %v5264 = vperm.slane %v5263, 0
    %vm5265 = vcmask 48128
    %v5267 = vsel %vm5265, %v5261, 0
    %vm5269 = vcmask 1045504
    %v5271 = vsel %vm5269, %v5262, 0
    %5273 = vmatpush.msra.mxu0 0.0
    %5274 = vmatpush.msra.mxu0 0.0
    %5275 = vmatpush.msra.mxu0 0.0
    %5276 = vmatpush.msra.mxu0 0.0
    %5277 = vmatpush.msra.mxu0 0.0
    %5278 = vmatpush.msra.mxu0 0.0
    %5279 = vmatpush.msra.mxu0 0.0
    %5280 = vmatpush.msra.mxu0 0.0
    %5281 = vmatpush.msra.mxu0 0.0
    %5282 = vmatpush.msra.mxu0 0.0
    %5283 = vmatpush.msra.mxu0 0.0
    %5284 = vmatpush.msra.mxu0 0.0
    %5285 = vmatpush.msra.mxu0 0.0
    %5286 = vmatpush.msra.mxu0 0.0
    %5287 = vmatpush.msra.mxu0 0.0
    %5288 = vmatpush.msra.mxu0 %v5271
    %5289 = vmatmul.f32.gmra.mxu0 %v5267
    %v5290 = vpop.f32.mrf.mxu0
    %v5291 = vadd.f32 %v5264, %v5290
    %5292 = vdwg.mxu0
    %v5293 = vmax.f32 %v5291, 0.0
    %v5294 = vld [vmem:[%s2] sm:$0x3]
    %vm5295 = vcmp.ne.f32.partialorder %v5294, %v5294
    %v5296 = vsel %vm5295, 0.0, %v5294
    %v5297 = vmax.f32 %v5296, -3.4028235e+38
    %v5298 = vmin.f32 %v5297, 3.4028235e+38
    %v5299 = vld [vmem:[%s3 + $0x470] sm:$0x7]
    %v5300 = vld [vmem:[%s3 + $0x478] sm:$0x1]
    %v5301 = vperm.slane %v5300, 0
    %vm5302 = vcmask 23552
    %v5304 = vsel %vm5302, %v5298, 0
    %vm5306 = vcmask 1042432
    %v5308 = vsel %vm5306, %v5299, 0
    %5310 = vmatpush.msra.mxu0 0.0
    %5311 = vmatpush.msra.mxu0 0.0
    %5312 = vmatpush.msra.mxu0 0.0
    %5313 = vmatpush.msra.mxu0 0.0
    %5314 = vmatpush.msra.mxu0 0.0
    %5315 = vmatpush.msra.mxu0 0.0
    %5316 = vmatpush.msra.mxu0 0.0
    %5317 = vmatpush.msra.mxu0 0.0
    %5318 = vmatpush.msra.mxu0 0.0
    %5319 = vmatpush.msra.mxu0 0.0
    %5320 = vmatpush.msra.mxu0 0.0
    %5321 = vmatpush.msra.mxu0 0.0
    %5322 = vmatpush.msra.mxu0 0.0
    %5323 = vmatpush.msra.mxu0 0.0
    %5324 = vmatpush.msra.mxu0 0.0
    %5325 = vmatpush.msra.mxu0 %v5308
    %5326 = vmatmul.f32.gmra.mxu0 %v5304
    %v5327 = vpop.f32.mrf.mxu0
    %v5328 = vadd.f32 %v5301, %v5327
    %5329 = vdwg.mxu0
    %v5330 = vmax.f32 %v5328, 0.0
    %v5331 = vld [vmem:[%s3 + $0x480] sm:$0xff]
    %v5332 = vld [vmem:[%s3 + $0x488] sm:$0xff]
    %v5333 = vld [vmem:[%s3 + $0x490] sm:$0xff]
    %v5334 = vld [vmem:[%s3 + $0x498] sm:$0xff]
    %v5335 = vld [vmem:[%s3 + $0x4a0] sm:$0xff]
    %v5336 = vld [vmem:[%s3 + $0x4a8] sm:$0xff]
    %v5337 = vld [vmem:[%s3 + $0x4b0] sm:$0xff]
    %v5338 = vld [vmem:[%s3 + $0x4b8] sm:$0xff]
    %v5339 = vld [vmem:[%s3 + $0x4c0] sm:$0xff]
    %v5340 = vld [vmem:[%s3 + $0x4c8] sm:$0xff]
    %v5341 = vld [vmem:[%s3 + $0x4d0] sm:$0xff]
    %v5342 = vld [vmem:[%s3 + $0x4d8] sm:$0xff]
    %v5343 = vld [vmem:[%s3 + $0x4e0] sm:$0xff]
    %v5344 = vld [vmem:[%s3 + $0x4e8] sm:$0xff]
    %v5345 = vld [vmem:[%s3 + $0x4f0] sm:$0xff]
    %v5346 = vld [vmem:[%s3 + $0x4f8] sm:$0xff]
    %v5347 = vld [vmem:[%s3 + $0x500] sm:$0xff]
    %v5348 = vld [vmem:[%s3 + $0x508] sm:$0xff]
    %v5349 = vld [vmem:[%s3 + $0x510] sm:$0xff]
    %v5351 = vsel %vm1364, %v5293, 0
    %5353 = vmatpush.msra.mxu0 0.0
    %5354 = vmatpush.msra.mxu0 0.0
    %5355 = vmatpush.msra.mxu0 0.0
    %5356 = vmatpush.msra.mxu0 0.0
    %5357 = vmatpush.msra.mxu0 0.0
    %5358 = vmatpush.msra.mxu0 0.0
    %5359 = vmatpush.msra.mxu0 0.0
    %5360 = vmatpush.msra.mxu0 0.0
    %5361 = vmatpush.msra.mxu0 0.0
    %5362 = vmatpush.msra.mxu0 0.0
    %5363 = vmatpush.msra.mxu0 0.0
    %5364 = vmatpush.msra.mxu0 0.0
    %5365 = vmatpush.msra.mxu0 0.0
    %5366 = vmatpush.msra.mxu0 0.0
    %5367 = vmatpush.msra.mxu0 %v5348
    %5368 = vmatpush.msra.mxu0 %v5347
    %5369 = vmatmul.f32.gmra.mxu0 %v5351
    %v5370 = vpop.f32.mrf.mxu0
    %v5371 = vadd.f32 0.0, %v5370
    %5372 = vdwg.mxu0
    %5373 = vmatpush.msra.mxu0 %v5346
    %5374 = vmatpush.msra.mxu0 %v5345
    %5375 = vmatpush.msra.mxu0 %v5344
    %5376 = vmatpush.msra.mxu0 %v5343
    %5377 = vmatpush.msra.mxu0 %v5342
    %5378 = vmatpush.msra.mxu0 %v5341
    %5379 = vmatpush.msra.mxu0 %v5340
    %5380 = vmatpush.msra.mxu0 %v5339
    %5381 = vmatpush.msra.mxu0 %v5338
    %5382 = vmatpush.msra.mxu0 %v5337
    %5383 = vmatpush.msra.mxu0 %v5336
    %5384 = vmatpush.msra.mxu0 %v5335
    %5385 = vmatpush.msra.mxu0 %v5334
    %5386 = vmatpush.msra.mxu0 %v5333
    %5387 = vmatpush.msra.mxu0 %v5332
    %5388 = vmatpush.msra.mxu0 %v5331
    %5389 = vmatmul.f32.gmra.mxu0 %v5255
    %v5390 = vpop.f32.mrf.mxu0
    %v5391 = vadd.f32 %v5371, %v5390
    %5392 = vdwg.mxu0
    %v5394 = vsel %vm5019, %v5330, 0
    %5396 = vmatpush.msra.mxu0 0.0
    %5397 = vmatpush.msra.mxu0 0.0
    %5398 = vmatpush.msra.mxu0 0.0
    %5399 = vmatpush.msra.mxu0 0.0
    %5400 = vmatpush.msra.mxu0 0.0
    %5401 = vmatpush.msra.mxu0 0.0
    %5402 = vmatpush.msra.mxu0 0.0
    %5403 = vmatpush.msra.mxu0 0.0
    %5404 = vmatpush.msra.mxu0 0.0
    %5405 = vmatpush.msra.mxu0 0.0
    %5406 = vmatpush.msra.mxu0 0.0
    %5407 = vmatpush.msra.mxu0 0.0
    %5408 = vmatpush.msra.mxu0 0.0
    %5409 = vmatpush.msra.mxu0 0.0
    %5410 = vmatpush.msra.mxu0 0.0
    %5411 = vmatpush.msra.mxu0 %v5349
    %5412 = vmatmul.f32.gmra.mxu0 %v5394
    %v5413 = vpop.f32.mrf.mxu0
    %v5414 = vadd.f32 0.0, %v5413
    %5415 = vdwg.mxu0
    %v5416 = vadd.f32 %v5391, %v5414
    %v5417 = vld [vmem:[%s3 + $0x518] sm:$0x1]
    %v5418 = vperm.slane %v5417, 0
    %v5419 = vadd.f32 %v5416, %v5418
    %v5420 = vmax.f32 %v5419, 0.0
    %v5421 = vld [vmem:[%s3 + $0x520] sm:$0xff]
    %v5422 = vld [vmem:[%s3 + $0x528] sm:$0xff]
    %v5423 = vld [vmem:[%s3 + $0x530] sm:$0xff]
    %v5424 = vld [vmem:[%s3 + $0x538] sm:$0xff]
    %v5425 = vld [vmem:[%s3 + $0x540] sm:$0xff]
    %v5426 = vld [vmem:[%s3 + $0x548] sm:$0xff]
    %v5427 = vld [vmem:[%s3 + $0x550] sm:$0xff]
    %v5428 = vld [vmem:[%s3 + $0x558] sm:$0xff]
    %v5429 = vld [vmem:[%s3 + $0x560] sm:$0xff]
    %v5430 = vld [vmem:[%s3 + $0x568] sm:$0xff]
    %v5431 = vld [vmem:[%s3 + $0x570] sm:$0xff]
    %v5432 = vld [vmem:[%s3 + $0x578] sm:$0xff]
    %v5433 = vld [vmem:[%s3 + $0x580] sm:$0xff]
    %v5434 = vld [vmem:[%s3 + $0x588] sm:$0xff]
    %v5435 = vld [vmem:[%s3 + $0x590] sm:$0xff]
    %v5436 = vld [vmem:[%s3 + $0x598] sm:$0xff]
    %v5437 = vld [vmem:[%s3 + $0x5a0] sm:$0x1]
    %v5438 = vperm.slane %v5437, 0
    %5439 = vmatpush.msra.mxu0 %v5436
    %5440 = vmatpush.msra.mxu0 %v5435
    %5441 = vmatpush.msra.mxu0 %v5434
    %5442 = vmatpush.msra.mxu0 %v5433
    %5443 = vmatpush.msra.mxu0 %v5432
    %5444 = vmatpush.msra.mxu0 %v5431
    %5445 = vmatpush.msra.mxu0 %v5430
    %5446 = vmatpush.msra.mxu0 %v5429
    %5447 = vmatpush.msra.mxu0 %v5428
    %5448 = vmatpush.msra.mxu0 %v5427
    %5449 = vmatpush.msra.mxu0 %v5426
    %5450 = vmatpush.msra.mxu0 %v5425
    %5451 = vmatpush.msra.mxu0 %v5424
    %5452 = vmatpush.msra.mxu0 %v5423
    %5453 = vmatpush.msra.mxu0 %v5422
    %5454 = vmatpush.msra.mxu0 %v5421
    %5455 = vmatmul.f32.gmra.mxu0 %v5420
    %v5456 = vpop.f32.mrf.mxu0
    %v5457 = vadd.f32 %v5438, %v5456
    %5458 = vdwg.mxu0
    %vm5459 = vcmask 17408
    %5460 = vst.msk [vmem:[#allocation2] sm:$0x3] %vm5459, %v5457
    // Predicated region
    $region22: #{forward.1} parent=1 // pred_check
      _
    $region23: #{forward.1} parent=1 // pred_check_branch
      %5462 = sbr.rel (0) target = $region25
    $region24: #{forward.1} parent=1 // pred_region
      %5464 = vsyncadd [#allocation3], 0
      %s5466 = sshll.u32 [#allocation2], 4
      %s5467 = int_to_ptr.vmem [resolvable:$true] %s5466
      %s5468 = sshll.u32 %s5, 4
      %s5469 = int_to_ptr.hbm [resolvable:$true] %s5468
      %5471 = dma.vmem_to_hbm [thread:$0]  %s5467, 32, %s5469, [#allocation3]
    $region25: #{forward.1} parent=1 // pred_fallthru
      _
    // Predicated region
    $region26: #{forward.1} parent=1 // pred_check
      _
    $region27: #{forward.1} parent=1 // pred_check_branch
      %5473 = sbr.rel (0) target = $region29
    $region28: #{forward.1} parent=1 // pred_region
      %5475 = dma.done [#allocation3], 32
    $region29: #{forward.1} parent=1 // pred_fallthru
      _
    %5476 = vsyncpa [#allocation3], 1

</llo_original>
